<compile_context>
chip_gen: v5e
topology: v5e:2x2
jax: 0.10.0
libtpu: 0.0.40
codegen_flags: <defaults>
</compile_context>

<pallas_src>
import functools

import jax
import jax.numpy as jnp
from jax.experimental import pallas as pl
from jax.experimental.pallas import tpu as pltpu


# ------------------------------------------------------------------ config

_MM_DTYPE = jnp.bfloat16     # MXU operand + bulk storage dtype (f32 accumulate)
_BT_MAX = 8                  # max graphs per grid step (VMEM headroom)

_PARALLEL = pltpu.CompilerParams(dimension_semantics=("parallel",))


def _batch_tile(b):
    """Graphs per grid step.

    Keeps >= 2 grid steps when b >= 2 so v7x's two TensorCores both get work
    (on v5e/v6e the extra step is just a cheap loop iteration) and caps the
    tile so double-buffered per-step VMEM stays small.
    """
    if b <= 1:
        return 1
    bt = max(1, min(_BT_MAX, b // 2))
    while b % bt:
        bt -= 1
    return bt


def _elu(x):
    # matches torch.nn.ELU(alpha=1.0)
    return jnp.where(x > 0, x, jnp.exp(x) - 1.0)


def _sigmoid(x):
    return 1.0 / (1.0 + jnp.exp(-x))


def _vmem():
    return pl.BlockSpec(memory_space=pltpu.MemorySpace.VMEM)


# ------------------------------------------------------------------ kernel bodies

def _gcn_body(g_bf, h_bf, wt_ref, b_ref):
    """ELU((g @ h) @ Wt + b), f32 accumulation. Returns (Bt, N, dout) f32."""
    gh = jnp.einsum("bij,bjd->bid", g_bf, h_bf,
                    preferred_element_type=jnp.float32)          # (Bt, N, Din)
    bt, n, d = gh.shape
    z = jnp.dot(gh.reshape(bt * n, d).astype(_MM_DTYPE), wt_ref[...],
                preferred_element_type=jnp.float32) + b_ref[...]
    return _elu(z).reshape(bt, n, -1)                            # (Bt, N, Dout)


def _norm_sgcn_kernel(g_ref, h_ref, wt_ref, b_ref, gn_ref, gb_ref, h_out_ref):
    # Fuses norm_g + the first (s_gcn) GCN; also emits the binarized 0/1
    # adjacency used by the pooling stages.
    g = g_ref[...]                                               # (Bt, N, N) f32
    # torch: degrees = g.sum(1); g / degrees  (column j divided by deg[j]).
    # Every adjacency reaching a norm step here is SYMMETRIC (inputs are
    # symmetrized with self-loops; pooled graphs are bool(A)@bool(A) gathered
    # with the same idx on both axes), so the column-sum below equals torch's
    # row-sum and needs no transpose; self-loops guarantee deg > 0.
    deg = jnp.sum(g, axis=-2, keepdims=True)                     # (Bt, 1, N)
    gn = g * pl.reciprocal(deg, approx=True)                     # EUP reciprocal
    gn_bf = gn.astype(_MM_DTYPE)
    gn_ref[...] = gn_bf
    gb_ref[...] = (g != 0.0).astype(_MM_DTYPE)                   # 0/1 pattern
    h_out_ref[...] = _gcn_body(gn_bf, h_ref[...].astype(_MM_DTYPE),
                               wt_ref, b_ref).astype(_MM_DTYPE)


def _gcn_kernel(g_ref, h_ref, wt_ref, b_ref, o_ref):
    o_ref[...] = _gcn_body(g_ref[...], h_ref[...], wt_ref, b_ref).astype(_MM_DTYPE)


def _gcn_res_kernel(g_ref, h_ref, wt_ref, b_ref, r_ref, o_ref):
    # up-GCN fused with the skip-connection add
    out = _gcn_body(g_ref[...], h_ref[...], wt_ref, b_ref)
    o_ref[...] = (out + r_ref[...].astype(jnp.float32)).astype(_MM_DTYPE)


def _gcn_res_final_kernel(g_ref, h_ref, wt_ref, b_ref, r1_ref, r2_ref,
                          o_pre_ref, o_fin_ref):
    # last up-GCN: fuse BOTH the skip add (r1 = down_outs[0]) and the trailing
    # `h = h + org_h` (r2 = org_h); both intermediates feed the readout.
    pre = _gcn_body(g_ref[...], h_ref[...], wt_ref, b_ref) \
        + r1_ref[...].astype(jnp.float32)
    o_pre_ref[...] = pre.astype(_MM_DTYPE)
    o_fin_ref[...] = (pre + r2_ref[...].astype(jnp.float32)).astype(_MM_DTYPE)


def _gcn_pool_kernel(g_ref, h_ref, wt_ref, b_ref, wp_ref, bp_ref,
                     h_out_ref, s_out_ref):
    # down-GCN fused with the pool scoring head: h never leaves VMEM between them.
    hn = _gcn_body(g_ref[...], h_ref[...], wt_ref, b_ref)        # (Bt, N, D) f32
    h_out_ref[...] = hn.astype(_MM_DTYPE)
    bt, n, d = hn.shape
    # score = sigmoid(hn @ wp^T + bp); wp is the (1, D) proj row, computed as a
    # batched (1,D)x(D,N) contraction so the output is already a lane-major
    # (Bt, 1, N) row (no (N,1) masked-store column).
    wp_b = jnp.broadcast_to(wp_ref[...], (bt, 1, d))
    s = jnp.einsum("bmd,bnd->bmn", wp_b, hn,
                   preferred_element_type=jnp.float32) + bp_ref[...]
    s_out_ref[...] = _sigmoid(s)                                 # (Bt, 1, N) f32


def _pool_adj_kernel(gr_ref, gn_ref, gb_ref):
    # gr = bool(g)[idx, :] as 0/1 bf16.  Since bool(g) is symmetric,
    # bool(g)[:, idx] == bool(g)[idx, :]^T, so the pooled pattern is R @ R^T.
    # Binarize + degree-normalize in the same kernel; also emit the binarized
    # pooled adjacency for the next pooling level.
    a = gr_ref[...]                                              # (Bt, kk, N) 0/1
    prod = jnp.einsum("bin,bjn->bij", a, a,
                      preferred_element_type=jnp.float32)        # (Bt, kk, kk)
    un = (prod != 0.0).astype(jnp.float32)
    deg = jnp.sum(un, axis=-2, keepdims=True)                    # symmetric
    gn_ref[...] = (un * pl.reciprocal(deg, approx=True)).astype(_MM_DTYPE)
    gb_ref[...] = un.astype(_MM_DTYPE)


def _readout_kernel(*refs):
    # Inputs: one ref per level (Bt, N_l, D) bf16 -- no pad/stack glue array.
    # Output: (Bt, 1, 3*L*D) f32 written with a single lane-dense store in the
    # torch.cat(h_max + h_sum + h_mean) order.
    hs_refs, o_ref = refs[:-1], refs[-1]
    maxs, sums, means = [], [], []
    for r in hs_refs:                                            # static unroll
        hl = r[...].astype(jnp.float32)                          # (Bt, N_l, D)
        n_l = hl.shape[1]
        mx = jnp.max(hl, axis=1, keepdims=True)                  # (Bt, 1, D)
        sm = jnp.sum(hl, axis=1, keepdims=True)
        maxs.append(mx)
        sums.append(sm)
        means.append(sm * (1.0 / n_l))
    o_ref[...] = jnp.concatenate(maxs + sums + means, axis=-1)


def _classify_kernel(h_ref, w1t_ref, b1_ref, w2t_ref, b2_ref, o_ref):
    z = jnp.dot(h_ref[...].astype(_MM_DTYPE), w1t_ref[...],
                preferred_element_type=jnp.float32) + b1_ref[...]
    z = _elu(z)
    z = jnp.dot(z.astype(_MM_DTYPE), w2t_ref[...],
                preferred_element_type=jnp.float32) + b2_ref[...]
    m = jnp.max(z, axis=1, keepdims=True)
    zs = z - m
    o_ref[...] = zs - jnp.log(jnp.sum(jnp.exp(zs), axis=1, keepdims=True))


# ------------------------------------------------------------------ wrappers

def norm_sgcn(g, h, p):
    b, n, _ = g.shape
    din = h.shape[2]
    dout = p["wt"].shape[1]
    bt = _batch_tile(b)
    bmap = lambda i: (i, 0, 0)
    wmap = lambda i: (0, 0)
    return pl.pallas_call(
        _norm_sgcn_kernel,
        grid=(b // bt,),
        in_specs=[
            pl.BlockSpec((bt, n, n), bmap),
            pl.BlockSpec((bt, n, din), bmap),
            pl.BlockSpec((din, dout), wmap),
            pl.BlockSpec((1, dout), wmap),
        ],
        out_specs=(
            pl.BlockSpec((bt, n, n), bmap),
            pl.BlockSpec((bt, n, n), bmap),
            pl.BlockSpec((bt, n, dout), bmap),
        ),
        out_shape=(
            jax.ShapeDtypeStruct((b, n, n), _MM_DTYPE),      # normalized g
            jax.ShapeDtypeStruct((b, n, n), _MM_DTYPE),      # binarized 0/1 g
            jax.ShapeDtypeStruct((b, n, dout), _MM_DTYPE),   # s_gcn output
        ),
        compiler_params=_PARALLEL,
    )(g, h, p["wt"], p["b"])


def gcn(g, h, p):
    b, n, _ = g.shape
    din, dout = p["wt"].shape
    bt = _batch_tile(b)
    bmap = lambda i: (i, 0, 0)
    wmap = lambda i: (0, 0)
    return pl.pallas_call(
        _gcn_kernel,
        grid=(b // bt,),
        in_specs=[
            pl.BlockSpec((bt, n, n), bmap),
            pl.BlockSpec((bt, n, din), bmap),
            pl.BlockSpec((din, dout), wmap),
            pl.BlockSpec((1, dout), wmap),
        ],
        out_specs=pl.BlockSpec((bt, n, dout), bmap),
        out_shape=jax.ShapeDtypeStruct((b, n, dout), _MM_DTYPE),
        compiler_params=_PARALLEL,
    )(g, h, p["wt"], p["b"])


def gcn_res(g, h, p, res):
    b, n, _ = g.shape
    din, dout = p["wt"].shape
    bt = _batch_tile(b)
    bmap = lambda i: (i, 0, 0)
    wmap = lambda i: (0, 0)
    return pl.pallas_call(
        _gcn_res_kernel,
        grid=(b // bt,),
        in_specs=[
            pl.BlockSpec((bt, n, n), bmap),
            pl.BlockSpec((bt, n, din), bmap),
            pl.BlockSpec((din, dout), wmap),
            pl.BlockSpec((1, dout), wmap),
            pl.BlockSpec((bt, n, dout), bmap),
        ],
        out_specs=pl.BlockSpec((bt, n, dout), bmap),
        out_shape=jax.ShapeDtypeStruct((b, n, dout), _MM_DTYPE),
        compiler_params=_PARALLEL,
    )(g, h, p["wt"], p["b"], res)


def gcn_res_final(g, h, p, res1, res2):
    b, n, _ = g.shape
    din, dout = p["wt"].shape
    bt = _batch_tile(b)
    bmap = lambda i: (i, 0, 0)
    wmap = lambda i: (0, 0)
    return pl.pallas_call(
        _gcn_res_final_kernel,
        grid=(b // bt,),
        in_specs=[
            pl.BlockSpec((bt, n, n), bmap),
            pl.BlockSpec((bt, n, din), bmap),
            pl.BlockSpec((din, dout), wmap),
            pl.BlockSpec((1, dout), wmap),
            pl.BlockSpec((bt, n, dout), bmap),
            pl.BlockSpec((bt, n, dout), bmap),
        ],
        out_specs=(
            pl.BlockSpec((bt, n, dout), bmap),
            pl.BlockSpec((bt, n, dout), bmap),
        ),
        out_shape=(
            jax.ShapeDtypeStruct((b, n, dout), _MM_DTYPE),   # elu(gcn)+res1
            jax.ShapeDtypeStruct((b, n, dout), _MM_DTYPE),   # ... + res2 (org_h)
        ),
        compiler_params=_PARALLEL,
    )(g, h, p["wt"], p["b"], res1, res2)


def gcn_pool(g, h, p_gcn, p_pool):
    b, n, _ = g.shape
    din, dout = p_gcn["wt"].shape
    bt = _batch_tile(b)
    bmap = lambda i: (i, 0, 0)
    wmap = lambda i: (0, 0)
    h_new, scores = pl.pallas_call(
        _gcn_pool_kernel,
        grid=(b // bt,),
        in_specs=[
            pl.BlockSpec((bt, n, n), bmap),
            pl.BlockSpec((bt, n, din), bmap),
            pl.BlockSpec((din, dout), wmap),
            pl.BlockSpec((1, dout), wmap),
            pl.BlockSpec((1, dout), wmap),     # pool proj row (1, dout), f32
            pl.BlockSpec((1, 1), wmap),        # pool bias
        ],
        out_specs=(
            pl.BlockSpec((bt, n, dout), bmap),
            pl.BlockSpec((bt, 1, n), bmap),
        ),
        out_shape=(
            jax.ShapeDtypeStruct((b, n, dout), _MM_DTYPE),
            jax.ShapeDtypeStruct((b, 1, n), jnp.float32),
        ),
        compiler_params=_PARALLEL,
    )(g, h, p_gcn["wt"], p_gcn["b"], p_pool["w"], p_pool["b"])
    return h_new, scores[:, 0, :]                               # (B, N) f32


def pool_adj(g_rows):
    b, kk, n = g_rows.shape
    bt = _batch_tile(b)
    bmap = lambda i: (i, 0, 0)
    return pl.pallas_call(
        _pool_adj_kernel,
        grid=(b // bt,),
        in_specs=[pl.BlockSpec((bt, kk, n), bmap)],
        out_specs=(
            pl.BlockSpec((bt, kk, kk), bmap),
            pl.BlockSpec((bt, kk, kk), bmap),
        ),
        out_shape=(
            jax.ShapeDtypeStruct((b, kk, kk), _MM_DTYPE),    # normalized
            jax.ShapeDtypeStruct((b, kk, kk), _MM_DTYPE),    # binarized 0/1
        ),
        compiler_params=_PARALLEL,
    )(g_rows)


def readout(hs_list):
    b = hs_list[0].shape[0]
    d = hs_list[0].shape[2]
    num_l = len(hs_list)
    bt = _batch_tile(b)
    bmap = lambda i: (i, 0, 0)
    in_specs = [pl.BlockSpec((bt, int(h.shape[1]), d), bmap) for h in hs_list]
    out = pl.pallas_call(
        _readout_kernel,
        grid=(b // bt,),
        in_specs=in_specs,
        out_specs=pl.BlockSpec((bt, 1, 3 * num_l * d), bmap),
        out_shape=jax.ShapeDtypeStruct((b, 1, 3 * num_l * d), jnp.float32),
        compiler_params=_PARALLEL,
    )(*hs_list)
    return out.reshape(b, 3 * num_l * d)


def classify(feats, p1, p2):
    b = feats.shape[0]
    ncls = p2["wt"].shape[1]
    return pl.pallas_call(
        _classify_kernel,
        out_shape=jax.ShapeDtypeStruct((b, ncls), jnp.float32),
        in_specs=[_vmem()] * 5,
        out_specs=_vmem(),
    )(feats, p1["wt"], p1["b"], p2["wt"], p2["b"])


# ------------------------------------------------------------------ model glue

def top_k_graph(scores, g_bin, h, k):
    # scores: (B, N) f32; g_bin: (B, N, N) 0/1 bf16; h: (B, N, D) bf16
    num_nodes = g_bin.shape[1]
    kk = max(2, int(k * num_nodes))
    # TODO(synk): top-k selection and the index gathers are data-dependent and
    # stay in plain JAX (same jit); torch.topk tie-breaking may differ.
    values, idx = jax.lax.top_k(scores, kk)                      # (B, kk)
    new_h = (jnp.take_along_axis(h, idx[:, :, None], axis=1).astype(jnp.float32)
             * values[:, :, None]).astype(_MM_DTYPE)
    # Symmetric 0/1 pattern => bool(g)[:, idx] == bool(g)[idx, :]^T: one row
    # gather feeds R @ R^T inside the kernel (no column gather, no NxN product).
    g_rows = jnp.take_along_axis(g_bin, idx[:, :, None], axis=1)  # (B, kk, N)
    g_new, g_bin_new = pool_adj(g_rows)
    return g_new, g_bin_new, new_h, idx


def graph_unet(params, ks, g, g_bin, h):
    l_n = len(ks)
    adj_ms, idx_list, down_outs, hs = [], [], [], []
    org_h = h
    for i in range(l_n):
        h, scores = gcn_pool(g, h, params["down"][i], params["pool"][i])
        adj_ms.append(g)
        down_outs.append(h)
        g, g_bin, h, idx = top_k_graph(scores, g_bin, h, ks[i])
        idx_list.append(idx)
    h = gcn(g, h, params["bottom"])
    bsz = org_h.shape[0]
    batch_ix = jnp.arange(bsz)[:, None]
    if l_n == 0:
        h = (h.astype(jnp.float32) + org_h.astype(jnp.float32)).astype(_MM_DTYPE)
        hs.append(h)
        return hs
    for i in range(l_n):
        up_idx = l_n - 1 - i
        g, idx = adj_ms[up_idx], idx_list[up_idx]
        # TODO(synk): Unpool scatter (index-based) stays a plain-JAX scatter.
        full = jnp.zeros((bsz, g.shape[1], h.shape[2]), _MM_DTYPE)
        h = full.at[batch_ix, idx].set(h)
        if i == l_n - 1:
            # last up level: fuse skip add AND the trailing `h = h + org_h`
            h_pre, h = gcn_res_final(g, h, params["up"][i],
                                     down_outs[up_idx], org_h)
            hs.append(h_pre)
            hs.append(h)
        else:
            h = gcn_res(g, h, params["up"][i], down_outs[up_idx])
            hs.append(h)
    return hs


def embed(params, ks, g_raw, h_raw):
    # norm_g fused into the first GCN; also produces the binarized adjacency.
    g, g_bin, h = norm_sgcn(g_raw, h_raw, params["s_gcn"])
    hs = graph_unet(params, ks, g, g_bin, h)
    return readout(hs)                                  # (B, 3*l_dim*(l_n+1)) f32


def metric(logits, labels):
    bsz = logits.shape[0]
    loss = -jnp.mean(logits[jnp.arange(bsz), labels])   # F.nll_loss (mean)
    preds = jnp.argmax(logits, axis=1)
    acc = jnp.mean((preds == labels).astype(jnp.float32))
    return loss, acc


@functools.partial(jax.jit, static_argnums=(1,))
def gnet_forward(params, ks, gs, hs, labels):
    feats = embed(params, ks, gs, hs)
    logits = classify(feats, params["out1"], params["out2"])
    return metric(logits, labels)


# ------------------------------------------------------------------ init

def glorot(key, shape):
    fan_in, fan_out = shape
    limit = (6.0 / (fan_in + fan_out)) ** 0.5
    return jax.random.uniform(key, shape, jnp.float32, -limit, limit)


def init_params(key, in_dim, l_dim, h_dim, n_classes, ks):
    l_n = len(ks)
    keys = jax.random.split(key, 4 + 3 * l_n)
    ki = iter(keys)

    def lin(k, out_d, in_d):
        # W stored pre-transposed (in_d, out_d) AND pre-cast to bf16 (MXU
        # operand dtype); bias stays f32 and is added to the f32 accumulator.
        return {"wt": glorot(k, (out_d, in_d)).T.astype(_MM_DTYPE),
                "b": jnp.zeros((1, out_d), jnp.float32)}

    def pool_lin(k, in_d):
        # pool proj row stays f32: the score matvec runs on the f32 activations
        # and feeds top-k selection.
        return {"w": glorot(k, (1, in_d)),
                "b": jnp.zeros((1, 1), jnp.float32)}

    return {
        "s_gcn": lin(next(ki), l_dim, in_dim),
        "bottom": lin(next(ki), l_dim, l_dim),
        "down": [lin(next(ki), l_dim, l_dim) for _ in range(l_n)],
        "up": [lin(next(ki), l_dim, l_dim) for _ in range(l_n)],
        "pool": [pool_lin(next(ki), l_dim) for _ in range(l_n)],
        "out1": lin(next(ki), h_dim, 3 * l_dim * (l_n + 1)),
        "out2": lin(next(ki), n_classes, h_dim),
    }


# ------------------------------------------------------------------ main

if __name__ == "__main__":
    # synthetic "args": act_n = act_c = ELU, drop_n = drop_c = 0 (dropout => identity)
    B, N, in_dim = 2, 16, 8
    l_dim, h_dim, n_classes = 32, 32, 3
    ks = (0.9, 0.7)                                       # => l_num = 2

    key = jax.random.PRNGKey(0)
    k_params, k_g, k_h, k_lab = jax.random.split(key, 4)

    params = init_params(k_params, in_dim, l_dim, h_dim, n_classes, ks)

    gk = jax.random.split(k_g, B)
    hk = jax.random.split(k_h, B)
    g_list, h_list = [], []
    for bi in range(B):
        a = (jax.random.uniform(gk[bi], (N, N)) < 0.3).astype(jnp.float32)
        a = jnp.maximum(a, a.T)                           # symmetric (norm kernels rely on this)
        a = jnp.maximum(a, jnp.eye(N, dtype=jnp.float32)) # self-loops => degree > 0
        g_list.append(a)
        h_list.append(jax.random.normal(hk[bi], (N, in_dim), jnp.float32))
    gs = jnp.stack(g_list, 0)                             # (B, N, N)
    hs0 = jnp.stack(h_list, 0)                            # (B, N, in_dim)
    labels = jax.random.randint(k_lab, (B,), 0, n_classes)

    loss, acc = gnet_forward(params, ks, gs, hs0, labels)
    jax.block_until_ready((loss, acc))
    print("KERNEL_OK")
</pallas_src>

<mosaic_0001>
module attributes {stable_mosaic.version = 11 : i64} {
  func.func @_gcn_pool_kernel(%arg0: i32, %arg1: memref<1x16x16xbf16, #tpu.memory_space<vmem>>, %arg2: memref<1x16x32xbf16, #tpu.memory_space<vmem>>, %arg3: memref<32x32xbf16, #tpu.memory_space<vmem>>, %arg4: memref<1x32xf32, #tpu.memory_space<vmem>>, %arg5: memref<1x32xf32, #tpu.memory_space<vmem>>, %arg6: memref<1x1xf32, #tpu.memory_space<vmem>>, %arg7: memref<1x16x32xbf16, #tpu.memory_space<vmem>>, %arg8: memref<1x1x16xf32, #tpu.memory_space<vmem>>) attributes {dimension_semantics = [#tpu.dimension_semantics<parallel>], iteration_bounds = array<i64: 2>, scalar_prefetch = 0 : i64, scratch_operands = 0 : i64, tpu.core_type = #tpu.core_type<tc>, window_params = [{transform_indices = @transform_0, window_bounds = array<i64: 1, 16, 16>}, {transform_indices = @transform_1, window_bounds = array<i64: 1, 16, 32>}, {pipeline_mode = #tpu.pipeline_mode<synchronous>, transform_indices = @transform_2, window_bounds = array<i64: 32, 32>}, {pipeline_mode = #tpu.pipeline_mode<synchronous>, transform_indices = @transform_3, window_bounds = array<i64: 1, 32>}, {pipeline_mode = #tpu.pipeline_mode<synchronous>, transform_indices = @transform_4, window_bounds = array<i64: 1, 32>}, {pipeline_mode = #tpu.pipeline_mode<synchronous>, transform_indices = @transform_5, window_bounds = array<i64: 1, 1>}, {transform_indices = @transform_6, window_bounds = array<i64: 1, 16, 32>}, {transform_indices = @transform_7, window_bounds = array<i64: 1, 1, 16>}]} {
    %c0 = arith.constant 0 : index
    %c0_0 = arith.constant 0 : index
    %c0_1 = arith.constant 0 : index
    %0 = vector.load %arg1[%c0, %c0_0, %c0_1] : memref<1x16x16xbf16, #tpu.memory_space<vmem>>, vector<1x16x16xbf16>
    %c0_2 = arith.constant 0 : index
    %c0_3 = arith.constant 0 : index
    %c0_4 = arith.constant 0 : index
    %1 = vector.load %arg2[%c0_2, %c0_3, %c0_4] : memref<1x16x32xbf16, #tpu.memory_space<vmem>>, vector<1x16x32xbf16>
    "tpu.trace_start"() <{level = 10 : i32, message = "bij,bjd->bid"}> : () -> ()
    %cst = arith.constant dense<0.000000e+00> : vector<1x16x32xf32>
    %2 = tpu.matmul %0, %1, %cst {dimension_numbers = #tpu.dot_dimension_numbers<[2], [1], [1], [2], [0, 0, 0, 1, 1, 2], [0], [0]>} : vector<1x16x16xbf16>, vector<1x16x32xbf16>, vector<1x16x32xf32> -> vector<1x16x32xf32>
    "tpu.trace_stop"() : () -> ()
    %3 = vector.shape_cast %2 : vector<1x16x32xf32> to vector<16x32xf32>
    %4 = arith.truncf %3 : vector<16x32xf32> to vector<16x32xbf16>
    %c0_5 = arith.constant 0 : index
    %c0_6 = arith.constant 0 : index
    %5 = vector.load %arg3[%c0_5, %c0_6] : memref<32x32xbf16, #tpu.memory_space<vmem>>, vector<32x32xbf16>
    %cst_7 = arith.constant dense<0.000000e+00> : vector<16x32xf32>
    %6 = tpu.matmul %4, %5, %cst_7 {dimension_numbers = #tpu.dot_dimension_numbers<[1], [0], [0], [1], [0, 0, 1, 1], [], []>} : vector<16x32xbf16>, vector<32x32xbf16>, vector<16x32xf32> -> vector<16x32xf32>
    %c0_8 = arith.constant 0 : index
    %c0_9 = arith.constant 0 : index
    %7 = vector.load %arg4[%c0_8, %c0_9] : memref<1x32xf32, #tpu.memory_space<vmem>>, vector<1x32xf32>
    %8 = vector.broadcast %7 : vector<1x32xf32> to vector<16x32xf32>
    %9 = arith.addf %6, %8 : vector<16x32xf32>
    %cst_10 = arith.constant 0.000000e+00 : f32
    %10 = vector.broadcast %cst_10 : f32 to vector<16x32xf32>
    %11 = arith.cmpf ogt, %9, %10 : vector<16x32xf32>
    %12 = math.exp %9 : vector<16x32xf32>
    %cst_11 = arith.constant 1.000000e+00 : f32
    %13 = vector.broadcast %cst_11 : f32 to vector<16x32xf32>
    %14 = arith.subf %12, %13 : vector<16x32xf32>
    %15 = arith.select %11, %9, %14 : vector<16x32xi1>, vector<16x32xf32>
    %16 = vector.shape_cast %15 : vector<16x32xf32> to vector<1x16x32xf32>
    %17 = arith.truncf %16 : vector<1x16x32xf32> to vector<1x16x32xbf16>
    %c0_12 = arith.constant 0 : index
    %c0_13 = arith.constant 0 : index
    %c0_14 = arith.constant 0 : index
    %18 = vector.load %arg7[%c0_12, %c0_13, %c0_14] : memref<1x16x32xbf16, #tpu.memory_space<vmem>>, vector<1x16x32xbf16>
    tpu.vector_store %arg7[%c0_12, %c0_13, %c0_14], %17 {strides = array<i32>} : memref<1x16x32xbf16, #tpu.memory_space<vmem>>, vector<1x16x32xbf16>,
    %c0_15 = arith.constant 0 : index
    %c0_16 = arith.constant 0 : index
    %19 = vector.load %arg5[%c0_15, %c0_16] : memref<1x32xf32, #tpu.memory_space<vmem>>, vector<1x32xf32>
    %20 = vector.shape_cast %19 : vector<1x32xf32> to vector<1x1x32xf32>
    "tpu.trace_start"() <{level = 10 : i32, message = "bmd,bnd->bmn"}> : () -> ()
    %cst_17 = arith.constant dense<0.000000e+00> : vector<1x1x16xf32>
    %21 = tpu.matmul %20, %16, %cst_17 {dimension_numbers = #tpu.dot_dimension_numbers<[2], [2], [1], [1], [0, 0, 0, 1, 1, 1], [0], [0]>} : vector<1x1x32xf32>, vector<1x16x32xf32>, vector<1x1x16xf32> -> vector<1x1x16xf32>
    "tpu.trace_stop"() : () -> ()
    %c0_18 = arith.constant 0 : index
    %c0_19 = arith.constant 0 : index
    %22 = vector.load %arg6[%c0_18, %c0_19] : memref<1x1xf32, #tpu.memory_space<vmem>>, vector<1x1xf32>
    %23 = vector.shape_cast %22 : vector<1x1xf32> to vector<1x1x1xf32>
    %24 = vector.broadcast %23 : vector<1x1x1xf32> to vector<1x1x16xf32>
    %25 = arith.addf %21, %24 : vector<1x1x16xf32>
    %cst_20 = arith.constant 0.000000e+00 : f32
    %26 = vector.broadcast %cst_20 : f32 to vector<1x1x16xf32>
    %27 = arith.subf %26, %25 : vector<1x1x16xf32>
    %28 = math.exp %27 : vector<1x1x16xf32>
    %cst_21 = arith.constant 1.000000e+00 : f32
    %29 = vector.broadcast %cst_21 : f32 to vector<1x1x16xf32>
    %30 = arith.addf %29, %28 : vector<1x1x16xf32>
    %cst_22 = arith.constant 1.000000e+00 : f32
    %31 = vector.broadcast %cst_22 : f32 to vector<1x1x16xf32>
    %32 = arith.divf %31, %30 : vector<1x1x16xf32>
    %c0_23 = arith.constant 0 : index
    %c0_24 = arith.constant 0 : index
    %c0_25 = arith.constant 0 : index
    %33 = vector.load %arg8[%c0_23, %c0_24, %c0_25] : memref<1x1x16xf32, #tpu.memory_space<vmem>>, vector<1x1x16xf32>
    tpu.vector_store %arg8[%c0_23, %c0_24, %c0_25], %32 {strides = array<i32>} : memref<1x1x16xf32, #tpu.memory_space<vmem>>, vector<1x1x16xf32>,
    return
  }
  func.func @transform_0(%arg0: i32) -> (i32, i32, i32) {
    %c0_i32 = arith.constant 0 : i32
    %c0_i32_0 = arith.constant 0 : i32
    %c0_i32_1 = arith.constant 0 : i32
    return %arg0, %c0_i32, %c0_i32_0 : i32, i32, i32
  }
  func.func @transform_1(%arg0: i32) -> (i32, i32, i32) {
    %c0_i32 = arith.constant 0 : i32
    %c0_i32_0 = arith.constant 0 : i32
    %c0_i32_1 = arith.constant 0 : i32
    return %arg0, %c0_i32, %c0_i32_0 : i32, i32, i32
  }
  func.func @transform_2(%arg0: i32) -> (i32, i32) {
    %c0_i32 = arith.constant 0 : i32
    %c0_i32_0 = arith.constant 0 : i32
    %c0_i32_1 = arith.constant 0 : i32
    return %c0_i32, %c0_i32_0 : i32, i32
  }
  func.func @transform_3(%arg0: i32) -> (i32, i32) {
    %c0_i32 = arith.constant 0 : i32
    %c0_i32_0 = arith.constant 0 : i32
    %c0_i32_1 = arith.constant 0 : i32
    return %c0_i32, %c0_i32_0 : i32, i32
  }
  func.func @transform_4(%arg0: i32) -> (i32, i32) {
    %c0_i32 = arith.constant 0 : i32
    %c0_i32_0 = arith.constant 0 : i32
    %c0_i32_1 = arith.constant 0 : i32
    return %c0_i32, %c0_i32_0 : i32, i32
  }
  func.func @transform_5(%arg0: i32) -> (i32, i32) {
    %c0_i32 = arith.constant 0 : i32
    %c0_i32_0 = arith.constant 0 : i32
    %c0_i32_1 = arith.constant 0 : i32
    return %c0_i32, %c0_i32_0 : i32, i32
  }
  func.func @transform_6(%arg0: i32) -> (i32, i32, i32) {
    %c0_i32 = arith.constant 0 : i32
    %c0_i32_0 = arith.constant 0 : i32
    %c0_i32_1 = arith.constant 0 : i32
    return %arg0, %c0_i32, %c0_i32_0 : i32, i32, i32
  }
  func.func @transform_7(%arg0: i32) -> (i32, i32, i32) {
    %c0_i32 = arith.constant 0 : i32
    %c0_i32_0 = arith.constant 0 : i32
    %c0_i32_1 = arith.constant 0 : i32
    return %arg0, %c0_i32, %c0_i32_0 : i32, i32, i32
  }
}

module attributes {stable_mosaic.version = 11 : i64} {
  func.func @_norm_sgcn_kernel(%arg0: i32, %arg1: memref<1x16x16xf32, #tpu.memory_space<vmem>>, %arg2: memref<1x16x8xf32, #tpu.memory_space<vmem>>, %arg3: memref<8x32xbf16, #tpu.memory_space<vmem>>, %arg4: memref<1x32xf32, #tpu.memory_space<vmem>>, %arg5: memref<1x16x16xbf16, #tpu.memory_space<vmem>>, %arg6: memref<1x16x16xbf16, #tpu.memory_space<vmem>>, %arg7: memref<1x16x32xbf16, #tpu.memory_space<vmem>>) attributes {dimension_semantics = [#tpu.dimension_semantics<parallel>], iteration_bounds = array<i64: 2>, scalar_prefetch = 0 : i64, scratch_operands = 0 : i64, tpu.core_type = #tpu.core_type<tc>, window_params = [{transform_indices = @transform_0, window_bounds = array<i64: 1, 16, 16>}, {transform_indices = @transform_1, window_bounds = array<i64: 1, 16, 8>}, {pipeline_mode = #tpu.pipeline_mode<synchronous>, transform_indices = @transform_2, window_bounds = array<i64: 8, 32>}, {pipeline_mode = #tpu.pipeline_mode<synchronous>, transform_indices = @transform_3, window_bounds = array<i64: 1, 32>}, {transform_indices = @transform_4, window_bounds = array<i64: 1, 16, 16>}, {transform_indices = @transform_5, window_bounds = array<i64: 1, 16, 16>}, {transform_indices = @transform_6, window_bounds = array<i64: 1, 16, 32>}]} {
    %c0 = arith.constant 0 : index
    %c0_0 = arith.constant 0 : index
    %c0_1 = arith.constant 0 : index
    %0 = vector.load %arg1[%c0, %c0_0, %c0_1] : memref<1x16x16xf32, #tpu.memory_space<vmem>>, vector<1x16x16xf32>
    %cst = arith.constant dense<0.000000e+00> : vector<1x16xf32>
    %1 = vector.multi_reduction <add>, %0, %cst [1] : vector<1x16x16xf32> to vector<1x16xf32>
    %2 = vector.shape_cast %1 : vector<1x16xf32> to vector<1x1x16xf32>
    %3 = tpu.reciprocal %2 {approx = true} : vector<1x1x16xf32> -> vector<1x1x16xf32>
    %4 = vector.broadcast %3 : vector<1x1x16xf32> to vector<1x16x16xf32>
    %5 = arith.mulf %0, %4 : vector<1x16x16xf32>
    %6 = arith.truncf %5 : vector<1x16x16xf32> to vector<1x16x16xbf16>
    %c0_2 = arith.constant 0 : index
    %c0_3 = arith.constant 0 : index
    %c0_4 = arith.constant 0 : index
    %7 = vector.load %arg5[%c0_2, %c0_3, %c0_4] : memref<1x16x16xbf16, #tpu.memory_space<vmem>>, vector<1x16x16xbf16>
    tpu.vector_store %arg5[%c0_2, %c0_3, %c0_4], %6 {strides = array<i32>} : memref<1x16x16xbf16, #tpu.memory_space<vmem>>, vector<1x16x16xbf16>,
    %cst_5 = arith.constant 0.000000e+00 : f32
    %8 = vector.broadcast %cst_5 : f32 to vector<1x16x16xf32>
    %9 = arith.cmpf one, %0, %8 : vector<1x16x16xf32>
    %10 = arith.extui %9 : vector<1x16x16xi1> to vector<1x16x16xi32>
    %11 = arith.sitofp %10 : vector<1x16x16xi32> to vector<1x16x16xf32>
    %12 = arith.truncf %11 : vector<1x16x16xf32> to vector<1x16x16xbf16>
    %c0_6 = arith.constant 0 : index
    %c0_7 = arith.constant 0 : index
    %c0_8 = arith.constant 0 : index
    %13 = vector.load %arg6[%c0_6, %c0_7, %c0_8] : memref<1x16x16xbf16, #tpu.memory_space<vmem>>, vector<1x16x16xbf16>
    tpu.vector_store %arg6[%c0_6, %c0_7, %c0_8], %12 {strides = array<i32>} : memref<1x16x16xbf16, #tpu.memory_space<vmem>>, vector<1x16x16xbf16>,
    %c0_9 = arith.constant 0 : index
    %c0_10 = arith.constant 0 : index
    %c0_11 = arith.constant 0 : index
    %14 = vector.load %arg2[%c0_9, %c0_10, %c0_11] : memref<1x16x8xf32, #tpu.memory_space<vmem>>, vector<1x16x8xf32>
    %15 = arith.truncf %14 : vector<1x16x8xf32> to vector<1x16x8xbf16>
    "tpu.trace_start"() <{level = 10 : i32, message = "bij,bjd->bid"}> : () -> ()
    %cst_12 = arith.constant dense<0.000000e+00> : vector<1x16x8xf32>
    %16 = tpu.matmul %6, %15, %cst_12 {dimension_numbers = #tpu.dot_dimension_numbers<[2], [1], [1], [2], [0, 0, 0, 1, 1, 2], [0], [0]>} : vector<1x16x16xbf16>, vector<1x16x8xbf16>, vector<1x16x8xf32> -> vector<1x16x8xf32>
    "tpu.trace_stop"() : () -> ()
    %17 = vector.shape_cast %16 : vector<1x16x8xf32> to vector<16x8xf32>
    %18 = arith.truncf %17 : vector<16x8xf32> to vector<16x8xbf16>
    %c0_13 = arith.constant 0 : index
    %c0_14 = arith.constant 0 : index
    %19 = vector.load %arg3[%c0_13, %c0_14] : memref<8x32xbf16, #tpu.memory_space<vmem>>, vector<8x32xbf16>
    %cst_15 = arith.constant dense<0.000000e+00> : vector<16x32xf32>
    %20 = tpu.matmul %18, %19, %cst_15 {dimension_numbers = #tpu.dot_dimension_numbers<[1], [0], [0], [1], [0, 0, 1, 1], [], []>} : vector<16x8xbf16>, vector<8x32xbf16>, vector<16x32xf32> -> vector<16x32xf32>
    %c0_16 = arith.constant 0 : index
    %c0_17 = arith.constant 0 : index
    %21 = vector.load %arg4[%c0_16, %c0_17] : memref<1x32xf32, #tpu.memory_space<vmem>>, vector<1x32xf32>
    %22 = vector.broadcast %21 : vector<1x32xf32> to vector<16x32xf32>
    %23 = arith.addf %20, %22 : vector<16x32xf32>
    %cst_18 = arith.constant 0.000000e+00 : f32
    %24 = vector.broadcast %cst_18 : f32 to vector<16x32xf32>
    %25 = arith.cmpf ogt, %23, %24 : vector<16x32xf32>
    %26 = math.exp %23 : vector<16x32xf32>
    %cst_19 = arith.constant 1.000000e+00 : f32
    %27 = vector.broadcast %cst_19 : f32 to vector<16x32xf32>
    %28 = arith.subf %26, %27 : vector<16x32xf32>
    %29 = arith.select %25, %23, %28 : vector<16x32xi1>, vector<16x32xf32>
    %30 = vector.shape_cast %29 : vector<16x32xf32> to vector<1x16x32xf32>
    %31 = arith.truncf %30 : vector<1x16x32xf32> to vector<1x16x32xbf16>
    %c0_20 = arith.constant 0 : index
    %c0_21 = arith.constant 0 : index
    %c0_22 = arith.constant 0 : index
    %32 = vector.load %arg7[%c0_20, %c0_21, %c0_22] : memref<1x16x32xbf16, #tpu.memory_space<vmem>>, vector<1x16x32xbf16>
    tpu.vector_store %arg7[%c0_20, %c0_21, %c0_22], %31 {strides = array<i32>} : memref<1x16x32xbf16, #tpu.memory_space<vmem>>, vector<1x16x32xbf16>,
    return
  }
  func.func @transform_0(%arg0: i32) -> (i32, i32, i32) {
    %c0_i32 = arith.constant 0 : i32
    %c0_i32_0 = arith.constant 0 : i32
    %c0_i32_1 = arith.constant 0 : i32
    return %arg0, %c0_i32, %c0_i32_0 : i32, i32, i32
  }
  func.func @transform_1(%arg0: i32) -> (i32, i32, i32) {
    %c0_i32 = arith.constant 0 : i32
    %c0_i32_0 = arith.constant 0 : i32
    %c0_i32_1 = arith.constant 0 : i32
    return %arg0, %c0_i32, %c0_i32_0 : i32, i32, i32
  }
  func.func @transform_2(%arg0: i32) -> (i32, i32) {
    %c0_i32 = arith.constant 0 : i32
    %c0_i32_0 = arith.constant 0 : i32
    %c0_i32_1 = arith.constant 0 : i32
    return %c0_i32, %c0_i32_0 : i32, i32
  }
  func.func @transform_3(%arg0: i32) -> (i32, i32) {
    %c0_i32 = arith.constant 0 : i32
    %c0_i32_0 = arith.constant 0 : i32
    %c0_i32_1 = arith.constant 0 : i32
    return %c0_i32, %c0_i32_0 : i32, i32
  }
  func.func @transform_4(%arg0: i32) -> (i32, i32, i32) {
    %c0_i32 = arith.constant 0 : i32
    %c0_i32_0 = arith.constant 0 : i32
    %c0_i32_1 = arith.constant 0 : i32
    return %arg0, %c0_i32, %c0_i32_0 : i32, i32, i32
  }
  func.func @transform_5(%arg0: i32) -> (i32, i32, i32) {
    %c0_i32 = arith.constant 0 : i32
    %c0_i32_0 = arith.constant 0 : i32
    %c0_i32_1 = arith.constant 0 : i32
    return %arg0, %c0_i32, %c0_i32_0 : i32, i32, i32
  }
  func.func @transform_6(%arg0: i32) -> (i32, i32, i32) {
    %c0_i32 = arith.constant 0 : i32
    %c0_i32_0 = arith.constant 0 : i32
    %c0_i32_1 = arith.constant 0 : i32
    return %arg0, %c0_i32, %c0_i32_0 : i32, i32, i32
  }
}

module attributes {stable_mosaic.version = 11 : i64} {
  func.func @_pool_adj_kernel(%arg0: i32, %arg1: memref<1x14x16xbf16, #tpu.memory_space<vmem>>, %arg2: memref<1x14x14xbf16, #tpu.memory_space<vmem>>, %arg3: memref<1x14x14xbf16, #tpu.memory_space<vmem>>) attributes {dimension_semantics = [#tpu.dimension_semantics<parallel>], iteration_bounds = array<i64: 2>, scalar_prefetch = 0 : i64, scratch_operands = 0 : i64, tpu.core_type = #tpu.core_type<tc>, window_params = [{transform_indices = @transform_0, window_bounds = array<i64: 1, 14, 16>}, {transform_indices = @transform_1, window_bounds = array<i64: 1, 14, 14>}, {transform_indices = @transform_2, window_bounds = array<i64: 1, 14, 14>}]} {
    %c0 = arith.constant 0 : index
    %c0_0 = arith.constant 0 : index
    %c0_1 = arith.constant 0 : index
    %0 = vector.load %arg1[%c0, %c0_0, %c0_1] : memref<1x14x16xbf16, #tpu.memory_space<vmem>>, vector<1x14x16xbf16>
    "tpu.trace_start"() <{level = 10 : i32, message = "bin,bjn->bij"}> : () -> ()
    %cst = arith.constant dense<0.000000e+00> : vector<1x14x14xf32>
    %1 = tpu.matmul %0, %0, %cst {dimension_numbers = #tpu.dot_dimension_numbers<[2], [2], [1], [1], [0, 0, 0, 1, 1, 1], [0], [0]>} : vector<1x14x16xbf16>, vector<1x14x16xbf16>, vector<1x14x14xf32> -> vector<1x14x14xf32>
    %cst_2 = arith.constant 0.000000e+00 : f32
    "tpu.trace_stop"() : () -> ()
    %2 = vector.broadcast %cst_2 : f32 to vector<1x14x14xf32>
    %3 = arith.cmpf one, %1, %2 : vector<1x14x14xf32>
    %4 = arith.extui %3 : vector<1x14x14xi1> to vector<1x14x14xi32>
    %5 = arith.sitofp %4 : vector<1x14x14xi32> to vector<1x14x14xf32>
    %cst_3 = arith.constant dense<0.000000e+00> : vector<1x14xf32>
    %6 = vector.multi_reduction <add>, %5, %cst_3 [1] : vector<1x14x14xf32> to vector<1x14xf32>
    %7 = vector.shape_cast %6 : vector<1x14xf32> to vector<1x1x14xf32>
    %8 = tpu.reciprocal %7 {approx = true} : vector<1x1x14xf32> -> vector<1x1x14xf32>
    %9 = vector.broadcast %8 : vector<1x1x14xf32> to vector<1x14x14xf32>
    %10 = arith.mulf %5, %9 : vector<1x14x14xf32>
    %11 = arith.truncf %10 : vector<1x14x14xf32> to vector<1x14x14xbf16>
    %c0_4 = arith.constant 0 : index
    %c0_5 = arith.constant 0 : index
    %c0_6 = arith.constant 0 : index
    %12 = vector.load %arg2[%c0_4, %c0_5, %c0_6] : memref<1x14x14xbf16, #tpu.memory_space<vmem>>, vector<1x14x14xbf16>
    tpu.vector_store %arg2[%c0_4, %c0_5, %c0_6], %11 {strides = array<i32>} : memref<1x14x14xbf16, #tpu.memory_space<vmem>>, vector<1x14x14xbf16>,
    %13 = arith.truncf %5 : vector<1x14x14xf32> to vector<1x14x14xbf16>
    %c0_7 = arith.constant 0 : index
    %c0_8 = arith.constant 0 : index
    %c0_9 = arith.constant 0 : index
    %14 = vector.load %arg3[%c0_7, %c0_8, %c0_9] : memref<1x14x14xbf16, #tpu.memory_space<vmem>>, vector<1x14x14xbf16>
    tpu.vector_store %arg3[%c0_7, %c0_8, %c0_9], %13 {strides = array<i32>} : memref<1x14x14xbf16, #tpu.memory_space<vmem>>, vector<1x14x14xbf16>,
    return
  }
  func.func @transform_0(%arg0: i32) -> (i32, i32, i32) {
    %c0_i32 = arith.constant 0 : i32
    %c0_i32_0 = arith.constant 0 : i32
    %c0_i32_1 = arith.constant 0 : i32
    return %arg0, %c0_i32, %c0_i32_0 : i32, i32, i32
  }
  func.func @transform_1(%arg0: i32) -> (i32, i32, i32) {
    %c0_i32 = arith.constant 0 : i32
    %c0_i32_0 = arith.constant 0 : i32
    %c0_i32_1 = arith.constant 0 : i32
    return %arg0, %c0_i32, %c0_i32_0 : i32, i32, i32
  }
  func.func @transform_2(%arg0: i32) -> (i32, i32, i32) {
    %c0_i32 = arith.constant 0 : i32
    %c0_i32_0 = arith.constant 0 : i32
    %c0_i32_1 = arith.constant 0 : i32
    return %arg0, %c0_i32, %c0_i32_0 : i32, i32, i32
  }
}

module attributes {stable_mosaic.version = 11 : i64} {
  func.func @_gcn_pool_kernel(%arg0: i32, %arg1: memref<1x14x14xbf16, #tpu.memory_space<vmem>>, %arg2: memref<1x14x32xbf16, #tpu.memory_space<vmem>>, %arg3: memref<32x32xbf16, #tpu.memory_space<vmem>>, %arg4: memref<1x32xf32, #tpu.memory_space<vmem>>, %arg5: memref<1x32xf32, #tpu.memory_space<vmem>>, %arg6: memref<1x1xf32, #tpu.memory_space<vmem>>, %arg7: memref<1x14x32xbf16, #tpu.memory_space<vmem>>, %arg8: memref<1x1x14xf32, #tpu.memory_space<vmem>>) attributes {dimension_semantics = [#tpu.dimension_semantics<parallel>], iteration_bounds = array<i64: 2>, scalar_prefetch = 0 : i64, scratch_operands = 0 : i64, tpu.core_type = #tpu.core_type<tc>, window_params = [{transform_indices = @transform_0, window_bounds = array<i64: 1, 14, 14>}, {transform_indices = @transform_1, window_bounds = array<i64: 1, 14, 32>}, {pipeline_mode = #tpu.pipeline_mode<synchronous>, transform_indices = @transform_2, window_bounds = array<i64: 32, 32>}, {pipeline_mode = #tpu.pipeline_mode<synchronous>, transform_indices = @transform_3, window_bounds = array<i64: 1, 32>}, {pipeline_mode = #tpu.pipeline_mode<synchronous>, transform_indices = @transform_4, window_bounds = array<i64: 1, 32>}, {pipeline_mode = #tpu.pipeline_mode<synchronous>, transform_indices = @transform_5, window_bounds = array<i64: 1, 1>}, {transform_indices = @transform_6, window_bounds = array<i64: 1, 14, 32>}, {transform_indices = @transform_7, window_bounds = array<i64: 1, 1, 14>}]} {
    %c0 = arith.constant 0 : index
    %c0_0 = arith.constant 0 : index
    %c0_1 = arith.constant 0 : index
    %0 = vector.load %arg1[%c0, %c0_0, %c0_1] : memref<1x14x14xbf16, #tpu.memory_space<vmem>>, vector<1x14x14xbf16>
    %c0_2 = arith.constant 0 : index
    %c0_3 = arith.constant 0 : index
    %c0_4 = arith.constant 0 : index
    %1 = vector.load %arg2[%c0_2, %c0_3, %c0_4] : memref<1x14x32xbf16, #tpu.memory_space<vmem>>, vector<1x14x32xbf16>
    "tpu.trace_start"() <{level = 10 : i32, message = "bij,bjd->bid"}> : () -> ()
    %cst = arith.constant dense<0.000000e+00> : vector<1x14x32xf32>
    %2 = tpu.matmul %0, %1, %cst {dimension_numbers = #tpu.dot_dimension_numbers<[2], [1], [1], [2], [0, 0, 0, 1, 1, 2], [0], [0]>} : vector<1x14x14xbf16>, vector<1x14x32xbf16>, vector<1x14x32xf32> -> vector<1x14x32xf32>
    "tpu.trace_stop"() : () -> ()
    %3 = vector.shape_cast %2 : vector<1x14x32xf32> to vector<14x32xf32>
    %4 = arith.truncf %3 : vector<14x32xf32> to vector<14x32xbf16>
    %c0_5 = arith.constant 0 : index
    %c0_6 = arith.constant 0 : index
    %5 = vector.load %arg3[%c0_5, %c0_6] : memref<32x32xbf16, #tpu.memory_space<vmem>>, vector<32x32xbf16>
    %cst_7 = arith.constant dense<0.000000e+00> : vector<14x32xf32>
    %6 = tpu.matmul %4, %5, %cst_7 {dimension_numbers = #tpu.dot_dimension_numbers<[1], [0], [0], [1], [0, 0, 1, 1], [], []>} : vector<14x32xbf16>, vector<32x32xbf16>, vector<14x32xf32> -> vector<14x32xf32>
    %c0_8 = arith.constant 0 : index
    %c0_9 = arith.constant 0 : index
    %7 = vector.load %arg4[%c0_8, %c0_9] : memref<1x32xf32, #tpu.memory_space<vmem>>, vector<1x32xf32>
    %8 = vector.broadcast %7 : vector<1x32xf32> to vector<14x32xf32>
    %9 = arith.addf %6, %8 : vector<14x32xf32>
    %cst_10 = arith.constant 0.000000e+00 : f32
    %10 = vector.broadcast %cst_10 : f32 to vector<14x32xf32>
    %11 = arith.cmpf ogt, %9, %10 : vector<14x32xf32>
    %12 = math.exp %9 : vector<14x32xf32>
    %cst_11 = arith.constant 1.000000e+00 : f32
    %13 = vector.broadcast %cst_11 : f32 to vector<14x32xf32>
    %14 = arith.subf %12, %13 : vector<14x32xf32>
    %15 = arith.select %11, %9, %14 : vector<14x32xi1>, vector<14x32xf32>
    %16 = vector.shape_cast %15 : vector<14x32xf32> to vector<1x14x32xf32>
    %17 = arith.truncf %16 : vector<1x14x32xf32> to vector<1x14x32xbf16>
    %c0_12 = arith.constant 0 : index
    %c0_13 = arith.constant 0 : index
    %c0_14 = arith.constant 0 : index
    %18 = vector.load %arg7[%c0_12, %c0_13, %c0_14] : memref<1x14x32xbf16, #tpu.memory_space<vmem>>, vector<1x14x32xbf16>
    tpu.vector_store %arg7[%c0_12, %c0_13, %c0_14], %17 {strides = array<i32>} : memref<1x14x32xbf16, #tpu.memory_space<vmem>>, vector<1x14x32xbf16>,
    %c0_15 = arith.constant 0 : index
    %c0_16 = arith.constant 0 : index
    %19 = vector.load %arg5[%c0_15, %c0_16] : memref<1x32xf32, #tpu.memory_space<vmem>>, vector<1x32xf32>
    %20 = vector.shape_cast %19 : vector<1x32xf32> to vector<1x1x32xf32>
    "tpu.trace_start"() <{level = 10 : i32, message = "bmd,bnd->bmn"}> : () -> ()
    %cst_17 = arith.constant dense<0.000000e+00> : vector<1x1x14xf32>
    %21 = tpu.matmul %20, %16, %cst_17 {dimension_numbers = #tpu.dot_dimension_numbers<[2], [2], [1], [1], [0, 0, 0, 1, 1, 1], [0], [0]>} : vector<1x1x32xf32>, vector<1x14x32xf32>, vector<1x1x14xf32> -> vector<1x1x14xf32>
    "tpu.trace_stop"() : () -> ()
    %c0_18 = arith.constant 0 : index
    %c0_19 = arith.constant 0 : index
    %22 = vector.load %arg6[%c0_18, %c0_19] : memref<1x1xf32, #tpu.memory_space<vmem>>, vector<1x1xf32>
    %23 = vector.shape_cast %22 : vector<1x1xf32> to vector<1x1x1xf32>
    %24 = vector.broadcast %23 : vector<1x1x1xf32> to vector<1x1x14xf32>
    %25 = arith.addf %21, %24 : vector<1x1x14xf32>
    %cst_20 = arith.constant 0.000000e+00 : f32
    %26 = vector.broadcast %cst_20 : f32 to vector<1x1x14xf32>
    %27 = arith.subf %26, %25 : vector<1x1x14xf32>
    %28 = math.exp %27 : vector<1x1x14xf32>
    %cst_21 = arith.constant 1.000000e+00 : f32
    %29 = vector.broadcast %cst_21 : f32 to vector<1x1x14xf32>
    %30 = arith.addf %29, %28 : vector<1x1x14xf32>
    %cst_22 = arith.constant 1.000000e+00 : f32
    %31 = vector.broadcast %cst_22 : f32 to vector<1x1x14xf32>
    %32 = arith.divf %31, %30 : vector<1x1x14xf32>
    %c0_23 = arith.constant 0 : index
    %c0_24 = arith.constant 0 : index
    %c0_25 = arith.constant 0 : index
    %33 = vector.load %arg8[%c0_23, %c0_24, %c0_25] : memref<1x1x14xf32, #tpu.memory_space<vmem>>, vector<1x1x14xf32>
    tpu.vector_store %arg8[%c0_23, %c0_24, %c0_25], %32 {strides = array<i32>} : memref<1x1x14xf32, #tpu.memory_space<vmem>>, vector<1x1x14xf32>,
    return
  }
  func.func @transform_0(%arg0: i32) -> (i32, i32, i32) {
    %c0_i32 = arith.constant 0 : i32
    %c0_i32_0 = arith.constant 0 : i32
    %c0_i32_1 = arith.constant 0 : i32
    return %arg0, %c0_i32, %c0_i32_0 : i32, i32, i32
  }
  func.func @transform_1(%arg0: i32) -> (i32, i32, i32) {
    %c0_i32 = arith.constant 0 : i32
    %c0_i32_0 = arith.constant 0 : i32
    %c0_i32_1 = arith.constant 0 : i32
    return %arg0, %c0_i32, %c0_i32_0 : i32, i32, i32
  }
  func.func @transform_2(%arg0: i32) -> (i32, i32) {
    %c0_i32 = arith.constant 0 : i32
    %c0_i32_0 = arith.constant 0 : i32
    %c0_i32_1 = arith.constant 0 : i32
    return %c0_i32, %c0_i32_0 : i32, i32
  }
  func.func @transform_3(%arg0: i32) -> (i32, i32) {
    %c0_i32 = arith.constant 0 : i32
    %c0_i32_0 = arith.constant 0 : i32
    %c0_i32_1 = arith.constant 0 : i32
    return %c0_i32, %c0_i32_0 : i32, i32
  }
  func.func @transform_4(%arg0: i32) -> (i32, i32) {
    %c0_i32 = arith.constant 0 : i32
    %c0_i32_0 = arith.constant 0 : i32
    %c0_i32_1 = arith.constant 0 : i32
    return %c0_i32, %c0_i32_0 : i32, i32
  }
  func.func @transform_5(%arg0: i32) -> (i32, i32) {
    %c0_i32 = arith.constant 0 : i32
    %c0_i32_0 = arith.constant 0 : i32
    %c0_i32_1 = arith.constant 0 : i32
    return %c0_i32, %c0_i32_0 : i32, i32
  }
  func.func @transform_6(%arg0: i32) -> (i32, i32, i32) {
    %c0_i32 = arith.constant 0 : i32
    %c0_i32_0 = arith.constant 0 : i32
    %c0_i32_1 = arith.constant 0 : i32
    return %arg0, %c0_i32, %c0_i32_0 : i32, i32, i32
  }
  func.func @transform_7(%arg0: i32) -> (i32, i32, i32) {
    %c0_i32 = arith.constant 0 : i32
    %c0_i32_0 = arith.constant 0 : i32
    %c0_i32_1 = arith.constant 0 : i32
    return %arg0, %c0_i32, %c0_i32_0 : i32, i32, i32
  }
}

module attributes {stable_mosaic.version = 11 : i64} {
  func.func @_pool_adj_kernel(%arg0: i32, %arg1: memref<1x9x14xbf16, #tpu.memory_space<vmem>>, %arg2: memref<1x9x9xbf16, #tpu.memory_space<vmem>>, %arg3: memref<1x9x9xbf16, #tpu.memory_space<vmem>>) attributes {dimension_semantics = [#tpu.dimension_semantics<parallel>], iteration_bounds = array<i64: 2>, scalar_prefetch = 0 : i64, scratch_operands = 0 : i64, tpu.core_type = #tpu.core_type<tc>, window_params = [{transform_indices = @transform_0, window_bounds = array<i64: 1, 9, 14>}, {transform_indices = @transform_1, window_bounds = array<i64: 1, 9, 9>}, {transform_indices = @transform_2, window_bounds = array<i64: 1, 9, 9>}]} {
    %c0 = arith.constant 0 : index
    %c0_0 = arith.constant 0 : index
    %c0_1 = arith.constant 0 : index
    %0 = vector.load %arg1[%c0, %c0_0, %c0_1] : memref<1x9x14xbf16, #tpu.memory_space<vmem>>, vector<1x9x14xbf16>
    "tpu.trace_start"() <{level = 10 : i32, message = "bin,bjn->bij"}> : () -> ()
    %cst = arith.constant dense<0.000000e+00> : vector<1x9x9xf32>
    %1 = tpu.matmul %0, %0, %cst {dimension_numbers = #tpu.dot_dimension_numbers<[2], [2], [1], [1], [0, 0, 0, 1, 1, 1], [0], [0]>} : vector<1x9x14xbf16>, vector<1x9x14xbf16>, vector<1x9x9xf32> -> vector<1x9x9xf32>
    %cst_2 = arith.constant 0.000000e+00 : f32
    "tpu.trace_stop"() : () -> ()
    %2 = vector.broadcast %cst_2 : f32 to vector<1x9x9xf32>
    %3 = arith.cmpf one, %1, %2 : vector<1x9x9xf32>
    %4 = arith.extui %3 : vector<1x9x9xi1> to vector<1x9x9xi32>
    %5 = arith.sitofp %4 : vector<1x9x9xi32> to vector<1x9x9xf32>
    %cst_3 = arith.constant dense<0.000000e+00> : vector<1x9xf32>
    %6 = vector.multi_reduction <add>, %5, %cst_3 [1] : vector<1x9x9xf32> to vector<1x9xf32>
    %7 = vector.shape_cast %6 : vector<1x9xf32> to vector<1x1x9xf32>
    %8 = tpu.reciprocal %7 {approx = true} : vector<1x1x9xf32> -> vector<1x1x9xf32>
    %9 = vector.broadcast %8 : vector<1x1x9xf32> to vector<1x9x9xf32>
    %10 = arith.mulf %5, %9 : vector<1x9x9xf32>
    %11 = arith.truncf %10 : vector<1x9x9xf32> to vector<1x9x9xbf16>
    %c0_4 = arith.constant 0 : index
    %c0_5 = arith.constant 0 : index
    %c0_6 = arith.constant 0 : index
    %12 = vector.load %arg2[%c0_4, %c0_5, %c0_6] : memref<1x9x9xbf16, #tpu.memory_space<vmem>>, vector<1x9x9xbf16>
    tpu.vector_store %arg2[%c0_4, %c0_5, %c0_6], %11 {strides = array<i32>} : memref<1x9x9xbf16, #tpu.memory_space<vmem>>, vector<1x9x9xbf16>,
    %13 = arith.truncf %5 : vector<1x9x9xf32> to vector<1x9x9xbf16>
    %c0_7 = arith.constant 0 : index
    %c0_8 = arith.constant 0 : index
    %c0_9 = arith.constant 0 : index
    %14 = vector.load %arg3[%c0_7, %c0_8, %c0_9] : memref<1x9x9xbf16, #tpu.memory_space<vmem>>, vector<1x9x9xbf16>
    tpu.vector_store %arg3[%c0_7, %c0_8, %c0_9], %13 {strides = array<i32>} : memref<1x9x9xbf16, #tpu.memory_space<vmem>>, vector<1x9x9xbf16>,
    return
  }
  func.func @transform_0(%arg0: i32) -> (i32, i32, i32) {
    %c0_i32 = arith.constant 0 : i32
    %c0_i32_0 = arith.constant 0 : i32
    %c0_i32_1 = arith.constant 0 : i32
    return %arg0, %c0_i32, %c0_i32_0 : i32, i32, i32
  }
  func.func @transform_1(%arg0: i32) -> (i32, i32, i32) {
    %c0_i32 = arith.constant 0 : i32
    %c0_i32_0 = arith.constant 0 : i32
    %c0_i32_1 = arith.constant 0 : i32
    return %arg0, %c0_i32, %c0_i32_0 : i32, i32, i32
  }
  func.func @transform_2(%arg0: i32) -> (i32, i32, i32) {
    %c0_i32 = arith.constant 0 : i32
    %c0_i32_0 = arith.constant 0 : i32
    %c0_i32_1 = arith.constant 0 : i32
    return %arg0, %c0_i32, %c0_i32_0 : i32, i32, i32
  }
}

module attributes {stable_mosaic.version = 11 : i64} {
  func.func @_gcn_kernel(%arg0: i32, %arg1: memref<1x9x9xbf16, #tpu.memory_space<vmem>>, %arg2: memref<1x9x32xbf16, #tpu.memory_space<vmem>>, %arg3: memref<32x32xbf16, #tpu.memory_space<vmem>>, %arg4: memref<1x32xf32, #tpu.memory_space<vmem>>, %arg5: memref<1x9x32xbf16, #tpu.memory_space<vmem>>) attributes {dimension_semantics = [#tpu.dimension_semantics<parallel>], iteration_bounds = array<i64: 2>, scalar_prefetch = 0 : i64, scratch_operands = 0 : i64, tpu.core_type = #tpu.core_type<tc>, window_params = [{transform_indices = @transform_0, window_bounds = array<i64: 1, 9, 9>}, {transform_indices = @transform_1, window_bounds = array<i64: 1, 9, 32>}, {pipeline_mode = #tpu.pipeline_mode<synchronous>, transform_indices = @transform_2, window_bounds = array<i64: 32, 32>}, {pipeline_mode = #tpu.pipeline_mode<synchronous>, transform_indices = @transform_3, window_bounds = array<i64: 1, 32>}, {transform_indices = @transform_4, window_bounds = array<i64: 1, 9, 32>}]} {
    %c0 = arith.constant 0 : index
    %c0_0 = arith.constant 0 : index
    %c0_1 = arith.constant 0 : index
    %0 = vector.load %arg1[%c0, %c0_0, %c0_1] : memref<1x9x9xbf16, #tpu.memory_space<vmem>>, vector<1x9x9xbf16>
    %c0_2 = arith.constant 0 : index
    %c0_3 = arith.constant 0 : index
    %c0_4 = arith.constant 0 : index
    %1 = vector.load %arg2[%c0_2, %c0_3, %c0_4] : memref<1x9x32xbf16, #tpu.memory_space<vmem>>, vector<1x9x32xbf16>
    "tpu.trace_start"() <{level = 10 : i32, message = "bij,bjd->bid"}> : () -> ()
    %cst = arith.constant dense<0.000000e+00> : vector<1x9x32xf32>
    %2 = tpu.matmul %0, %1, %cst {dimension_numbers = #tpu.dot_dimension_numbers<[2], [1], [1], [2], [0, 0, 0, 1, 1, 2], [0], [0]>} : vector<1x9x9xbf16>, vector<1x9x32xbf16>, vector<1x9x32xf32> -> vector<1x9x32xf32>
    "tpu.trace_stop"() : () -> ()
    %3 = vector.shape_cast %2 : vector<1x9x32xf32> to vector<9x32xf32>
    %4 = arith.truncf %3 : vector<9x32xf32> to vector<9x32xbf16>
    %c0_5 = arith.constant 0 : index
    %c0_6 = arith.constant 0 : index
    %5 = vector.load %arg3[%c0_5, %c0_6] : memref<32x32xbf16, #tpu.memory_space<vmem>>, vector<32x32xbf16>
    %cst_7 = arith.constant dense<0.000000e+00> : vector<9x32xf32>
    %6 = tpu.matmul %4, %5, %cst_7 {dimension_numbers = #tpu.dot_dimension_numbers<[1], [0], [0], [1], [0, 0, 1, 1], [], []>} : vector<9x32xbf16>, vector<32x32xbf16>, vector<9x32xf32> -> vector<9x32xf32>
    %c0_8 = arith.constant 0 : index
    %c0_9 = arith.constant 0 : index
    %7 = vector.load %arg4[%c0_8, %c0_9] : memref<1x32xf32, #tpu.memory_space<vmem>>, vector<1x32xf32>
    %8 = vector.broadcast %7 : vector<1x32xf32> to vector<9x32xf32>
    %9 = arith.addf %6, %8 : vector<9x32xf32>
    %cst_10 = arith.constant 0.000000e+00 : f32
    %10 = vector.broadcast %cst_10 : f32 to vector<9x32xf32>
    %11 = arith.cmpf ogt, %9, %10 : vector<9x32xf32>
    %12 = math.exp %9 : vector<9x32xf32>
    %cst_11 = arith.constant 1.000000e+00 : f32
    %13 = vector.broadcast %cst_11 : f32 to vector<9x32xf32>
    %14 = arith.subf %12, %13 : vector<9x32xf32>
    %15 = arith.select %11, %9, %14 : vector<9x32xi1>, vector<9x32xf32>
    %16 = vector.shape_cast %15 : vector<9x32xf32> to vector<1x9x32xf32>
    %17 = arith.truncf %16 : vector<1x9x32xf32> to vector<1x9x32xbf16>
    %c0_12 = arith.constant 0 : index
    %c0_13 = arith.constant 0 : index
    %c0_14 = arith.constant 0 : index
    %18 = vector.load %arg5[%c0_12, %c0_13, %c0_14] : memref<1x9x32xbf16, #tpu.memory_space<vmem>>, vector<1x9x32xbf16>
    tpu.vector_store %arg5[%c0_12, %c0_13, %c0_14], %17 {strides = array<i32>} : memref<1x9x32xbf16, #tpu.memory_space<vmem>>, vector<1x9x32xbf16>,
    return
  }
  func.func @transform_0(%arg0: i32) -> (i32, i32, i32) {
    %c0_i32 = arith.constant 0 : i32
    %c0_i32_0 = arith.constant 0 : i32
    %c0_i32_1 = arith.constant 0 : i32
    return %arg0, %c0_i32, %c0_i32_0 : i32, i32, i32
  }
  func.func @transform_1(%arg0: i32) -> (i32, i32, i32) {
    %c0_i32 = arith.constant 0 : i32
    %c0_i32_0 = arith.constant 0 : i32
    %c0_i32_1 = arith.constant 0 : i32
    return %arg0, %c0_i32, %c0_i32_0 : i32, i32, i32
  }
  func.func @transform_2(%arg0: i32) -> (i32, i32) {
    %c0_i32 = arith.constant 0 : i32
    %c0_i32_0 = arith.constant 0 : i32
    %c0_i32_1 = arith.constant 0 : i32
    return %c0_i32, %c0_i32_0 : i32, i32
  }
  func.func @transform_3(%arg0: i32) -> (i32, i32) {
    %c0_i32 = arith.constant 0 : i32
    %c0_i32_0 = arith.constant 0 : i32
    %c0_i32_1 = arith.constant 0 : i32
    return %c0_i32, %c0_i32_0 : i32, i32
  }
  func.func @transform_4(%arg0: i32) -> (i32, i32, i32) {
    %c0_i32 = arith.constant 0 : i32
    %c0_i32_0 = arith.constant 0 : i32
    %c0_i32_1 = arith.constant 0 : i32
    return %arg0, %c0_i32, %c0_i32_0 : i32, i32, i32
  }
}

module attributes {stable_mosaic.version = 11 : i64} {
  func.func @_gcn_res_kernel(%arg0: i32, %arg1: memref<1x14x14xbf16, #tpu.memory_space<vmem>>, %arg2: memref<1x14x32xbf16, #tpu.memory_space<vmem>>, %arg3: memref<32x32xbf16, #tpu.memory_space<vmem>>, %arg4: memref<1x32xf32, #tpu.memory_space<vmem>>, %arg5: memref<1x14x32xbf16, #tpu.memory_space<vmem>>, %arg6: memref<1x14x32xbf16, #tpu.memory_space<vmem>>) attributes {dimension_semantics = [#tpu.dimension_semantics<parallel>], iteration_bounds = array<i64: 2>, scalar_prefetch = 0 : i64, scratch_operands = 0 : i64, tpu.core_type = #tpu.core_type<tc>, window_params = [{transform_indices = @transform_0, window_bounds = array<i64: 1, 14, 14>}, {transform_indices = @transform_1, window_bounds = array<i64: 1, 14, 32>}, {pipeline_mode = #tpu.pipeline_mode<synchronous>, transform_indices = @transform_2, window_bounds = array<i64: 32, 32>}, {pipeline_mode = #tpu.pipeline_mode<synchronous>, transform_indices = @transform_3, window_bounds = array<i64: 1, 32>}, {transform_indices = @transform_4, window_bounds = array<i64: 1, 14, 32>}, {transform_indices = @transform_5, window_bounds = array<i64: 1, 14, 32>}]} {
    %c0 = arith.constant 0 : index
    %c0_0 = arith.constant 0 : index
    %c0_1 = arith.constant 0 : index
    %0 = vector.load %arg1[%c0, %c0_0, %c0_1] : memref<1x14x14xbf16, #tpu.memory_space<vmem>>, vector<1x14x14xbf16>
    %c0_2 = arith.constant 0 : index
    %c0_3 = arith.constant 0 : index
    %c0_4 = arith.constant 0 : index
    %1 = vector.load %arg2[%c0_2, %c0_3, %c0_4] : memref<1x14x32xbf16, #tpu.memory_space<vmem>>, vector<1x14x32xbf16>
    "tpu.trace_start"() <{level = 10 : i32, message = "bij,bjd->bid"}> : () -> ()
    %cst = arith.constant dense<0.000000e+00> : vector<1x14x32xf32>
    %2 = tpu.matmul %0, %1, %cst {dimension_numbers = #tpu.dot_dimension_numbers<[2], [1], [1], [2], [0, 0, 0, 1, 1, 2], [0], [0]>} : vector<1x14x14xbf16>, vector<1x14x32xbf16>, vector<1x14x32xf32> -> vector<1x14x32xf32>
    "tpu.trace_stop"() : () -> ()
    %3 = vector.shape_cast %2 : vector<1x14x32xf32> to vector<14x32xf32>
    %4 = arith.truncf %3 : vector<14x32xf32> to vector<14x32xbf16>
    %c0_5 = arith.constant 0 : index
    %c0_6 = arith.constant 0 : index
    %5 = vector.load %arg3[%c0_5, %c0_6] : memref<32x32xbf16, #tpu.memory_space<vmem>>, vector<32x32xbf16>
    %cst_7 = arith.constant dense<0.000000e+00> : vector<14x32xf32>
    %6 = tpu.matmul %4, %5, %cst_7 {dimension_numbers = #tpu.dot_dimension_numbers<[1], [0], [0], [1], [0, 0, 1, 1], [], []>} : vector<14x32xbf16>, vector<32x32xbf16>, vector<14x32xf32> -> vector<14x32xf32>
    %c0_8 = arith.constant 0 : index
    %c0_9 = arith.constant 0 : index
    %7 = vector.load %arg4[%c0_8, %c0_9] : memref<1x32xf32, #tpu.memory_space<vmem>>, vector<1x32xf32>
    %8 = vector.broadcast %7 : vector<1x32xf32> to vector<14x32xf32>
    %9 = arith.addf %6, %8 : vector<14x32xf32>
    %cst_10 = arith.constant 0.000000e+00 : f32
    %10 = vector.broadcast %cst_10 : f32 to vector<14x32xf32>
    %11 = arith.cmpf ogt, %9, %10 : vector<14x32xf32>
    %12 = math.exp %9 : vector<14x32xf32>
    %cst_11 = arith.constant 1.000000e+00 : f32
    %13 = vector.broadcast %cst_11 : f32 to vector<14x32xf32>
    %14 = arith.subf %12, %13 : vector<14x32xf32>
    %15 = arith.select %11, %9, %14 : vector<14x32xi1>, vector<14x32xf32>
    %16 = vector.shape_cast %15 : vector<14x32xf32> to vector<1x14x32xf32>
    %c0_12 = arith.constant 0 : index
    %c0_13 = arith.constant 0 : index
    %c0_14 = arith.constant 0 : index
    %17 = vector.load %arg5[%c0_12, %c0_13, %c0_14] : memref<1x14x32xbf16, #tpu.memory_space<vmem>>, vector<1x14x32xbf16>
    %18 = arith.extf %17 : vector<1x14x32xbf16> to vector<1x14x32xf32>
    %19 = arith.addf %16, %18 : vector<1x14x32xf32>
    %20 = arith.truncf %19 : vector<1x14x32xf32> to vector<1x14x32xbf16>
    %c0_15 = arith.constant 0 : index
    %c0_16 = arith.constant 0 : index
    %c0_17 = arith.constant 0 : index
    %21 = vector.load %arg6[%c0_15, %c0_16, %c0_17] : memref<1x14x32xbf16, #tpu.memory_space<vmem>>, vector<1x14x32xbf16>
    tpu.vector_store %arg6[%c0_15, %c0_16, %c0_17], %20 {strides = array<i32>} : memref<1x14x32xbf16, #tpu.memory_space<vmem>>, vector<1x14x32xbf16>,
    return
  }
  func.func @transform_0(%arg0: i32) -> (i32, i32, i32) {
    %c0_i32 = arith.constant 0 : i32
    %c0_i32_0 = arith.constant 0 : i32
    %c0_i32_1 = arith.constant 0 : i32
    return %arg0, %c0_i32, %c0_i32_0 : i32, i32, i32
  }
  func.func @transform_1(%arg0: i32) -> (i32, i32, i32) {
    %c0_i32 = arith.constant 0 : i32
    %c0_i32_0 = arith.constant 0 : i32
    %c0_i32_1 = arith.constant 0 : i32
    return %arg0, %c0_i32, %c0_i32_0 : i32, i32, i32
  }
  func.func @transform_2(%arg0: i32) -> (i32, i32) {
    %c0_i32 = arith.constant 0 : i32
    %c0_i32_0 = arith.constant 0 : i32
    %c0_i32_1 = arith.constant 0 : i32
    return %c0_i32, %c0_i32_0 : i32, i32
  }
  func.func @transform_3(%arg0: i32) -> (i32, i32) {
    %c0_i32 = arith.constant 0 : i32
    %c0_i32_0 = arith.constant 0 : i32
    %c0_i32_1 = arith.constant 0 : i32
    return %c0_i32, %c0_i32_0 : i32, i32
  }
  func.func @transform_4(%arg0: i32) -> (i32, i32, i32) {
    %c0_i32 = arith.constant 0 : i32
    %c0_i32_0 = arith.constant 0 : i32
    %c0_i32_1 = arith.constant 0 : i32
    return %arg0, %c0_i32, %c0_i32_0 : i32, i32, i32
  }
  func.func @transform_5(%arg0: i32) -> (i32, i32, i32) {
    %c0_i32 = arith.constant 0 : i32
    %c0_i32_0 = arith.constant 0 : i32
    %c0_i32_1 = arith.constant 0 : i32
    return %arg0, %c0_i32, %c0_i32_0 : i32, i32, i32
  }
}

module attributes {stable_mosaic.version = 11 : i64} {
  func.func @_gcn_res_final_kernel(%arg0: i32, %arg1: memref<1x16x16xbf16, #tpu.memory_space<vmem>>, %arg2: memref<1x16x32xbf16, #tpu.memory_space<vmem>>, %arg3: memref<32x32xbf16, #tpu.memory_space<vmem>>, %arg4: memref<1x32xf32, #tpu.memory_space<vmem>>, %arg5: memref<1x16x32xbf16, #tpu.memory_space<vmem>>, %arg6: memref<1x16x32xbf16, #tpu.memory_space<vmem>>, %arg7: memref<1x16x32xbf16, #tpu.memory_space<vmem>>, %arg8: memref<1x16x32xbf16, #tpu.memory_space<vmem>>) attributes {dimension_semantics = [#tpu.dimension_semantics<parallel>], iteration_bounds = array<i64: 2>, scalar_prefetch = 0 : i64, scratch_operands = 0 : i64, tpu.core_type = #tpu.core_type<tc>, window_params = [{transform_indices = @transform_0, window_bounds = array<i64: 1, 16, 16>}, {transform_indices = @transform_1, window_bounds = array<i64: 1, 16, 32>}, {pipeline_mode = #tpu.pipeline_mode<synchronous>, transform_indices = @transform_2, window_bounds = array<i64: 32, 32>}, {pipeline_mode = #tpu.pipeline_mode<synchronous>, transform_indices = @transform_3, window_bounds = array<i64: 1, 32>}, {transform_indices = @transform_4, window_bounds = array<i64: 1, 16, 32>}, {transform_indices = @transform_5, window_bounds = array<i64: 1, 16, 32>}, {transform_indices = @transform_6, window_bounds = array<i64: 1, 16, 32>}, {transform_indices = @transform_7, window_bounds = array<i64: 1, 16, 32>}]} {
    %c0 = arith.constant 0 : index
    %c0_0 = arith.constant 0 : index
    %c0_1 = arith.constant 0 : index
    %0 = vector.load %arg1[%c0, %c0_0, %c0_1] : memref<1x16x16xbf16, #tpu.memory_space<vmem>>, vector<1x16x16xbf16>
    %c0_2 = arith.constant 0 : index
    %c0_3 = arith.constant 0 : index
    %c0_4 = arith.constant 0 : index
    %1 = vector.load %arg2[%c0_2, %c0_3, %c0_4] : memref<1x16x32xbf16, #tpu.memory_space<vmem>>, vector<1x16x32xbf16>
    "tpu.trace_start"() <{level = 10 : i32, message = "bij,bjd->bid"}> : () -> ()
    %cst = arith.constant dense<0.000000e+00> : vector<1x16x32xf32>
    %2 = tpu.matmul %0, %1, %cst {dimension_numbers = #tpu.dot_dimension_numbers<[2], [1], [1], [2], [0, 0, 0, 1, 1, 2], [0], [0]>} : vector<1x16x16xbf16>, vector<1x16x32xbf16>, vector<1x16x32xf32> -> vector<1x16x32xf32>
    "tpu.trace_stop"() : () -> ()
    %3 = vector.shape_cast %2 : vector<1x16x32xf32> to vector<16x32xf32>
    %4 = arith.truncf %3 : vector<16x32xf32> to vector<16x32xbf16>
    %c0_5 = arith.constant 0 : index
    %c0_6 = arith.constant 0 : index
    %5 = vector.load %arg3[%c0_5, %c0_6] : memref<32x32xbf16, #tpu.memory_space<vmem>>, vector<32x32xbf16>
    %cst_7 = arith.constant dense<0.000000e+00> : vector<16x32xf32>
    %6 = tpu.matmul %4, %5, %cst_7 {dimension_numbers = #tpu.dot_dimension_numbers<[1], [0], [0], [1], [0, 0, 1, 1], [], []>} : vector<16x32xbf16>, vector<32x32xbf16>, vector<16x32xf32> -> vector<16x32xf32>
    %c0_8 = arith.constant 0 : index
    %c0_9 = arith.constant 0 : index
    %7 = vector.load %arg4[%c0_8, %c0_9] : memref<1x32xf32, #tpu.memory_space<vmem>>, vector<1x32xf32>
    %8 = vector.broadcast %7 : vector<1x32xf32> to vector<16x32xf32>
    %9 = arith.addf %6, %8 : vector<16x32xf32>
    %cst_10 = arith.constant 0.000000e+00 : f32
    %10 = vector.broadcast %cst_10 : f32 to vector<16x32xf32>
    %11 = arith.cmpf ogt, %9, %10 : vector<16x32xf32>
    %12 = math.exp %9 : vector<16x32xf32>
    %cst_11 = arith.constant 1.000000e+00 : f32
    %13 = vector.broadcast %cst_11 : f32 to vector<16x32xf32>
    %14 = arith.subf %12, %13 : vector<16x32xf32>
    %15 = arith.select %11, %9, %14 : vector<16x32xi1>, vector<16x32xf32>
    %16 = vector.shape_cast %15 : vector<16x32xf32> to vector<1x16x32xf32>
    %c0_12 = arith.constant 0 : index
    %c0_13 = arith.constant 0 : index
    %c0_14 = arith.constant 0 : index
    %17 = vector.load %arg5[%c0_12, %c0_13, %c0_14] : memref<1x16x32xbf16, #tpu.memory_space<vmem>>, vector<1x16x32xbf16>
    %18 = arith.extf %17 : vector<1x16x32xbf16> to vector<1x16x32xf32>
    %19 = arith.addf %16, %18 : vector<1x16x32xf32>
    %20 = arith.truncf %19 : vector<1x16x32xf32> to vector<1x16x32xbf16>
    %c0_15 = arith.constant 0 : index
    %c0_16 = arith.constant 0 : index
    %c0_17 = arith.constant 0 : index
    %21 = vector.load %arg7[%c0_15, %c0_16, %c0_17] : memref<1x16x32xbf16, #tpu.memory_space<vmem>>, vector<1x16x32xbf16>
    tpu.vector_store %arg7[%c0_15, %c0_16, %c0_17], %20 {strides = array<i32>} : memref<1x16x32xbf16, #tpu.memory_space<vmem>>, vector<1x16x32xbf16>,
    %c0_18 = arith.constant 0 : index
    %c0_19 = arith.constant 0 : index
    %c0_20 = arith.constant 0 : index
    %22 = vector.load %arg6[%c0_18, %c0_19, %c0_20] : memref<1x16x32xbf16, #tpu.memory_space<vmem>>, vector<1x16x32xbf16>
    %23 = arith.extf %22 : vector<1x16x32xbf16> to vector<1x16x32xf32>
    %24 = arith.addf %19, %23 : vector<1x16x32xf32>
    %25 = arith.truncf %24 : vector<1x16x32xf32> to vector<1x16x32xbf16>
    %c0_21 = arith.constant 0 : index
    %c0_22 = arith.constant 0 : index
    %c0_23 = arith.constant 0 : index
    %26 = vector.load %arg8[%c0_21, %c0_22, %c0_23] : memref<1x16x32xbf16, #tpu.memory_space<vmem>>, vector<1x16x32xbf16>
    tpu.vector_store %arg8[%c0_21, %c0_22, %c0_23], %25 {strides = array<i32>} : memref<1x16x32xbf16, #tpu.memory_space<vmem>>, vector<1x16x32xbf16>,
    return
  }
  func.func @transform_0(%arg0: i32) -> (i32, i32, i32) {
    %c0_i32 = arith.constant 0 : i32
    %c0_i32_0 = arith.constant 0 : i32
    %c0_i32_1 = arith.constant 0 : i32
    return %arg0, %c0_i32, %c0_i32_0 : i32, i32, i32
  }
  func.func @transform_1(%arg0: i32) -> (i32, i32, i32) {
    %c0_i32 = arith.constant 0 : i32
    %c0_i32_0 = arith.constant 0 : i32
    %c0_i32_1 = arith.constant 0 : i32
    return %arg0, %c0_i32, %c0_i32_0 : i32, i32, i32
  }
  func.func @transform_2(%arg0: i32) -> (i32, i32) {
    %c0_i32 = arith.constant 0 : i32
    %c0_i32_0 = arith.constant 0 : i32
    %c0_i32_1 = arith.constant 0 : i32
    return %c0_i32, %c0_i32_0 : i32, i32
  }
  func.func @transform_3(%arg0: i32) -> (i32, i32) {
    %c0_i32 = arith.constant 0 : i32
    %c0_i32_0 = arith.constant 0 : i32
    %c0_i32_1 = arith.constant 0 : i32
    return %c0_i32, %c0_i32_0 : i32, i32
  }
  func.func @transform_4(%arg0: i32) -> (i32, i32, i32) {
    %c0_i32 = arith.constant 0 : i32
    %c0_i32_0 = arith.constant 0 : i32
    %c0_i32_1 = arith.constant 0 : i32
    return %arg0, %c0_i32, %c0_i32_0 : i32, i32, i32
  }
  func.func @transform_5(%arg0: i32) -> (i32, i32, i32) {
    %c0_i32 = arith.constant 0 : i32
    %c0_i32_0 = arith.constant 0 : i32
    %c0_i32_1 = arith.constant 0 : i32
    return %arg0, %c0_i32, %c0_i32_0 : i32, i32, i32
  }
  func.func @transform_6(%arg0: i32) -> (i32, i32, i32) {
    %c0_i32 = arith.constant 0 : i32
    %c0_i32_0 = arith.constant 0 : i32
    %c0_i32_1 = arith.constant 0 : i32
    return %arg0, %c0_i32, %c0_i32_0 : i32, i32, i32
  }
  func.func @transform_7(%arg0: i32) -> (i32, i32, i32) {
    %c0_i32 = arith.constant 0 : i32
    %c0_i32_0 = arith.constant 0 : i32
    %c0_i32_1 = arith.constant 0 : i32
    return %arg0, %c0_i32, %c0_i32_0 : i32, i32, i32
  }
}

module attributes {stable_mosaic.version = 11 : i64} {
  func.func @_readout_kernel(%arg0: i32, %arg1: memref<1x14x32xbf16, #tpu.memory_space<vmem>>, %arg2: memref<1x16x32xbf16, #tpu.memory_space<vmem>>, %arg3: memref<1x16x32xbf16, #tpu.memory_space<vmem>>, %arg4: memref<1x1x288xf32, #tpu.memory_space<vmem>>) attributes {dimension_semantics = [#tpu.dimension_semantics<parallel>], iteration_bounds = array<i64: 2>, scalar_prefetch = 0 : i64, scratch_operands = 0 : i64, tpu.core_type = #tpu.core_type<tc>, window_params = [{transform_indices = @transform_0, window_bounds = array<i64: 1, 14, 32>}, {transform_indices = @transform_1, window_bounds = array<i64: 1, 16, 32>}, {transform_indices = @transform_2, window_bounds = array<i64: 1, 16, 32>}, {transform_indices = @transform_3, window_bounds = array<i64: 1, 1, 288>}]} {
    %c0 = arith.constant 0 : index
    %c0_0 = arith.constant 0 : index
    %c0_1 = arith.constant 0 : index
    %0 = vector.load %arg1[%c0, %c0_0, %c0_1] : memref<1x14x32xbf16, #tpu.memory_space<vmem>>, vector<1x14x32xbf16>
    %1 = arith.extf %0 : vector<1x14x32xbf16> to vector<1x14x32xf32>
    %cst = arith.constant dense<0xFF800000> : vector<1x32xf32>
    %2 = vector.multi_reduction <maximumf>, %1, %cst [1] : vector<1x14x32xf32> to vector<1x32xf32>
    %3 = vector.shape_cast %2 : vector<1x32xf32> to vector<1x1x32xf32>
    %cst_2 = arith.constant dense<0.000000e+00> : vector<1x32xf32>
    %4 = vector.multi_reduction <add>, %1, %cst_2 [1] : vector<1x14x32xf32> to vector<1x32xf32>
    %5 = vector.shape_cast %4 : vector<1x32xf32> to vector<1x1x32xf32>
    %cst_3 = arith.constant 0.0714285746 : f32
    %6 = vector.broadcast %cst_3 : f32 to vector<1x1x32xf32>
    %7 = arith.mulf %5, %6 : vector<1x1x32xf32>
    %c0_4 = arith.constant 0 : index
    %c0_5 = arith.constant 0 : index
    %c0_6 = arith.constant 0 : index
    %8 = vector.load %arg2[%c0_4, %c0_5, %c0_6] : memref<1x16x32xbf16, #tpu.memory_space<vmem>>, vector<1x16x32xbf16>
    %9 = arith.extf %8 : vector<1x16x32xbf16> to vector<1x16x32xf32>
    %cst_7 = arith.constant dense<0xFF800000> : vector<1x32xf32>
    %10 = vector.multi_reduction <maximumf>, %9, %cst_7 [1] : vector<1x16x32xf32> to vector<1x32xf32>
    %11 = vector.shape_cast %10 : vector<1x32xf32> to vector<1x1x32xf32>
    %cst_8 = arith.constant dense<0.000000e+00> : vector<1x32xf32>
    %12 = vector.multi_reduction <add>, %9, %cst_8 [1] : vector<1x16x32xf32> to vector<1x32xf32>
    %13 = vector.shape_cast %12 : vector<1x32xf32> to vector<1x1x32xf32>
    %cst_9 = arith.constant 6.250000e-02 : f32
    %14 = vector.broadcast %cst_9 : f32 to vector<1x1x32xf32>
    %15 = arith.mulf %13, %14 : vector<1x1x32xf32>
    %c0_10 = arith.constant 0 : index
    %c0_11 = arith.constant 0 : index
    %c0_12 = arith.constant 0 : index
    %16 = vector.load %arg3[%c0_10, %c0_11, %c0_12] : memref<1x16x32xbf16, #tpu.memory_space<vmem>>, vector<1x16x32xbf16>
    %17 = arith.extf %16 : vector<1x16x32xbf16> to vector<1x16x32xf32>
    %cst_13 = arith.constant dense<0xFF800000> : vector<1x32xf32>
    %18 = vector.multi_reduction <maximumf>, %17, %cst_13 [1] : vector<1x16x32xf32> to vector<1x32xf32>
    %19 = vector.shape_cast %18 : vector<1x32xf32> to vector<1x1x32xf32>
    %cst_14 = arith.constant dense<0.000000e+00> : vector<1x32xf32>
    %20 = vector.multi_reduction <add>, %17, %cst_14 [1] : vector<1x16x32xf32> to vector<1x32xf32>
    %21 = vector.shape_cast %20 : vector<1x32xf32> to vector<1x1x32xf32>
    %cst_15 = arith.constant 6.250000e-02 : f32
    %22 = vector.broadcast %cst_15 : f32 to vector<1x1x32xf32>
    %23 = arith.mulf %21, %22 : vector<1x1x32xf32>
    %24 = tpu.concatenate %3, %11, %19, %5, %13, %21, %7, %15, %23 in 2 : vector<1x1x32xf32>, vector<1x1x32xf32>, vector<1x1x32xf32>, vector<1x1x32xf32>, vector<1x1x32xf32>, vector<1x1x32xf32>, vector<1x1x32xf32>, vector<1x1x32xf32>, vector<1x1x32xf32> -> vector<1x1x288xf32>
    %c0_16 = arith.constant 0 : index
    %c0_17 = arith.constant 0 : index
    %c0_18 = arith.constant 0 : index
    %25 = vector.load %arg4[%c0_16, %c0_17, %c0_18] : memref<1x1x288xf32, #tpu.memory_space<vmem>>, vector<1x1x288xf32>
    tpu.vector_store %arg4[%c0_16, %c0_17, %c0_18], %24 {strides = array<i32>} : memref<1x1x288xf32, #tpu.memory_space<vmem>>, vector<1x1x288xf32>,
    return
  }
  func.func @transform_0(%arg0: i32) -> (i32, i32, i32) {
    %c0_i32 = arith.constant 0 : i32
    %c0_i32_0 = arith.constant 0 : i32
    %c0_i32_1 = arith.constant 0 : i32
    return %arg0, %c0_i32, %c0_i32_0 : i32, i32, i32
  }
  func.func @transform_1(%arg0: i32) -> (i32, i32, i32) {
    %c0_i32 = arith.constant 0 : i32
    %c0_i32_0 = arith.constant 0 : i32
    %c0_i32_1 = arith.constant 0 : i32
    return %arg0, %c0_i32, %c0_i32_0 : i32, i32, i32
  }
  func.func @transform_2(%arg0: i32) -> (i32, i32, i32) {
    %c0_i32 = arith.constant 0 : i32
    %c0_i32_0 = arith.constant 0 : i32
    %c0_i32_1 = arith.constant 0 : i32
    return %arg0, %c0_i32, %c0_i32_0 : i32, i32, i32
  }
  func.func @transform_3(%arg0: i32) -> (i32, i32, i32) {
    %c0_i32 = arith.constant 0 : i32
    %c0_i32_0 = arith.constant 0 : i32
    %c0_i32_1 = arith.constant 0 : i32
    return %arg0, %c0_i32, %c0_i32_0 : i32, i32, i32
  }
}

module attributes {stable_mosaic.version = 11 : i64} {
  func.func @_classify_kernel(%arg0: memref<2x288xf32, #tpu.memory_space<vmem>>, %arg1: memref<288x32xbf16, #tpu.memory_space<vmem>>, %arg2: memref<1x32xf32, #tpu.memory_space<vmem>>, %arg3: memref<32x3xbf16, #tpu.memory_space<vmem>>, %arg4: memref<1x3xf32, #tpu.memory_space<vmem>>, %arg5: memref<2x3xf32, #tpu.memory_space<vmem>>) attributes {dimension_semantics = [], scalar_prefetch = 0 : i64, scratch_operands = 0 : i64, tpu.core_type = #tpu.core_type<tc>} {
    %c0 = arith.constant 0 : index
    %c0_0 = arith.constant 0 : index
    %0 = vector.load %arg0[%c0, %c0_0] : memref<2x288xf32, #tpu.memory_space<vmem>>, vector<2x288xf32>
    %1 = arith.truncf %0 : vector<2x288xf32> to vector<2x288xbf16>
    %c0_1 = arith.constant 0 : index
    %c0_2 = arith.constant 0 : index
    %2 = vector.load %arg1[%c0_1, %c0_2] : memref<288x32xbf16, #tpu.memory_space<vmem>>, vector<288x32xbf16>
    %cst = arith.constant dense<0.000000e+00> : vector<2x32xf32>
    %3 = tpu.matmul %1, %2, %cst {dimension_numbers = #tpu.dot_dimension_numbers<[1], [0], [0], [1], [0, 0, 1, 1], [], []>} : vector<2x288xbf16>, vector<288x32xbf16>, vector<2x32xf32> -> vector<2x32xf32>
    %c0_3 = arith.constant 0 : index
    %c0_4 = arith.constant 0 : index
    %4 = vector.load %arg2[%c0_3, %c0_4] : memref<1x32xf32, #tpu.memory_space<vmem>>, vector<1x32xf32>
    %5 = vector.broadcast %4 : vector<1x32xf32> to vector<2x32xf32>
    %6 = arith.addf %3, %5 : vector<2x32xf32>
    %cst_5 = arith.constant 0.000000e+00 : f32
    %7 = vector.broadcast %cst_5 : f32 to vector<2x32xf32>
    %8 = arith.cmpf ogt, %6, %7 : vector<2x32xf32>
    %9 = math.exp %6 : vector<2x32xf32>
    %cst_6 = arith.constant 1.000000e+00 : f32
    %10 = vector.broadcast %cst_6 : f32 to vector<2x32xf32>
    %11 = arith.subf %9, %10 : vector<2x32xf32>
    %12 = arith.select %8, %6, %11 : vector<2x32xi1>, vector<2x32xf32>
    %13 = arith.truncf %12 : vector<2x32xf32> to vector<2x32xbf16>
    %c0_7 = arith.constant 0 : index
    %c0_8 = arith.constant 0 : index
    %14 = vector.load %arg3[%c0_7, %c0_8] : memref<32x3xbf16, #tpu.memory_space<vmem>>, vector<32x3xbf16>
    %cst_9 = arith.constant dense<0.000000e+00> : vector<2x3xf32>
    %15 = tpu.matmul %13, %14, %cst_9 {dimension_numbers = #tpu.dot_dimension_numbers<[1], [0], [0], [1], [0, 0, 1, 1], [], []>} : vector<2x32xbf16>, vector<32x3xbf16>, vector<2x3xf32> -> vector<2x3xf32>
    %c0_10 = arith.constant 0 : index
    %c0_11 = arith.constant 0 : index
    %16 = vector.load %arg4[%c0_10, %c0_11] : memref<1x3xf32, #tpu.memory_space<vmem>>, vector<1x3xf32>
    %17 = vector.broadcast %16 : vector<1x3xf32> to vector<2x3xf32>
    %18 = arith.addf %15, %17 : vector<2x3xf32>
    %cst_12 = arith.constant dense<0xFF800000> : vector<2xf32>
    %19 = vector.multi_reduction <maximumf>, %18, %cst_12 [1] : vector<2x3xf32> to vector<2xf32>
    %20 = vector.shape_cast %19 : vector<2xf32> to vector<2x1xf32>
    %21 = vector.broadcast %20 : vector<2x1xf32> to vector<2x3xf32>
    %22 = arith.subf %18, %21 : vector<2x3xf32>
    %23 = math.exp %22 : vector<2x3xf32>
    %cst_13 = arith.constant dense<0.000000e+00> : vector<2xf32>
    %24 = vector.multi_reduction <add>, %23, %cst_13 [1] : vector<2x3xf32> to vector<2xf32>
    %25 = vector.shape_cast %24 : vector<2xf32> to vector<2x1xf32>
    %26 = math.log %25 : vector<2x1xf32>
    %27 = vector.broadcast %26 : vector<2x1xf32> to vector<2x3xf32>
    %28 = arith.subf %22, %27 : vector<2x3xf32>
    %c0_14 = arith.constant 0 : index
    %c0_15 = arith.constant 0 : index
    %29 = vector.load %arg5[%c0_14, %c0_15] : memref<2x3xf32, #tpu.memory_space<vmem>>, vector<2x3xf32>
    tpu.vector_store %arg5[%c0_14, %c0_15], %28 {strides = array<i32>} : memref<2x3xf32, #tpu.memory_space<vmem>>, vector<2x3xf32>,
    return
  }
}

</mosaic_0001>

<llo_original>
// kernel: gnet_forward.11
$region0: #{gnet_forward.11}
  #allocation0 [shape = 'u32[]', space=smem, size = 0x4, offset = 0x4, fixed_abs, tag = 'smem constant byte address 0x4 - core index']
  #allocation1 [shape = 'u32[72,128]{1,0:T(1,128)}', space=vmem, size = 0x9000, scoped, tag = 'internal scratch']
  #allocation2 [shape = 'f32[1,1]{1,0:T(1,128)S(1)}', space=vmem, size = 0x200, scoped, tag = 'scoped memory for gnet_forward.11']
  %s0 = inlined_call_operand.vmem [shape: bf16[2,16,16], index: 0, kind: input, shape index: {}]
  %s1 = inlined_call_operand.vmem [shape: bf16[2,16,32], index: 1, kind: input, shape index: {}]
  %s2 = inlined_call_operand.vmem [shape: bf16[32,32], index: 2, kind: input, shape index: {}]
  %s3 = inlined_call_operand.vmem [shape: f32[1,32], index: 3, kind: input, shape index: {}]
  %s4 = inlined_call_operand.vmem [shape: f32[1,32], index: 4, kind: input, shape index: {}]
  %s5 = inlined_call_operand.<no memory space> [shape: f32[1,1], index: 5, kind: input, shape index: {}]
  %s6 = inlined_call_operand.vmem [shape: bf16[2,16,32], index: 6, kind: output, shape index: {0}]
  %s7 = inlined_call_operand.vmem [shape: f32[2,1,16], index: 7, kind: output, shape index: {1}]
  %8 = xla_tuple %s6, %s7
  %s9 = sld [smem:[#allocation0]]
  $region65: #{gnet_forward.11} parent=0
    _
  %s11 = ssub.s32 1, %s9
  %s12 = scalar_select 0, %s11, %s9
  %v13 = vstv %s5
  %14 = vst [vmem:[#allocation2] sm:$0x1] %v13
  loop: start=0, step=1, limit=4
  $region2: #{gnet_forward.11} parent=0 // loop_pre_header
    _
  $region3: #{gnet_forward.11} parent=0 // loop_header
    %s16 = sphi 0, %s20
    %p17 = scmp.ge.s32.totalorder %s16, 4
    %s26 = sphi 0, %s28
    %s29 = sphi 0, %s26
    %s30 = sphi 0, %s29
    %s46 = sphi 0, %s30
    %s52 = sphi 0, %s54
    %s55 = sphi 0, %s52
    %s56 = sphi 0, %s55
    %s72 = sphi 0, %s56
    %s76 = sphi 0, %s76
    %s78 = sphi 0, %s76
    %s79 = sphi 0, %s78
    %s93 = sphi 0, %s79
    %s97 = sphi 0, %s97
    %s99 = sphi 0, %s97
    %s100 = sphi 0, %s99
    %s114 = sphi 0, %s100
    %s118 = sphi 0, %s118
    %s120 = sphi 0, %s118
    %s121 = sphi 0, %s120
    %s135 = sphi 0, %s121
    %s139 = sphi 0, %s139
    %s141 = sphi 0, %s139
    %s142 = sphi 0, %s141
    %s156 = sphi 0, %s142
    %s162 = sphi 0, %s164
    %s165 = sphi 0, %s162
    %s166 = sphi 0, %s165
    %s182 = sphi 0, %s166
    %s188 = sphi 0, %s190
    %s191 = sphi 0, %s188
    %s192 = sphi 0, %s191
    %s208 = sphi 0, %s192
  $region4: #{gnet_forward.11} parent=0 // loop_header_branch
    %19 = sbr.rel (%p17) target = $region8
  $region5: #{gnet_forward.11} parent=0 // loop_body
    %s21 = ssub.s32 %s16, 1
    %s22 = ssub.s32 %s16, 2
    %s23 = sadd.s32 %s16, 1
    %s24 = ssub.s32 %s16, %s23
    %p25 = scmp.eq.s32.totalorder %s24, 0
    %s27 = sadd.s32 %s26, 1
    %s28 = scalar_select %p25, %s26, %s27
    %p31 = pneg %p25
    %p32 = scmp.eq.s32.totalorder %s16, 1
    %p33 = por %p31, %p32
    %p34 = scmp.ne.s32.totalorder %s26, %s29
    %p35 = scmp.eq.s32.totalorder %s16, 0
    %p36 = por %p34, %p35
    %p37 = scmp.ne.s32.totalorder %s26, %s29
    %p38 = scmp.eq.s32.totalorder %s21, 1
    %p39 = por %p37, %p38
    %p40 = scmp.ne.s32.totalorder %s29, %s30
    %p41 = scmp.eq.s32.totalorder %s21, 0
    %p42 = por %p40, %p41
    %p43 = scmp.ne.s32.totalorder %s29, %s30
    %p44 = scmp.eq.s32.totalorder %s22, 1
    %p45 = por %p43, %p44
    %p47 = scmp.ne.s32.totalorder %s30, %s46
    %p48 = scmp.eq.s32.totalorder %s22, 0
    %p49 = por %p47, %p48
    %s50 = ssub.s32 %s16, %s23
    %p51 = scmp.eq.s32.totalorder %s50, 0
    %s53 = sadd.s32 %s52, 1
    %s54 = scalar_select %p51, %s52, %s53
    %p57 = pneg %p51
    %p58 = scmp.eq.s32.totalorder %s16, 1
    %p59 = por %p57, %p58
    %p60 = scmp.ne.s32.totalorder %s52, %s55
    %p61 = scmp.eq.s32.totalorder %s16, 0
    %p62 = por %p60, %p61
    %p63 = scmp.ne.s32.totalorder %s52, %s55
    %p64 = scmp.eq.s32.totalorder %s21, 1
    %p65 = por %p63, %p64
    %p66 = scmp.ne.s32.totalorder %s55, %s56
    %p67 = scmp.eq.s32.totalorder %s21, 0
    %p68 = por %p66, %p67
    %p69 = scmp.ne.s32.totalorder %s55, %s56
    %p70 = scmp.eq.s32.totalorder %s22, 1
    %p71 = por %p69, %p70
    %p73 = scmp.ne.s32.totalorder %s56, %s72
    %p74 = scmp.eq.s32.totalorder %s22, 0
    %p75 = por %p73, %p74
    %s77 = sadd.s32 %s76, 1
    %p80 = scmp.eq.s32.totalorder %s16, 1
    %p81 = scmp.ne.s32.totalorder %s76, %s78
    %p82 = scmp.eq.s32.totalorder %s16, 0
    %p83 = por %p81, %p82
    %p84 = scmp.ne.s32.totalorder %s76, %s78
    %p85 = scmp.eq.s32.totalorder %s21, 1
    %p86 = por %p84, %p85
    %p87 = scmp.ne.s32.totalorder %s78, %s79
    %p88 = scmp.eq.s32.totalorder %s21, 0
    %p89 = por %p87, %p88
    %p90 = scmp.ne.s32.totalorder %s78, %s79
    %p91 = scmp.eq.s32.totalorder %s22, 1
    %p92 = por %p90, %p91
    %p94 = scmp.ne.s32.totalorder %s79, %s93
    %p95 = scmp.eq.s32.totalorder %s22, 0
    %p96 = por %p94, %p95
    %s98 = sadd.s32 %s97, 1
    %p101 = scmp.eq.s32.totalorder %s16, 1
    %p102 = scmp.ne.s32.totalorder %s97, %s99
    %p103 = scmp.eq.s32.totalorder %s16, 0
    %p104 = por %p102, %p103
    %p105 = scmp.ne.s32.totalorder %s97, %s99
    %p106 = scmp.eq.s32.totalorder %s21, 1
    %p107 = por %p105, %p106
    %p108 = scmp.ne.s32.totalorder %s99, %s100
    %p109 = scmp.eq.s32.totalorder %s21, 0
    %p110 = por %p108, %p109
    %p111 = scmp.ne.s32.totalorder %s99, %s100
    %p112 = scmp.eq.s32.totalorder %s22, 1
    %p113 = por %p111, %p112
    %p115 = scmp.ne.s32.totalorder %s100, %s114
    %p116 = scmp.eq.s32.totalorder %s22, 0
    %p117 = por %p115, %p116
    %s119 = sadd.s32 %s118, 1
    %p122 = scmp.eq.s32.totalorder %s16, 1
    %p123 = scmp.ne.s32.totalorder %s118, %s120
    %p124 = scmp.eq.s32.totalorder %s16, 0
    %p125 = por %p123, %p124
    %p126 = scmp.ne.s32.totalorder %s118, %s120
    %p127 = scmp.eq.s32.totalorder %s21, 1
    %p128 = por %p126, %p127
    %p129 = scmp.ne.s32.totalorder %s120, %s121
    %p130 = scmp.eq.s32.totalorder %s21, 0
    %p131 = por %p129, %p130
    %p132 = scmp.ne.s32.totalorder %s120, %s121
    %p133 = scmp.eq.s32.totalorder %s22, 1
    %p134 = por %p132, %p133
    %p136 = scmp.ne.s32.totalorder %s121, %s135
    %p137 = scmp.eq.s32.totalorder %s22, 0
    %p138 = por %p136, %p137
    %s140 = sadd.s32 %s139, 1
    %p143 = scmp.eq.s32.totalorder %s16, 1
    %p144 = scmp.ne.s32.totalorder %s139, %s141
    %p145 = scmp.eq.s32.totalorder %s16, 0
    %p146 = por %p144, %p145
    %p147 = scmp.ne.s32.totalorder %s139, %s141
    %p148 = scmp.eq.s32.totalorder %s21, 1
    %p149 = por %p147, %p148
    %p150 = scmp.ne.s32.totalorder %s141, %s142
    %p151 = scmp.eq.s32.totalorder %s21, 0
    %p152 = por %p150, %p151
    %p153 = scmp.ne.s32.totalorder %s141, %s142
    %p154 = scmp.eq.s32.totalorder %s22, 1
    %p155 = por %p153, %p154
    %p157 = scmp.ne.s32.totalorder %s142, %s156
    %p158 = scmp.eq.s32.totalorder %s22, 0
    %p159 = por %p157, %p158
    %s160 = ssub.s32 %s16, %s23
    %p161 = scmp.eq.s32.totalorder %s160, 0
    %s163 = sadd.s32 %s162, 1
    %s164 = scalar_select %p161, %s162, %s163
    %p167 = pneg %p161
    %p168 = scmp.eq.s32.totalorder %s16, 1
    %p169 = por %p167, %p168
    %p170 = scmp.ne.s32.totalorder %s162, %s165
    %p171 = scmp.eq.s32.totalorder %s16, 0
    %p172 = por %p170, %p171
    %p173 = scmp.ne.s32.totalorder %s162, %s165
    %p174 = scmp.eq.s32.totalorder %s21, 1
    %p175 = por %p173, %p174
    %p176 = scmp.ne.s32.totalorder %s165, %s166
    %p177 = scmp.eq.s32.totalorder %s21, 0
    %p178 = por %p176, %p177
    %p179 = scmp.ne.s32.totalorder %s165, %s166
    %p180 = scmp.eq.s32.totalorder %s22, 1
    %p181 = por %p179, %p180
    %p183 = scmp.ne.s32.totalorder %s166, %s182
    %p184 = scmp.eq.s32.totalorder %s22, 0
    %p185 = por %p183, %p184
    %s186 = ssub.s32 %s16, %s23
    %p187 = scmp.eq.s32.totalorder %s186, 0
    %s189 = sadd.s32 %s188, 1
    %s190 = scalar_select %p187, %s188, %s189
    %p193 = pneg %p187
    %p194 = scmp.eq.s32.totalorder %s16, 1
    %p195 = por %p193, %p194
    %p196 = scmp.ne.s32.totalorder %s188, %s191
    %p197 = scmp.eq.s32.totalorder %s16, 0
    %p198 = por %p196, %p197
    %p199 = scmp.ne.s32.totalorder %s188, %s191
    %p200 = scmp.eq.s32.totalorder %s21, 1
    %p201 = por %p199, %p200
    %p202 = scmp.ne.s32.totalorder %s191, %s192
    %p203 = scmp.eq.s32.totalorder %s21, 0
    %p204 = por %p202, %p203
    %p205 = scmp.ne.s32.totalorder %s191, %s192
    %p206 = scmp.eq.s32.totalorder %s22, 1
    %p207 = por %p205, %p206
    %p209 = scmp.ne.s32.totalorder %s192, %s208
    %p210 = scmp.eq.s32.totalorder %s22, 0
    %p211 = por %p209, %p210
    %p212 = scmp.le.s32.totalorder 1, %s16
    %p213 = scmp.lt.s32.totalorder %s16, 3
    %p214 = pnand %p212, %p213
    %p215 = pneg %p214
    // Predicated region
    $region9: #{gnet_forward.11} parent=5 // pred_check
      _
    $region10: #{gnet_forward.11} parent=5 // pred_check_branch
      %217 = sbr.rel (%p214) target = $region12
    $region11: #{gnet_forward.11} parent=5 // pred_region
      %s218 = ssub.s32 %s16, 1
      // Predicated region
      $region13: #{gnet_forward.11} parent=11 // pred_check
        %p219 = pneg %p89
      $region14: #{gnet_forward.11} parent=11 // pred_check_branch
        %221 = sbr.rel (%p219) target = $region16
      $region15: #{gnet_forward.11} parent=11 // pred_region
        _
      $region16: #{gnet_forward.11} parent=11 // pred_fallthru
        _
      // Predicated region
      $region17: #{gnet_forward.11} parent=11 // pred_check
        %p222 = pneg %p110
      $region18: #{gnet_forward.11} parent=11 // pred_check_branch
        %224 = sbr.rel (%p222) target = $region20
      $region19: #{gnet_forward.11} parent=11 // pred_region
        _
      $region20: #{gnet_forward.11} parent=11 // pred_fallthru
        _
      // Predicated region
      $region21: #{gnet_forward.11} parent=11 // pred_check
        %p225 = pneg %p131
      $region22: #{gnet_forward.11} parent=11 // pred_check_branch
        %227 = sbr.rel (%p225) target = $region24
      $region23: #{gnet_forward.11} parent=11 // pred_region
        _
      $region24: #{gnet_forward.11} parent=11 // pred_fallthru
        _
      // Predicated region
      $region25: #{gnet_forward.11} parent=11 // pred_check
        %p228 = pneg %p152
      $region26: #{gnet_forward.11} parent=11 // pred_check_branch
        %230 = sbr.rel (%p228) target = $region28
      $region27: #{gnet_forward.11} parent=11 // pred_region
        _
      $region28: #{gnet_forward.11} parent=11 // pred_fallthru
        _
    $region12: #{gnet_forward.11} parent=5 // pred_fallthru
      _
    %p231 = scmp.lt.s32.totalorder %s16, 2
    // Predicated region
    $region29: #{gnet_forward.11} parent=5 // pred_check
      %p232 = pneg %p231
    $region30: #{gnet_forward.11} parent=5 // pred_check_branch
      %234 = sbr.rel (%p232) target = $region32
    $region31: #{gnet_forward.11} parent=5 // pred_region
      // Predicated region
      $region33: #{gnet_forward.11} parent=31 // pred_check
        %p235 = pneg %p36
      $region34: #{gnet_forward.11} parent=31 // pred_check_branch
        %237 = sbr.rel (%p235) target = $region36
      $region35: #{gnet_forward.11} parent=31 // pred_region
        %p238 = scmp.lt.s32.totalorder %s16, 1
        %s239 = scalar_select %p238, %s16, 1
        %s240 = smul.addr %s239, 2
        %s241 = smul.addr %s240, 4
        %s242 = scalar_lea.vmem %s0, %s241
      $region36: #{gnet_forward.11} parent=31 // pred_fallthru
        _
      // Predicated region
      $region37: #{gnet_forward.11} parent=31 // pred_check
        %p243 = pneg %p62
      $region38: #{gnet_forward.11} parent=31 // pred_check_branch
        %245 = sbr.rel (%p243) target = $region40
      $region39: #{gnet_forward.11} parent=31 // pred_region
        %p246 = scmp.lt.s32.totalorder %s16, 1
        %s247 = scalar_select %p246, %s16, 1
        %s248 = smul.addr %s247, 2
        %s249 = smul.addr %s248, 4
        %s250 = scalar_lea.vmem %s1, %s249
      $region40: #{gnet_forward.11} parent=31 // pred_fallthru
        _
    $region32: #{gnet_forward.11} parent=5 // pred_fallthru
      _
    %p251 = scmp.le.s32.totalorder 1, %s16
    %p252 = scmp.lt.s32.totalorder %s16, 3
    %p253 = pnand %p251, %p252
    %p254 = pneg %p253
    // Predicated region
    $region41: #{gnet_forward.11} parent=5 // pred_check
      _
    $region42: #{gnet_forward.11} parent=5 // pred_check_branch
      %256 = sbr.rel (%p253) target = $region44
    $region43: #{gnet_forward.11} parent=5 // pred_region
      %s257 = ssub.s32 %s16, 1
      %p258 = scmp.lt.s32.totalorder %s21, 1
      %s259 = scalar_select %p258, %s21, 1
      %s260 = smul.addr %s259, 2
      %s261 = smul.addr %s260, 4
      %s262 = scalar_lea.vmem %s0, %s261
      %p263 = pneg %p42
      %p264 = pneg %p39
      %p265 = scmp.lt.s32.totalorder %s21, 1
      %s266 = scalar_select %p265, %s21, 1
      %s267 = smul.addr %s266, 2
      %s268 = smul.addr %s267, 4
      %s269 = scalar_lea.vmem %s1, %s268
      %p270 = pneg %p68
      %p271 = pneg %p65
      %p272 = pneg %p89
      %p273 = pneg %p86
      %p274 = pneg %p110
      %p275 = pneg %p107
      %p276 = pneg %p131
      %p277 = pneg %p128
      %p278 = pneg %p152
      %p279 = pneg %p149
      %p280 = pneg %p178
      %p281 = pneg %p175
      %p282 = scmp.lt.s32.totalorder %s21, 1
      %s283 = scalar_select %p282, %s21, 1
      %s284 = smul.addr %s283, 2
      %s285 = smul.addr %s284, 4
      %s286 = scalar_lea.vmem %s6, %s285
      %p287 = pneg %p204
      %p288 = pneg %p201
      %p289 = scmp.lt.s32.totalorder %s21, 1
      %s290 = scalar_select %p289, %s21, 1
      %s291 = scalar_lea.vmem %s7, %s290
      %p292 = scmp.lt.s32.totalorder %s21, 1
      %s293 = scalar_select %p292, %s21, 1
      %s294 = smul.addr %s293, 2
      %s295 = smul.addr %s294, 4
      %s296 = scalar_lea.vmem %s0, %s295
      %p297 = scmp.lt.s32.totalorder %s21, 1
      %s298 = scalar_select %p297, %s21, 1
      %s299 = smul.addr %s298, 2
      %s300 = smul.addr %s299, 4
      %s301 = scalar_lea.vmem %s1, %s300
      %p302 = scmp.lt.s32.totalorder %s21, 1
      %s303 = scalar_select %p302, %s21, 1
      %s304 = smul.addr %s303, 2
      %s305 = smul.addr %s304, 4
      %s306 = scalar_lea.vmem %s6, %s305
      %p307 = scmp.lt.s32.totalorder %s21, 1
      %s308 = scalar_select %p307, %s21, 1
      %s309 = scalar_lea.vmem %s7, %s308
      %v311 = vld [vmem:[%s296] sm:$0xf]
      %v312 = vld [vmem:[%s296 + $0x4] sm:$0xf]
      %v313 = vld [vmem:[%s301] sm:$0xf]
      %v314 = vld [vmem:[%s301 + $0x4] sm:$0xf]
      %v317 = vunpack.c.l.b16 %v311
      %v318 = vunpack.c.l.b16 %v312
      %v319 = vpack.c.b16 %v318, %v317
      %v322 = vunpack.c.l.b16 %v313
      %v323 = vunpack.c.l.b16 %v314
      %v324 = vpack.c.b16 %v323, %v322
      %vm326 = vcmask 130048
      %v328 = vsel %vm326, %v319, 0
      %330 = vmatpush.bf16.msra.mxu0 0
      %331 = vmatpush.bf16.msra.mxu0 0
      %332 = vmatpush.bf16.msra.mxu0 0
      %333 = vmatpush.bf16.msra.mxu0 0
      %334 = vmatpush.bf16.msra.mxu0 0
      %335 = vmatpush.bf16.msra.mxu0 0
      %336 = vmatpush.bf16.msra.mxu0 0
      %337 = vmatpush.bf16.msra.mxu0 %v324
      %338 = vmatmul.bf16.gmra.mxu0 %v328
      %v339 = vpop.f32.mrf.mxu0
      %v340 = vadd.f32 0.0, %v339
      %v341 = vpop.f32.mrf.mxu0
      %v342 = vadd.f32 0.0, %v341
      %343 = vdwg.mxu0
      %v344 = vpack.c.bf16 %v342, %v340
      %v345 = vld [vmem:[%s2] sm:$0xf]
      %v346 = vld [vmem:[%s2 + $0x4] sm:$0xf]
      %v347 = vld [vmem:[%s2 + $0x8] sm:$0xf]
      %v348 = vld [vmem:[%s2 + $0xc] sm:$0xf]
      %v349 = vld [vmem:[%s3] sm:$0x1]
      %v351 = vperm.slane %v349, 0
      %v357 = vunpack.c.l.b16 %v345
      %v358 = vunpack.c.l.b16 %v346
      %v359 = vunpack.c.l.b16 %v347
      %v360 = vunpack.c.l.b16 %v348
      %v361 = vpack.c.b16 %v358, %v357
      %v362 = vpack.c.b16 %v360, %v359
      %vm365 = vcmask 261120
      %v367 = vsel %vm365, %v344, 0
      %369 = vmatpush.bf16.msra.mxu0 0
      %370 = vmatpush.bf16.msra.mxu0 0
      %371 = vmatpush.bf16.msra.mxu0 0
      %372 = vmatpush.bf16.msra.mxu0 0
      %373 = vmatpush.bf16.msra.mxu0 0
      %374 = vmatpush.bf16.msra.mxu0 0
      %375 = vmatpush.bf16.msra.mxu0 %v362
      %376 = vmatpush.bf16.msra.mxu0 %v361
      %377 = vmatmul.bf16.gmra.mxu0 %v367
      %v378 = vpop.f32.mrf.mxu0
      %v379 = vadd.f32 %v351, %v378
      %v380 = vpop.f32.mrf.mxu0
      %v381 = vadd.f32 %v351, %v380
      %382 = vdwg.mxu0
      %vm383 = vcmp.gt.f32.partialorder %v379, 0.0
      %vm384 = vcmp.gt.f32.partialorder %v381, 0.0
      %v385 = vmul.f32 %v379, 1.442695
      %v386 = vpow.pop %v385
      %v387 = vmul.f32 %v381, 1.442695
      %v388 = vpow.pop %v387
      %v389 = vsub.f32 %v386, 1.0
      %v390 = vsub.f32 %v388, 1.0
      %v391 = vsel %vm383, %v379, %v389
      %v392 = vsel %vm384, %v381, %v390
      %v393 = vpack.c.bf16 %v391, %v391
      %v394 = vpack.c.bf16 %v392, %v392
      %vm395 = vcmask 257024
      %396 = vst.msk [vmem:[%s306] sm:$0xf] %vm395, %v393
      %397 = vst.msk [vmem:[%s306 + $0x4] sm:$0xf] %vm395, %v394
      %v398 = vld [vmem:[%s4] sm:$0x1]
      %v399 = vld [vmem:[#allocation2] sm:$0x1]
      %401 = vset.pattern.permute.xlu0 0
      %402 = vperm.xlu0 %401, %v399
      %v403 = vpop.permute.xlu0 %402
      %v405 = vperm.slane %v403, 0
      %v407 = vsel %vm365, %v398, 0
      %v410 = vsel %vm365, %v391, 0
      %v413 = vsel %vm365, %v392, 0
      %415 = vmatpush.xpose.msra.mxu0 0.0
      %416 = vmatpush.xpose.msra.mxu0 0.0
      %417 = vmatpush.xpose.msra.mxu0 0.0
      %418 = vmatpush.xpose.msra.mxu0 0.0
      %419 = vmatpush.xpose.msra.mxu0 0.0
      %420 = vmatpush.xpose.msra.mxu0 0.0
      %421 = vmatpush.xpose.msra.mxu0 0.0
      %422 = vmatpush.xpose.msra.mxu0 0.0
      %423 = vmatpush.xpose.msra.mxu0 0.0
      %424 = vmatpush.xpose.msra.mxu0 0.0
      %425 = vmatpush.xpose.msra.mxu0 0.0
      %426 = vmatpush.xpose.msra.mxu0 0.0
      %427 = vmatpush.xpose.msra.mxu0 0.0
      %428 = vmatpush.xpose.msra.mxu0 0.0
      %429 = vmatpush.xpose.msra.mxu0 %v413
      %430 = vmatpush.xpose.msra.mxu0 %v410
      %431 = vmatmul.f32.gmra.mxu0 %v407
      %v432 = vpop.f32.mrf.mxu0
      %v433 = vadd.f32 %v405, %v432
      %434 = vdwg.mxu0
      %v435 = vsub.f32 0.0, %v433
      %v436 = vmul.f32 %v435, 1.442695
      %v437 = vpow.pop %v436
      %v438 = vadd.f32 %v437, 1.0
      %v439 = vrcp.pop %v438
      %v440 = vmul.f32 %v438, %v439
      %v441 = vsub.f32 1.0, %v440
      %v442 = vmul.f32 %v439, %v441
      %v443 = vadd.f32 %v439, %v442
      %vm444 = vweird.f32 %v438
      %vm445 = vweird.f32 %v439
      %vm446 = vmor %vm444, %vm445
      %v447 = vsel %vm446, %v439, %v443
      %v448 = vand.u32 2147483647, %v438
      %vm449 = vcmp.eq.f32.partialorder %v448, 8.507059e+37
      %v450 = vand.u32 %v438, 2147483648
      %v451 = vor.u32 1.1754944e-38, %v450
      %v452 = vsel %vm449, %v451, %v447
      %v453 = vmul.f32 1.0, %v452
      %vm454 = vcmask 122880
      %455 = vst.msk [vmem:[%s309] sm:$0x1] %vm454, %v453
      %p456 = scmp.lt.s32.totalorder %s21, 1
      %s457 = scalar_select %p456, %s21, 1
      %s458 = smul.addr %s457, 2
      %s459 = smul.addr %s458, 4
      %s460 = scalar_lea.vmem %s6, %s459
      %p461 = scmp.lt.s32.totalorder %s21, 1
      %s462 = scalar_select %p461, %s21, 1
      %s463 = scalar_lea.vmem %s7, %s462
      // Predicated region
      $region45: #{gnet_forward.11} parent=43 // pred_check
        %p464 = pneg %p175
      $region46: #{gnet_forward.11} parent=43 // pred_check_branch
        %466 = sbr.rel (%p464) target = $region48
      $region47: #{gnet_forward.11} parent=43 // pred_region
        _
      $region48: #{gnet_forward.11} parent=43 // pred_fallthru
        _
      // Predicated region
      $region49: #{gnet_forward.11} parent=43 // pred_check
        %p467 = pneg %p201
      $region50: #{gnet_forward.11} parent=43 // pred_check_branch
        %469 = sbr.rel (%p467) target = $region52
      $region51: #{gnet_forward.11} parent=43 // pred_region
        _
      $region52: #{gnet_forward.11} parent=43 // pred_fallthru
        _
    $region44: #{gnet_forward.11} parent=5 // pred_fallthru
      _
    %p470 = scmp.le.s32.totalorder 2, %s16
    // Predicated region
    $region53: #{gnet_forward.11} parent=5 // pred_check
      %p471 = pneg %p470
    $region54: #{gnet_forward.11} parent=5 // pred_check_branch
      %473 = sbr.rel (%p471) target = $region56
    $region55: #{gnet_forward.11} parent=5 // pred_region
      %s474 = ssub.s32 %s16, 2
      // Predicated region
      $region57: #{gnet_forward.11} parent=55 // pred_check
        %p475 = pneg %p181
      $region58: #{gnet_forward.11} parent=55 // pred_check_branch
        %477 = sbr.rel (%p475) target = $region60
      $region59: #{gnet_forward.11} parent=55 // pred_region
        %p478 = scmp.lt.s32.totalorder %s22, 1
        %s479 = scalar_select %p478, %s22, 1
        %s480 = smul.addr %s479, 2
        %s481 = smul.addr %s480, 4
        %s482 = scalar_lea.vmem %s6, %s481
      $region60: #{gnet_forward.11} parent=55 // pred_fallthru
        _
      // Predicated region
      $region61: #{gnet_forward.11} parent=55 // pred_check
        %p483 = pneg %p207
      $region62: #{gnet_forward.11} parent=55 // pred_check_branch
        %485 = sbr.rel (%p483) target = $region64
      $region63: #{gnet_forward.11} parent=55 // pred_region
        %p486 = scmp.lt.s32.totalorder %s22, 1
        %s487 = scalar_select %p486, %s22, 1
        %s488 = scalar_lea.vmem %s7, %s487
      $region64: #{gnet_forward.11} parent=55 // pred_fallthru
        _
    $region56: #{gnet_forward.11} parent=5 // pred_fallthru
      _
  $region6: #{gnet_forward.11} parent=0 // loop_footer
    %s20 = sadd.s32 1, %s16
  $region7: #{gnet_forward.11} parent=0 // loop_footer_branch
    %15 = sbr.rel target = $region3
  $region8: #{gnet_forward.11} parent=0 // loop_exit
    _

// kernel: gnet_forward.10
$region0: #{gnet_forward.10}
  #allocation0 [shape = 'u32[]', space=smem, size = 0x4, offset = 0x4, fixed_abs, tag = 'smem constant byte address 0x4 - core index']
  #allocation1 [shape = 'u32[72,128]{1,0:T(1,128)}', space=vmem, size = 0x9000, scoped, tag = 'internal scratch']
  %s0 = inlined_call_operand.vmem [shape: f32[2,16,16], index: 0, kind: input, shape index: {}]
  %s1 = inlined_call_operand.vmem [shape: f32[2,16,8], index: 1, kind: input, shape index: {}]
  %s2 = inlined_call_operand.vmem [shape: bf16[8,32], index: 2, kind: input, shape index: {}]
  %s3 = inlined_call_operand.vmem [shape: f32[1,32], index: 3, kind: input, shape index: {}]
  %s4 = inlined_call_operand.vmem [shape: bf16[2,16,16], index: 4, kind: output, shape index: {0}]
  %s5 = inlined_call_operand.vmem [shape: bf16[2,16,16], index: 5, kind: output, shape index: {1}]
  %s6 = inlined_call_operand.vmem [shape: bf16[2,16,32], index: 6, kind: output, shape index: {2}]
  %7 = xla_tuple %s4, %s5, %s6
  %s8 = sld [smem:[#allocation0]]
  $region65: #{gnet_forward.10} parent=0
    _
  %s10 = ssub.s32 1, %s8
  %s11 = scalar_select 0, %s10, %s8
  loop: start=0, step=1, limit=4
  $region2: #{gnet_forward.10} parent=0 // loop_pre_header
    _
  $region3: #{gnet_forward.10} parent=0 // loop_header
    %s13 = sphi 0, %s17
    %p14 = scmp.ge.s32.totalorder %s13, 4
    %s23 = sphi 0, %s25
    %s26 = sphi 0, %s23
    %s27 = sphi 0, %s26
    %s43 = sphi 0, %s27
    %s49 = sphi 0, %s51
    %s52 = sphi 0, %s49
    %s53 = sphi 0, %s52
    %s69 = sphi 0, %s53
    %s73 = sphi 0, %s73
    %s75 = sphi 0, %s73
    %s76 = sphi 0, %s75
    %s90 = sphi 0, %s76
    %s94 = sphi 0, %s94
    %s96 = sphi 0, %s94
    %s97 = sphi 0, %s96
    %s111 = sphi 0, %s97
    %s117 = sphi 0, %s119
    %s120 = sphi 0, %s117
    %s121 = sphi 0, %s120
    %s137 = sphi 0, %s121
    %s143 = sphi 0, %s145
    %s146 = sphi 0, %s143
    %s147 = sphi 0, %s146
    %s163 = sphi 0, %s147
    %s169 = sphi 0, %s171
    %s172 = sphi 0, %s169
    %s173 = sphi 0, %s172
    %s189 = sphi 0, %s173
  $region4: #{gnet_forward.10} parent=0 // loop_header_branch
    %16 = sbr.rel (%p14) target = $region8
  $region5: #{gnet_forward.10} parent=0 // loop_body
    %s18 = ssub.s32 %s13, 1
    %s19 = ssub.s32 %s13, 2
    %s20 = sadd.s32 %s13, 1
    %s21 = ssub.s32 %s13, %s20
    %p22 = scmp.eq.s32.totalorder %s21, 0
    %s24 = sadd.s32 %s23, 1
    %s25 = scalar_select %p22, %s23, %s24
    %p28 = pneg %p22
    %p29 = scmp.eq.s32.totalorder %s13, 1
    %p30 = por %p28, %p29
    %p31 = scmp.ne.s32.totalorder %s23, %s26
    %p32 = scmp.eq.s32.totalorder %s13, 0
    %p33 = por %p31, %p32
    %p34 = scmp.ne.s32.totalorder %s23, %s26
    %p35 = scmp.eq.s32.totalorder %s18, 1
    %p36 = por %p34, %p35
    %p37 = scmp.ne.s32.totalorder %s26, %s27
    %p38 = scmp.eq.s32.totalorder %s18, 0
    %p39 = por %p37, %p38
    %p40 = scmp.ne.s32.totalorder %s26, %s27
    %p41 = scmp.eq.s32.totalorder %s19, 1
    %p42 = por %p40, %p41
    %p44 = scmp.ne.s32.totalorder %s27, %s43
    %p45 = scmp.eq.s32.totalorder %s19, 0
    %p46 = por %p44, %p45
    %s47 = ssub.s32 %s13, %s20
    %p48 = scmp.eq.s32.totalorder %s47, 0
    %s50 = sadd.s32 %s49, 1
    %s51 = scalar_select %p48, %s49, %s50
    %p54 = pneg %p48
    %p55 = scmp.eq.s32.totalorder %s13, 1
    %p56 = por %p54, %p55
    %p57 = scmp.ne.s32.totalorder %s49, %s52
    %p58 = scmp.eq.s32.totalorder %s13, 0
    %p59 = por %p57, %p58
    %p60 = scmp.ne.s32.totalorder %s49, %s52
    %p61 = scmp.eq.s32.totalorder %s18, 1
    %p62 = por %p60, %p61
    %p63 = scmp.ne.s32.totalorder %s52, %s53
    %p64 = scmp.eq.s32.totalorder %s18, 0
    %p65 = por %p63, %p64
    %p66 = scmp.ne.s32.totalorder %s52, %s53
    %p67 = scmp.eq.s32.totalorder %s19, 1
    %p68 = por %p66, %p67
    %p70 = scmp.ne.s32.totalorder %s53, %s69
    %p71 = scmp.eq.s32.totalorder %s19, 0
    %p72 = por %p70, %p71
    %s74 = sadd.s32 %s73, 1
    %p77 = scmp.eq.s32.totalorder %s13, 1
    %p78 = scmp.ne.s32.totalorder %s73, %s75
    %p79 = scmp.eq.s32.totalorder %s13, 0
    %p80 = por %p78, %p79
    %p81 = scmp.ne.s32.totalorder %s73, %s75
    %p82 = scmp.eq.s32.totalorder %s18, 1
    %p83 = por %p81, %p82
    %p84 = scmp.ne.s32.totalorder %s75, %s76
    %p85 = scmp.eq.s32.totalorder %s18, 0
    %p86 = por %p84, %p85
    %p87 = scmp.ne.s32.totalorder %s75, %s76
    %p88 = scmp.eq.s32.totalorder %s19, 1
    %p89 = por %p87, %p88
    %p91 = scmp.ne.s32.totalorder %s76, %s90
    %p92 = scmp.eq.s32.totalorder %s19, 0
    %p93 = por %p91, %p92
    %s95 = sadd.s32 %s94, 1
    %p98 = scmp.eq.s32.totalorder %s13, 1
    %p99 = scmp.ne.s32.totalorder %s94, %s96
    %p100 = scmp.eq.s32.totalorder %s13, 0
    %p101 = por %p99, %p100
    %p102 = scmp.ne.s32.totalorder %s94, %s96
    %p103 = scmp.eq.s32.totalorder %s18, 1
    %p104 = por %p102, %p103
    %p105 = scmp.ne.s32.totalorder %s96, %s97
    %p106 = scmp.eq.s32.totalorder %s18, 0
    %p107 = por %p105, %p106
    %p108 = scmp.ne.s32.totalorder %s96, %s97
    %p109 = scmp.eq.s32.totalorder %s19, 1
    %p110 = por %p108, %p109
    %p112 = scmp.ne.s32.totalorder %s97, %s111
    %p113 = scmp.eq.s32.totalorder %s19, 0
    %p114 = por %p112, %p113
    %s115 = ssub.s32 %s13, %s20
    %p116 = scmp.eq.s32.totalorder %s115, 0
    %s118 = sadd.s32 %s117, 1
    %s119 = scalar_select %p116, %s117, %s118
    %p122 = pneg %p116
    %p123 = scmp.eq.s32.totalorder %s13, 1
    %p124 = por %p122, %p123
    %p125 = scmp.ne.s32.totalorder %s117, %s120
    %p126 = scmp.eq.s32.totalorder %s13, 0
    %p127 = por %p125, %p126
    %p128 = scmp.ne.s32.totalorder %s117, %s120
    %p129 = scmp.eq.s32.totalorder %s18, 1
    %p130 = por %p128, %p129
    %p131 = scmp.ne.s32.totalorder %s120, %s121
    %p132 = scmp.eq.s32.totalorder %s18, 0
    %p133 = por %p131, %p132
    %p134 = scmp.ne.s32.totalorder %s120, %s121
    %p135 = scmp.eq.s32.totalorder %s19, 1
    %p136 = por %p134, %p135
    %p138 = scmp.ne.s32.totalorder %s121, %s137
    %p139 = scmp.eq.s32.totalorder %s19, 0
    %p140 = por %p138, %p139
    %s141 = ssub.s32 %s13, %s20
    %p142 = scmp.eq.s32.totalorder %s141, 0
    %s144 = sadd.s32 %s143, 1
    %s145 = scalar_select %p142, %s143, %s144
    %p148 = pneg %p142
    %p149 = scmp.eq.s32.totalorder %s13, 1
    %p150 = por %p148, %p149
    %p151 = scmp.ne.s32.totalorder %s143, %s146
    %p152 = scmp.eq.s32.totalorder %s13, 0
    %p153 = por %p151, %p152
    %p154 = scmp.ne.s32.totalorder %s143, %s146
    %p155 = scmp.eq.s32.totalorder %s18, 1
    %p156 = por %p154, %p155
    %p157 = scmp.ne.s32.totalorder %s146, %s147
    %p158 = scmp.eq.s32.totalorder %s18, 0
    %p159 = por %p157, %p158
    %p160 = scmp.ne.s32.totalorder %s146, %s147
    %p161 = scmp.eq.s32.totalorder %s19, 1
    %p162 = por %p160, %p161
    %p164 = scmp.ne.s32.totalorder %s147, %s163
    %p165 = scmp.eq.s32.totalorder %s19, 0
    %p166 = por %p164, %p165
    %s167 = ssub.s32 %s13, %s20
    %p168 = scmp.eq.s32.totalorder %s167, 0
    %s170 = sadd.s32 %s169, 1
    %s171 = scalar_select %p168, %s169, %s170
    %p174 = pneg %p168
    %p175 = scmp.eq.s32.totalorder %s13, 1
    %p176 = por %p174, %p175
    %p177 = scmp.ne.s32.totalorder %s169, %s172
    %p178 = scmp.eq.s32.totalorder %s13, 0
    %p179 = por %p177, %p178
    %p180 = scmp.ne.s32.totalorder %s169, %s172
    %p181 = scmp.eq.s32.totalorder %s18, 1
    %p182 = por %p180, %p181
    %p183 = scmp.ne.s32.totalorder %s172, %s173
    %p184 = scmp.eq.s32.totalorder %s18, 0
    %p185 = por %p183, %p184
    %p186 = scmp.ne.s32.totalorder %s172, %s173
    %p187 = scmp.eq.s32.totalorder %s19, 1
    %p188 = por %p186, %p187
    %p190 = scmp.ne.s32.totalorder %s173, %s189
    %p191 = scmp.eq.s32.totalorder %s19, 0
    %p192 = por %p190, %p191
    %p193 = scmp.le.s32.totalorder 1, %s13
    %p194 = scmp.lt.s32.totalorder %s13, 3
    %p195 = pnand %p193, %p194
    %p196 = pneg %p195
    // Predicated region
    $region9: #{gnet_forward.10} parent=5 // pred_check
      _
    $region10: #{gnet_forward.10} parent=5 // pred_check_branch
      %198 = sbr.rel (%p195) target = $region12
    $region11: #{gnet_forward.10} parent=5 // pred_region
      %s199 = ssub.s32 %s13, 1
      // Predicated region
      $region13: #{gnet_forward.10} parent=11 // pred_check
        %p200 = pneg %p86
      $region14: #{gnet_forward.10} parent=11 // pred_check_branch
        %202 = sbr.rel (%p200) target = $region16
      $region15: #{gnet_forward.10} parent=11 // pred_region
        _
      $region16: #{gnet_forward.10} parent=11 // pred_fallthru
        _
      // Predicated region
      $region17: #{gnet_forward.10} parent=11 // pred_check
        %p203 = pneg %p107
      $region18: #{gnet_forward.10} parent=11 // pred_check_branch
        %205 = sbr.rel (%p203) target = $region20
      $region19: #{gnet_forward.10} parent=11 // pred_region
        _
      $region20: #{gnet_forward.10} parent=11 // pred_fallthru
        _
    $region12: #{gnet_forward.10} parent=5 // pred_fallthru
      _
    %p206 = scmp.lt.s32.totalorder %s13, 2
    // Predicated region
    $region21: #{gnet_forward.10} parent=5 // pred_check
      %p207 = pneg %p206
    $region22: #{gnet_forward.10} parent=5 // pred_check_branch
      %209 = sbr.rel (%p207) target = $region24
    $region23: #{gnet_forward.10} parent=5 // pred_region
      // Predicated region
      $region25: #{gnet_forward.10} parent=23 // pred_check
        %p210 = pneg %p33
      $region26: #{gnet_forward.10} parent=23 // pred_check_branch
        %212 = sbr.rel (%p210) target = $region28
      $region27: #{gnet_forward.10} parent=23 // pred_region
        %p213 = scmp.lt.s32.totalorder %s13, 1
        %s214 = scalar_select %p213, %s13, 1
        %s215 = smul.addr %s214, 2
        %s216 = smul.addr %s215, 8
        %s217 = scalar_lea.vmem %s0, %s216
      $region28: #{gnet_forward.10} parent=23 // pred_fallthru
        _
      // Predicated region
      $region29: #{gnet_forward.10} parent=23 // pred_check
        %p218 = pneg %p59
      $region30: #{gnet_forward.10} parent=23 // pred_check_branch
        %220 = sbr.rel (%p218) target = $region32
      $region31: #{gnet_forward.10} parent=23 // pred_region
        %p221 = scmp.lt.s32.totalorder %s13, 1
        %s222 = scalar_select %p221, %s13, 1
        %s223 = smul.addr %s222, 2
        %s224 = smul.addr %s223, 8
        %s225 = scalar_lea.vmem %s1, %s224
      $region32: #{gnet_forward.10} parent=23 // pred_fallthru
        _
    $region24: #{gnet_forward.10} parent=5 // pred_fallthru
      _
    %p226 = scmp.le.s32.totalorder 1, %s13
    %p227 = scmp.lt.s32.totalorder %s13, 3
    %p228 = pnand %p226, %p227
    %p229 = pneg %p228
    // Predicated region
    $region33: #{gnet_forward.10} parent=5 // pred_check
      _
    $region34: #{gnet_forward.10} parent=5 // pred_check_branch
      %231 = sbr.rel (%p228) target = $region36
    $region35: #{gnet_forward.10} parent=5 // pred_region
      %s232 = ssub.s32 %s13, 1
      %p233 = scmp.lt.s32.totalorder %s18, 1
      %s234 = scalar_select %p233, %s18, 1
      %s235 = smul.addr %s234, 2
      %s236 = smul.addr %s235, 8
      %s237 = scalar_lea.vmem %s0, %s236
      %p238 = pneg %p39
      %p239 = pneg %p36
      %p240 = scmp.lt.s32.totalorder %s18, 1
      %s241 = scalar_select %p240, %s18, 1
      %s242 = smul.addr %s241, 2
      %s243 = smul.addr %s242, 8
      %s244 = scalar_lea.vmem %s1, %s243
      %p245 = pneg %p65
      %p246 = pneg %p62
      %p247 = pneg %p86
      %p248 = pneg %p83
      %p249 = pneg %p107
      %p250 = pneg %p104
      %p251 = pneg %p133
      %p252 = pneg %p130
      %p253 = scmp.lt.s32.totalorder %s18, 1
      %s254 = scalar_select %p253, %s18, 1
      %s255 = smul.addr %s254, 2
      %s256 = smul.addr %s255, 4
      %s257 = scalar_lea.vmem %s4, %s256
      %p258 = pneg %p159
      %p259 = pneg %p156
      %p260 = scmp.lt.s32.totalorder %s18, 1
      %s261 = scalar_select %p260, %s18, 1
      %s262 = smul.addr %s261, 2
      %s263 = smul.addr %s262, 4
      %s264 = scalar_lea.vmem %s5, %s263
      %p265 = pneg %p185
      %p266 = pneg %p182
      %p267 = scmp.lt.s32.totalorder %s18, 1
      %s268 = scalar_select %p267, %s18, 1
      %s269 = smul.addr %s268, 2
      %s270 = smul.addr %s269, 4
      %s271 = scalar_lea.vmem %s6, %s270
      %p272 = scmp.lt.s32.totalorder %s18, 1
      %s273 = scalar_select %p272, %s18, 1
      %s274 = smul.addr %s273, 2
      %s275 = smul.addr %s274, 8
      %s276 = scalar_lea.vmem %s0, %s275
      %p277 = scmp.lt.s32.totalorder %s18, 1
      %s278 = scalar_select %p277, %s18, 1
      %s279 = smul.addr %s278, 2
      %s280 = smul.addr %s279, 8
      %s281 = scalar_lea.vmem %s1, %s280
      %p282 = scmp.lt.s32.totalorder %s18, 1
      %s283 = scalar_select %p282, %s18, 1
      %s284 = smul.addr %s283, 2
      %s285 = smul.addr %s284, 4
      %s286 = scalar_lea.vmem %s4, %s285
      %p287 = scmp.lt.s32.totalorder %s18, 1
      %s288 = scalar_select %p287, %s18, 1
      %s289 = smul.addr %s288, 2
      %s290 = smul.addr %s289, 4
      %s291 = scalar_lea.vmem %s5, %s290
      %p292 = scmp.lt.s32.totalorder %s18, 1
      %s293 = scalar_select %p292, %s18, 1
      %s294 = smul.addr %s293, 2
      %s295 = smul.addr %s294, 4
      %s296 = scalar_lea.vmem %s6, %s295
      %v298 = vld [vmem:[%s276] sm:$0xff]
      %v299 = vld [vmem:[%s276 + $0x8] sm:$0xff]
      %vm300 = vcmask 130048
      %v301 = vsel %vm300, %v298, 0.0
      %v302 = vsel %vm300, %v299, 0.0
      %v303 = vadd.f32 %v301, %v302
      %v304 = vrot.slane %v303, 4
      %v305 = vadd.f32 %v303, %v304
      %v306 = vrot.slane %v305, 2
      %v307 = vadd.f32 %v305, %v306
      %v308 = vrot.slane %v307, 1
      %v309 = vadd.f32 %v307, %v308
      %v310 = vrcp.pop %v309
      %v311 = vmul.f32 %v298, %v310
      %v312 = vmul.f32 %v299, %v310
      %v313 = vpack.c.bf16 %v311, %v311
      %v314 = vpack.c.bf16 %v312, %v312
      %vm315 = vcmask 125952
      %316 = vst.msk [vmem:[%s286] sm:$0xf] %vm315, %v313
      %317 = vst.msk [vmem:[%s286 + $0x4] sm:$0xf] %vm315, %v314
      %vm318 = vcmp.ne.f32.partialorder %v298, 0.0
      %vm319 = vcmp.ne.f32.partialorder %v299, 0.0
      %v320 = vsel %vm318, 1, 0
      %v321 = vsel %vm319, 1, 0
      %v322 = vcvt.s32.f32 %v320
      %v323 = vcvt.s32.f32 %v321
      %v324 = vpack.c.bf16 %v322, %v322
      %v325 = vpack.c.bf16 %v323, %v323
      %326 = vst.msk [vmem:[%s291] sm:$0xf] %vm315, %v324
      %327 = vst.msk [vmem:[%s291 + $0x4] sm:$0xf] %vm315, %v325
      %v328 = vld [vmem:[%s281] sm:$0xff]
      %v329 = vld [vmem:[%s281 + $0x8] sm:$0xff]
      %v330 = vpack.c.bf16 %v328, %v328
      %v331 = vpack.c.bf16 %v329, %v329
      %v334 = vunpack.c.l.b16 %v313
      %v335 = vunpack.c.l.b16 %v314
      %v336 = vpack.c.b16 %v335, %v334
      %v339 = vunpack.c.l.b16 %v330
      %v340 = vunpack.c.l.b16 %v331
      %v341 = vpack.c.b16 %v340, %v339
      %v344 = vsel %vm300, %v336, 0
      %346 = vmatpush.bf16.msra.mxu0 0
      %347 = vmatpush.bf16.msra.mxu0 0
      %348 = vmatpush.bf16.msra.mxu0 0
      %349 = vmatpush.bf16.msra.mxu0 0
      %350 = vmatpush.bf16.msra.mxu0 0
      %351 = vmatpush.bf16.msra.mxu0 0
      %352 = vmatpush.bf16.msra.mxu0 0
      %353 = vmatpush.bf16.msra.mxu0 %v341
      %354 = vmatmul.bf16.gmra.mxu0 %v344
      %v355 = vpop.f32.mrf.mxu0
      %v356 = vadd.f32 0.0, %v355
      %v357 = vpop.f32.mrf.mxu0
      %v358 = vadd.f32 0.0, %v357
      %359 = vdwg.mxu0
      %v360 = vpack.c.bf16 %v358, %v356
      %v361 = vld [vmem:[%s2] sm:$0xf]
      %v362 = vld [vmem:[%s3] sm:$0x1]
      %v364 = vperm.slane %v362, 0
      %vm366 = vcmask 64512
      %v368 = vsel %vm366, %v360, 0
      %vm370 = vcmask 1043456
      %v372 = vsel %vm370, %v361, 0
      %374 = vmatpush.bf16.msra.mxu0 0
      %375 = vmatpush.bf16.msra.mxu0 0
      %376 = vmatpush.bf16.msra.mxu0 0
      %377 = vmatpush.bf16.msra.mxu0 0
      %378 = vmatpush.bf16.msra.mxu0 0
      %379 = vmatpush.bf16.msra.mxu0 0
      %380 = vmatpush.bf16.msra.mxu0 0
      %381 = vmatpush.bf16.msra.mxu0 %v372
      %382 = vmatmul.bf16.gmra.mxu0 %v368
      %v383 = vpop.f32.mrf.mxu0
      %v384 = vadd.f32 %v364, %v383
      %v385 = vpop.f32.mrf.mxu0
      %v386 = vadd.f32 %v364, %v385
      %387 = vdwg.mxu0
      %vm388 = vcmp.gt.f32.partialorder %v384, 0.0
      %vm389 = vcmp.gt.f32.partialorder %v386, 0.0
      %v390 = vmul.f32 %v384, 1.442695
      %v391 = vpow.pop %v390
      %v392 = vmul.f32 %v386, 1.442695
      %v393 = vpow.pop %v392
      %v394 = vsub.f32 %v391, 1.0
      %v395 = vsub.f32 %v393, 1.0
      %v396 = vsel %vm388, %v384, %v394
      %v397 = vsel %vm389, %v386, %v395
      %v398 = vpack.c.bf16 %v396, %v396
      %v399 = vpack.c.bf16 %v397, %v397
      %vm400 = vcmask 257024
      %401 = vst.msk [vmem:[%s296] sm:$0xf] %vm400, %v398
      %402 = vst.msk [vmem:[%s296 + $0x4] sm:$0xf] %vm400, %v399
      %p403 = scmp.lt.s32.totalorder %s18, 1
      %s404 = scalar_select %p403, %s18, 1
      %s405 = smul.addr %s404, 2
      %s406 = smul.addr %s405, 4
      %s407 = scalar_lea.vmem %s4, %s406
      %p408 = scmp.lt.s32.totalorder %s18, 1
      %s409 = scalar_select %p408, %s18, 1
      %s410 = smul.addr %s409, 2
      %s411 = smul.addr %s410, 4
      %s412 = scalar_lea.vmem %s5, %s411
      %p413 = scmp.lt.s32.totalorder %s18, 1
      %s414 = scalar_select %p413, %s18, 1
      %s415 = smul.addr %s414, 2
      %s416 = smul.addr %s415, 4
      %s417 = scalar_lea.vmem %s6, %s416
      // Predicated region
      $region37: #{gnet_forward.10} parent=35 // pred_check
        %p418 = pneg %p130
      $region38: #{gnet_forward.10} parent=35 // pred_check_branch
        %420 = sbr.rel (%p418) target = $region40
      $region39: #{gnet_forward.10} parent=35 // pred_region
        _
      $region40: #{gnet_forward.10} parent=35 // pred_fallthru
        _
      // Predicated region
      $region41: #{gnet_forward.10} parent=35 // pred_check
        %p421 = pneg %p156
      $region42: #{gnet_forward.10} parent=35 // pred_check_branch
        %423 = sbr.rel (%p421) target = $region44
      $region43: #{gnet_forward.10} parent=35 // pred_region
        _
      $region44: #{gnet_forward.10} parent=35 // pred_fallthru
        _
      // Predicated region
      $region45: #{gnet_forward.10} parent=35 // pred_check
        %p424 = pneg %p182
      $region46: #{gnet_forward.10} parent=35 // pred_check_branch
        %426 = sbr.rel (%p424) target = $region48
      $region47: #{gnet_forward.10} parent=35 // pred_region
        _
      $region48: #{gnet_forward.10} parent=35 // pred_fallthru
        _
    $region36: #{gnet_forward.10} parent=5 // pred_fallthru
      _
    %p427 = scmp.le.s32.totalorder 2, %s13
    // Predicated region
    $region49: #{gnet_forward.10} parent=5 // pred_check
      %p428 = pneg %p427
    $region50: #{gnet_forward.10} parent=5 // pred_check_branch
      %430 = sbr.rel (%p428) target = $region52
    $region51: #{gnet_forward.10} parent=5 // pred_region
      %s431 = ssub.s32 %s13, 2
      // Predicated region
      $region53: #{gnet_forward.10} parent=51 // pred_check
        %p432 = pneg %p136
      $region54: #{gnet_forward.10} parent=51 // pred_check_branch
        %434 = sbr.rel (%p432) target = $region56
      $region55: #{gnet_forward.10} parent=51 // pred_region
        %p435 = scmp.lt.s32.totalorder %s19, 1
        %s436 = scalar_select %p435, %s19, 1
        %s437 = smul.addr %s436, 2
        %s438 = smul.addr %s437, 4
        %s439 = scalar_lea.vmem %s4, %s438
      $region56: #{gnet_forward.10} parent=51 // pred_fallthru
        _
      // Predicated region
      $region57: #{gnet_forward.10} parent=51 // pred_check
        %p440 = pneg %p162
      $region58: #{gnet_forward.10} parent=51 // pred_check_branch
        %442 = sbr.rel (%p440) target = $region60
      $region59: #{gnet_forward.10} parent=51 // pred_region
        %p443 = scmp.lt.s32.totalorder %s19, 1
        %s444 = scalar_select %p443, %s19, 1
        %s445 = smul.addr %s444, 2
        %s446 = smul.addr %s445, 4
        %s447 = scalar_lea.vmem %s5, %s446
      $region60: #{gnet_forward.10} parent=51 // pred_fallthru
        _
      // Predicated region
      $region61: #{gnet_forward.10} parent=51 // pred_check
        %p448 = pneg %p188
      $region62: #{gnet_forward.10} parent=51 // pred_check_branch
        %450 = sbr.rel (%p448) target = $region64
      $region63: #{gnet_forward.10} parent=51 // pred_region
        %p451 = scmp.lt.s32.totalorder %s19, 1
        %s452 = scalar_select %p451, %s19, 1
        %s453 = smul.addr %s452, 2
        %s454 = smul.addr %s453, 4
        %s455 = scalar_lea.vmem %s6, %s454
      $region64: #{gnet_forward.10} parent=51 // pred_fallthru
        _
    $region52: #{gnet_forward.10} parent=5 // pred_fallthru
      _
  $region6: #{gnet_forward.10} parent=0 // loop_footer
    %s17 = sadd.s32 1, %s13
  $region7: #{gnet_forward.10} parent=0 // loop_footer_branch
    %12 = sbr.rel target = $region3
  $region8: #{gnet_forward.10} parent=0 // loop_exit
    _

// kernel: gnet_forward.12
$region0: #{gnet_forward.12}
  #allocation0 [shape = 'u32[]', space=smem, size = 0x4, offset = 0x4, fixed_abs, tag = 'smem constant byte address 0x4 - core index']
  #allocation1 [shape = 'u32[72,128]{1,0:T(1,128)}', space=vmem, size = 0x9000, scoped, tag = 'internal scratch']
  %s0 = inlined_call_operand.vmem [shape: bf16[2,14,16], index: 0, kind: input, shape index: {}]
  %s1 = inlined_call_operand.vmem [shape: bf16[2,14,14], index: 1, kind: output, shape index: {0}]
  %s2 = inlined_call_operand.vmem [shape: bf16[2,14,14], index: 2, kind: output, shape index: {1}]
  %3 = xla_tuple %s1, %s2
  %s4 = sld [smem:[#allocation0]]
  $region45: #{gnet_forward.12} parent=0
    _
  %s6 = ssub.s32 1, %s4
  %s7 = scalar_select 0, %s6, %s4
  loop: start=0, step=1, limit=4
  $region2: #{gnet_forward.12} parent=0 // loop_pre_header
    _
  $region3: #{gnet_forward.12} parent=0 // loop_header
    %s9 = sphi 0, %s13
    %p10 = scmp.ge.s32.totalorder %s9, 4
    %s19 = sphi 0, %s21
    %s22 = sphi 0, %s19
    %s23 = sphi 0, %s22
    %s39 = sphi 0, %s23
    %s45 = sphi 0, %s47
    %s48 = sphi 0, %s45
    %s49 = sphi 0, %s48
    %s65 = sphi 0, %s49
    %s71 = sphi 0, %s73
    %s74 = sphi 0, %s71
    %s75 = sphi 0, %s74
    %s91 = sphi 0, %s75
  $region4: #{gnet_forward.12} parent=0 // loop_header_branch
    %12 = sbr.rel (%p10) target = $region8
  $region5: #{gnet_forward.12} parent=0 // loop_body
    %s14 = ssub.s32 %s9, 1
    %s15 = ssub.s32 %s9, 2
    %s16 = sadd.s32 %s9, 1
    %s17 = ssub.s32 %s9, %s16
    %p18 = scmp.eq.s32.totalorder %s17, 0
    %s20 = sadd.s32 %s19, 1
    %s21 = scalar_select %p18, %s19, %s20
    %p24 = pneg %p18
    %p25 = scmp.eq.s32.totalorder %s9, 1
    %p26 = por %p24, %p25
    %p27 = scmp.ne.s32.totalorder %s19, %s22
    %p28 = scmp.eq.s32.totalorder %s9, 0
    %p29 = por %p27, %p28
    %p30 = scmp.ne.s32.totalorder %s19, %s22
    %p31 = scmp.eq.s32.totalorder %s14, 1
    %p32 = por %p30, %p31
    %p33 = scmp.ne.s32.totalorder %s22, %s23
    %p34 = scmp.eq.s32.totalorder %s14, 0
    %p35 = por %p33, %p34
    %p36 = scmp.ne.s32.totalorder %s22, %s23
    %p37 = scmp.eq.s32.totalorder %s15, 1
    %p38 = por %p36, %p37
    %p40 = scmp.ne.s32.totalorder %s23, %s39
    %p41 = scmp.eq.s32.totalorder %s15, 0
    %p42 = por %p40, %p41
    %s43 = ssub.s32 %s9, %s16
    %p44 = scmp.eq.s32.totalorder %s43, 0
    %s46 = sadd.s32 %s45, 1
    %s47 = scalar_select %p44, %s45, %s46
    %p50 = pneg %p44
    %p51 = scmp.eq.s32.totalorder %s9, 1
    %p52 = por %p50, %p51
    %p53 = scmp.ne.s32.totalorder %s45, %s48
    %p54 = scmp.eq.s32.totalorder %s9, 0
    %p55 = por %p53, %p54
    %p56 = scmp.ne.s32.totalorder %s45, %s48
    %p57 = scmp.eq.s32.totalorder %s14, 1
    %p58 = por %p56, %p57
    %p59 = scmp.ne.s32.totalorder %s48, %s49
    %p60 = scmp.eq.s32.totalorder %s14, 0
    %p61 = por %p59, %p60
    %p62 = scmp.ne.s32.totalorder %s48, %s49
    %p63 = scmp.eq.s32.totalorder %s15, 1
    %p64 = por %p62, %p63
    %p66 = scmp.ne.s32.totalorder %s49, %s65
    %p67 = scmp.eq.s32.totalorder %s15, 0
    %p68 = por %p66, %p67
    %s69 = ssub.s32 %s9, %s16
    %p70 = scmp.eq.s32.totalorder %s69, 0
    %s72 = sadd.s32 %s71, 1
    %s73 = scalar_select %p70, %s71, %s72
    %p76 = pneg %p70
    %p77 = scmp.eq.s32.totalorder %s9, 1
    %p78 = por %p76, %p77
    %p79 = scmp.ne.s32.totalorder %s71, %s74
    %p80 = scmp.eq.s32.totalorder %s9, 0
    %p81 = por %p79, %p80
    %p82 = scmp.ne.s32.totalorder %s71, %s74
    %p83 = scmp.eq.s32.totalorder %s14, 1
    %p84 = por %p82, %p83
    %p85 = scmp.ne.s32.totalorder %s74, %s75
    %p86 = scmp.eq.s32.totalorder %s14, 0
    %p87 = por %p85, %p86
    %p88 = scmp.ne.s32.totalorder %s74, %s75
    %p89 = scmp.eq.s32.totalorder %s15, 1
    %p90 = por %p88, %p89
    %p92 = scmp.ne.s32.totalorder %s75, %s91
    %p93 = scmp.eq.s32.totalorder %s15, 0
    %p94 = por %p92, %p93
    %p95 = scmp.le.s32.totalorder 1, %s9
    %p96 = scmp.lt.s32.totalorder %s9, 3
    %p97 = pnand %p95, %p96
    %p98 = pneg %p97
    // Predicated region
    $region9: #{gnet_forward.12} parent=5 // pred_check
      _
    $region10: #{gnet_forward.12} parent=5 // pred_check_branch
      %100 = sbr.rel (%p97) target = $region12
    $region11: #{gnet_forward.12} parent=5 // pred_region
      %s101 = ssub.s32 %s9, 1
    $region12: #{gnet_forward.12} parent=5 // pred_fallthru
      _
    %p102 = scmp.lt.s32.totalorder %s9, 2
    // Predicated region
    $region13: #{gnet_forward.12} parent=5 // pred_check
      %p103 = pneg %p102
    $region14: #{gnet_forward.12} parent=5 // pred_check_branch
      %105 = sbr.rel (%p103) target = $region16
    $region15: #{gnet_forward.12} parent=5 // pred_region
      // Predicated region
      $region17: #{gnet_forward.12} parent=15 // pred_check
        %p106 = pneg %p29
      $region18: #{gnet_forward.12} parent=15 // pred_check_branch
        %108 = sbr.rel (%p106) target = $region20
      $region19: #{gnet_forward.12} parent=15 // pred_region
        %p109 = scmp.lt.s32.totalorder %s9, 1
        %s110 = scalar_select %p109, %s9, 1
        %s111 = smul.addr %s110, 2
        %s112 = smul.addr %s111, 4
        %s113 = scalar_lea.vmem %s0, %s112
      $region20: #{gnet_forward.12} parent=15 // pred_fallthru
        _
    $region16: #{gnet_forward.12} parent=5 // pred_fallthru
      _
    %p114 = scmp.le.s32.totalorder 1, %s9
    %p115 = scmp.lt.s32.totalorder %s9, 3
    %p116 = pnand %p114, %p115
    %p117 = pneg %p116
    // Predicated region
    $region21: #{gnet_forward.12} parent=5 // pred_check
      _
    $region22: #{gnet_forward.12} parent=5 // pred_check_branch
      %119 = sbr.rel (%p116) target = $region24
    $region23: #{gnet_forward.12} parent=5 // pred_region
      %s120 = ssub.s32 %s9, 1
      %p121 = scmp.lt.s32.totalorder %s14, 1
      %s122 = scalar_select %p121, %s14, 1
      %s123 = smul.addr %s122, 2
      %s124 = smul.addr %s123, 4
      %s125 = scalar_lea.vmem %s0, %s124
      %p126 = pneg %p35
      %p127 = pneg %p32
      %p128 = pneg %p61
      %p129 = pneg %p58
      %p130 = scmp.lt.s32.totalorder %s14, 1
      %s131 = scalar_select %p130, %s14, 1
      %s132 = smul.addr %s131, 2
      %s133 = smul.addr %s132, 4
      %s134 = scalar_lea.vmem %s1, %s133
      %p135 = pneg %p87
      %p136 = pneg %p84
      %p137 = scmp.lt.s32.totalorder %s14, 1
      %s138 = scalar_select %p137, %s14, 1
      %s139 = smul.addr %s138, 2
      %s140 = smul.addr %s139, 4
      %s141 = scalar_lea.vmem %s2, %s140
      %p142 = scmp.lt.s32.totalorder %s14, 1
      %s143 = scalar_select %p142, %s14, 1
      %s144 = smul.addr %s143, 2
      %s145 = smul.addr %s144, 4
      %s146 = scalar_lea.vmem %s0, %s145
      %p147 = scmp.lt.s32.totalorder %s14, 1
      %s148 = scalar_select %p147, %s14, 1
      %s149 = smul.addr %s148, 2
      %s150 = smul.addr %s149, 4
      %s151 = scalar_lea.vmem %s1, %s150
      %p152 = scmp.lt.s32.totalorder %s14, 1
      %s153 = scalar_select %p152, %s14, 1
      %s154 = smul.addr %s153, 2
      %s155 = smul.addr %s154, 4
      %s156 = scalar_lea.vmem %s2, %s155
      %v158 = vld [vmem:[%s146] sm:$0xf]
      %v159 = vld [vmem:[%s146 + $0x4] sm:$0x7]
      %v162 = vunpack.c.l.b16 %v158
      %v163 = vunpack.c.l.b16 %v159
      %v164 = vpack.c.b16 %v163, %v162
      %vm165 = vcmask 130048
      %v167 = vsel %vm165, %v164, 0
      %169 = vmatpush.bf16.xpose.msra.mxu0 0
      %170 = vmatpush.bf16.xpose.msra.mxu0 0
      %171 = vmatpush.bf16.xpose.msra.mxu0 0
      %172 = vmatpush.bf16.xpose.msra.mxu0 0
      %173 = vmatpush.bf16.xpose.msra.mxu0 0
      %174 = vmatpush.bf16.xpose.msra.mxu0 0
      %175 = vmatpush.bf16.xpose.msra.mxu0 0
      %176 = vmatpush.bf16.xpose.msra.mxu0 %v167
      %177 = vmatmul.bf16.gmra.mxu0 %v167
      %v178 = vpop.f32.mrf.mxu0
      %v179 = vadd.f32 0.0, %v178
      %v180 = vpop.f32.mrf.mxu0
      %v181 = vadd.f32 0.0, %v180
      %182 = vdwg.mxu0
      %vm183 = vcmp.ne.f32.partialorder %v179, 0.0
      %vm184 = vcmp.ne.f32.partialorder %v181, 0.0
      %v185 = vsel %vm183, 1, 0
      %v186 = vsel %vm184, 1, 0
      %v187 = vcvt.s32.f32 %v185
      %v188 = vcvt.s32.f32 %v186
      %vm189 = vcmask 113664
      %v190 = vsel %vm189, %v187, 0.0
      %vm191 = vcmask 111616
      %v192 = vsel %vm191, %v188, 0.0
      %v193 = vadd.f32 %v190, %v192
      %v194 = vrot.slane %v193, 4
      %v195 = vadd.f32 %v193, %v194
      %v196 = vrot.slane %v195, 2
      %v197 = vadd.f32 %v195, %v196
      %v198 = vrot.slane %v197, 1
      %v199 = vadd.f32 %v197, %v198
      %v200 = vrcp.pop %v199
      %v201 = vmul.f32 %v187, %v200
      %v202 = vmul.f32 %v188, %v200
      %v203 = vpack.c.bf16 %v201, %v201
      %v204 = vpack.c.bf16 %v202, %v202
      %vm205 = vcmask 109568
      %206 = vst.msk [vmem:[%s151] sm:$0xf] %vm205, %v203
      %vm207 = vcmask 108544
      %208 = vst.msk [vmem:[%s151 + $0x4] sm:$0x7] %vm207, %v204
      %v209 = vpack.c.bf16 %v187, %v187
      %v210 = vpack.c.bf16 %v188, %v188
      %211 = vst.msk [vmem:[%s156] sm:$0xf] %vm205, %v209
      %212 = vst.msk [vmem:[%s156 + $0x4] sm:$0x7] %vm207, %v210
      %p213 = scmp.lt.s32.totalorder %s14, 1
      %s214 = scalar_select %p213, %s14, 1
      %s215 = smul.addr %s214, 2
      %s216 = smul.addr %s215, 4
      %s217 = scalar_lea.vmem %s1, %s216
      %p218 = scmp.lt.s32.totalorder %s14, 1
      %s219 = scalar_select %p218, %s14, 1
      %s220 = smul.addr %s219, 2
      %s221 = smul.addr %s220, 4
      %s222 = scalar_lea.vmem %s2, %s221
      // Predicated region
      $region25: #{gnet_forward.12} parent=23 // pred_check
        %p223 = pneg %p58
      $region26: #{gnet_forward.12} parent=23 // pred_check_branch
        %225 = sbr.rel (%p223) target = $region28
      $region27: #{gnet_forward.12} parent=23 // pred_region
        _
      $region28: #{gnet_forward.12} parent=23 // pred_fallthru
        _
      // Predicated region
      $region29: #{gnet_forward.12} parent=23 // pred_check
        %p226 = pneg %p84
      $region30: #{gnet_forward.12} parent=23 // pred_check_branch
        %228 = sbr.rel (%p226) target = $region32
      $region31: #{gnet_forward.12} parent=23 // pred_region
        _
      $region32: #{gnet_forward.12} parent=23 // pred_fallthru
        _
    $region24: #{gnet_forward.12} parent=5 // pred_fallthru
      _
    %p229 = scmp.le.s32.totalorder 2, %s9
    // Predicated region
    $region33: #{gnet_forward.12} parent=5 // pred_check
      %p230 = pneg %p229
    $region34: #{gnet_forward.12} parent=5 // pred_check_branch
      %232 = sbr.rel (%p230) target = $region36
    $region35: #{gnet_forward.12} parent=5 // pred_region
      %s233 = ssub.s32 %s9, 2
      // Predicated region
      $region37: #{gnet_forward.12} parent=35 // pred_check
        %p234 = pneg %p64
      $region38: #{gnet_forward.12} parent=35 // pred_check_branch
        %236 = sbr.rel (%p234) target = $region40
      $region39: #{gnet_forward.12} parent=35 // pred_region
        %p237 = scmp.lt.s32.totalorder %s15, 1
        %s238 = scalar_select %p237, %s15, 1
        %s239 = smul.addr %s238, 2
        %s240 = smul.addr %s239, 4
        %s241 = scalar_lea.vmem %s1, %s240
      $region40: #{gnet_forward.12} parent=35 // pred_fallthru
        _
      // Predicated region
      $region41: #{gnet_forward.12} parent=35 // pred_check
        %p242 = pneg %p90
      $region42: #{gnet_forward.12} parent=35 // pred_check_branch
        %244 = sbr.rel (%p242) target = $region44
      $region43: #{gnet_forward.12} parent=35 // pred_region
        %p245 = scmp.lt.s32.totalorder %s15, 1
        %s246 = scalar_select %p245, %s15, 1
        %s247 = smul.addr %s246, 2
        %s248 = smul.addr %s247, 4
        %s249 = scalar_lea.vmem %s2, %s248
      $region44: #{gnet_forward.12} parent=35 // pred_fallthru
        _
    $region36: #{gnet_forward.12} parent=5 // pred_fallthru
      _
  $region6: #{gnet_forward.12} parent=0 // loop_footer
    %s13 = sadd.s32 1, %s9
  $region7: #{gnet_forward.12} parent=0 // loop_footer_branch
    %8 = sbr.rel target = $region3
  $region8: #{gnet_forward.12} parent=0 // loop_exit
    _

// kernel: gnet_forward.13
$region0: #{gnet_forward.13}
  #allocation0 [shape = 'u32[]', space=smem, size = 0x4, offset = 0x4, fixed_abs, tag = 'smem constant byte address 0x4 - core index']
  #allocation1 [shape = 'u32[72,128]{1,0:T(1,128)}', space=vmem, size = 0x9000, scoped, tag = 'internal scratch']
  #allocation2 [shape = 'f32[1,1]{1,0:T(1,128)S(1)}', space=vmem, size = 0x200, scoped, tag = 'scoped memory for gnet_forward.13']
  %s0 = inlined_call_operand.vmem [shape: bf16[2,14,14], index: 0, kind: input, shape index: {}]
  %s1 = inlined_call_operand.vmem [shape: bf16[2,14,32], index: 1, kind: input, shape index: {}]
  %s2 = inlined_call_operand.vmem [shape: bf16[32,32], index: 2, kind: input, shape index: {}]
  %s3 = inlined_call_operand.vmem [shape: f32[1,32], index: 3, kind: input, shape index: {}]
  %s4 = inlined_call_operand.vmem [shape: f32[1,32], index: 4, kind: input, shape index: {}]
  %s5 = inlined_call_operand.<no memory space> [shape: f32[1,1], index: 5, kind: input, shape index: {}]
  %s6 = inlined_call_operand.vmem [shape: bf16[2,14,32], index: 6, kind: output, shape index: {0}]
  %s7 = inlined_call_operand.vmem [shape: f32[2,1,14], index: 7, kind: output, shape index: {1}]
  %8 = xla_tuple %s6, %s7
  %s9 = sld [smem:[#allocation0]]
  $region65: #{gnet_forward.13} parent=0
    _
  %s11 = ssub.s32 1, %s9
  %s12 = scalar_select 0, %s11, %s9
  %v13 = vstv %s5
  %14 = vst [vmem:[#allocation2] sm:$0x1] %v13
  loop: start=0, step=1, limit=4
  $region2: #{gnet_forward.13} parent=0 // loop_pre_header
    _
  $region3: #{gnet_forward.13} parent=0 // loop_header
    %s16 = sphi 0, %s20
    %p17 = scmp.ge.s32.totalorder %s16, 4
    %s26 = sphi 0, %s28
    %s29 = sphi 0, %s26
    %s30 = sphi 0, %s29
    %s46 = sphi 0, %s30
    %s52 = sphi 0, %s54
    %s55 = sphi 0, %s52
    %s56 = sphi 0, %s55
    %s72 = sphi 0, %s56
    %s76 = sphi 0, %s76
    %s78 = sphi 0, %s76
    %s79 = sphi 0, %s78
    %s93 = sphi 0, %s79
    %s97 = sphi 0, %s97
    %s99 = sphi 0, %s97
    %s100 = sphi 0, %s99
    %s114 = sphi 0, %s100
    %s118 = sphi 0, %s118
    %s120 = sphi 0, %s118
    %s121 = sphi 0, %s120
    %s135 = sphi 0, %s121
    %s139 = sphi 0, %s139
    %s141 = sphi 0, %s139
    %s142 = sphi 0, %s141
    %s156 = sphi 0, %s142
    %s162 = sphi 0, %s164
    %s165 = sphi 0, %s162
    %s166 = sphi 0, %s165
    %s182 = sphi 0, %s166
    %s188 = sphi 0, %s190
    %s191 = sphi 0, %s188
    %s192 = sphi 0, %s191
    %s208 = sphi 0, %s192
  $region4: #{gnet_forward.13} parent=0 // loop_header_branch
    %19 = sbr.rel (%p17) target = $region8
  $region5: #{gnet_forward.13} parent=0 // loop_body
    %s21 = ssub.s32 %s16, 1
    %s22 = ssub.s32 %s16, 2
    %s23 = sadd.s32 %s16, 1
    %s24 = ssub.s32 %s16, %s23
    %p25 = scmp.eq.s32.totalorder %s24, 0
    %s27 = sadd.s32 %s26, 1
    %s28 = scalar_select %p25, %s26, %s27
    %p31 = pneg %p25
    %p32 = scmp.eq.s32.totalorder %s16, 1
    %p33 = por %p31, %p32
    %p34 = scmp.ne.s32.totalorder %s26, %s29
    %p35 = scmp.eq.s32.totalorder %s16, 0
    %p36 = por %p34, %p35
    %p37 = scmp.ne.s32.totalorder %s26, %s29
    %p38 = scmp.eq.s32.totalorder %s21, 1
    %p39 = por %p37, %p38
    %p40 = scmp.ne.s32.totalorder %s29, %s30
    %p41 = scmp.eq.s32.totalorder %s21, 0
    %p42 = por %p40, %p41
    %p43 = scmp.ne.s32.totalorder %s29, %s30
    %p44 = scmp.eq.s32.totalorder %s22, 1
    %p45 = por %p43, %p44
    %p47 = scmp.ne.s32.totalorder %s30, %s46
    %p48 = scmp.eq.s32.totalorder %s22, 0
    %p49 = por %p47, %p48
    %s50 = ssub.s32 %s16, %s23
    %p51 = scmp.eq.s32.totalorder %s50, 0
    %s53 = sadd.s32 %s52, 1
    %s54 = scalar_select %p51, %s52, %s53
    %p57 = pneg %p51
    %p58 = scmp.eq.s32.totalorder %s16, 1
    %p59 = por %p57, %p58
    %p60 = scmp.ne.s32.totalorder %s52, %s55
    %p61 = scmp.eq.s32.totalorder %s16, 0
    %p62 = por %p60, %p61
    %p63 = scmp.ne.s32.totalorder %s52, %s55
    %p64 = scmp.eq.s32.totalorder %s21, 1
    %p65 = por %p63, %p64
    %p66 = scmp.ne.s32.totalorder %s55, %s56
    %p67 = scmp.eq.s32.totalorder %s21, 0
    %p68 = por %p66, %p67
    %p69 = scmp.ne.s32.totalorder %s55, %s56
    %p70 = scmp.eq.s32.totalorder %s22, 1
    %p71 = por %p69, %p70
    %p73 = scmp.ne.s32.totalorder %s56, %s72
    %p74 = scmp.eq.s32.totalorder %s22, 0
    %p75 = por %p73, %p74
    %s77 = sadd.s32 %s76, 1
    %p80 = scmp.eq.s32.totalorder %s16, 1
    %p81 = scmp.ne.s32.totalorder %s76, %s78
    %p82 = scmp.eq.s32.totalorder %s16, 0
    %p83 = por %p81, %p82
    %p84 = scmp.ne.s32.totalorder %s76, %s78
    %p85 = scmp.eq.s32.totalorder %s21, 1
    %p86 = por %p84, %p85
    %p87 = scmp.ne.s32.totalorder %s78, %s79
    %p88 = scmp.eq.s32.totalorder %s21, 0
    %p89 = por %p87, %p88
    %p90 = scmp.ne.s32.totalorder %s78, %s79
    %p91 = scmp.eq.s32.totalorder %s22, 1
    %p92 = por %p90, %p91
    %p94 = scmp.ne.s32.totalorder %s79, %s93
    %p95 = scmp.eq.s32.totalorder %s22, 0
    %p96 = por %p94, %p95
    %s98 = sadd.s32 %s97, 1
    %p101 = scmp.eq.s32.totalorder %s16, 1
    %p102 = scmp.ne.s32.totalorder %s97, %s99
    %p103 = scmp.eq.s32.totalorder %s16, 0
    %p104 = por %p102, %p103
    %p105 = scmp.ne.s32.totalorder %s97, %s99
    %p106 = scmp.eq.s32.totalorder %s21, 1
    %p107 = por %p105, %p106
    %p108 = scmp.ne.s32.totalorder %s99, %s100
    %p109 = scmp.eq.s32.totalorder %s21, 0
    %p110 = por %p108, %p109
    %p111 = scmp.ne.s32.totalorder %s99, %s100
    %p112 = scmp.eq.s32.totalorder %s22, 1
    %p113 = por %p111, %p112
    %p115 = scmp.ne.s32.totalorder %s100, %s114
    %p116 = scmp.eq.s32.totalorder %s22, 0
    %p117 = por %p115, %p116
    %s119 = sadd.s32 %s118, 1
    %p122 = scmp.eq.s32.totalorder %s16, 1
    %p123 = scmp.ne.s32.totalorder %s118, %s120
    %p124 = scmp.eq.s32.totalorder %s16, 0
    %p125 = por %p123, %p124
    %p126 = scmp.ne.s32.totalorder %s118, %s120
    %p127 = scmp.eq.s32.totalorder %s21, 1
    %p128 = por %p126, %p127
    %p129 = scmp.ne.s32.totalorder %s120, %s121
    %p130 = scmp.eq.s32.totalorder %s21, 0
    %p131 = por %p129, %p130
    %p132 = scmp.ne.s32.totalorder %s120, %s121
    %p133 = scmp.eq.s32.totalorder %s22, 1
    %p134 = por %p132, %p133
    %p136 = scmp.ne.s32.totalorder %s121, %s135
    %p137 = scmp.eq.s32.totalorder %s22, 0
    %p138 = por %p136, %p137
    %s140 = sadd.s32 %s139, 1
    %p143 = scmp.eq.s32.totalorder %s16, 1
    %p144 = scmp.ne.s32.totalorder %s139, %s141
    %p145 = scmp.eq.s32.totalorder %s16, 0
    %p146 = por %p144, %p145
    %p147 = scmp.ne.s32.totalorder %s139, %s141
    %p148 = scmp.eq.s32.totalorder %s21, 1
    %p149 = por %p147, %p148
    %p150 = scmp.ne.s32.totalorder %s141, %s142
    %p151 = scmp.eq.s32.totalorder %s21, 0
    %p152 = por %p150, %p151
    %p153 = scmp.ne.s32.totalorder %s141, %s142
    %p154 = scmp.eq.s32.totalorder %s22, 1
    %p155 = por %p153, %p154
    %p157 = scmp.ne.s32.totalorder %s142, %s156
    %p158 = scmp.eq.s32.totalorder %s22, 0
    %p159 = por %p157, %p158
    %s160 = ssub.s32 %s16, %s23
    %p161 = scmp.eq.s32.totalorder %s160, 0
    %s163 = sadd.s32 %s162, 1
    %s164 = scalar_select %p161, %s162, %s163
    %p167 = pneg %p161
    %p168 = scmp.eq.s32.totalorder %s16, 1
    %p169 = por %p167, %p168
    %p170 = scmp.ne.s32.totalorder %s162, %s165
    %p171 = scmp.eq.s32.totalorder %s16, 0
    %p172 = por %p170, %p171
    %p173 = scmp.ne.s32.totalorder %s162, %s165
    %p174 = scmp.eq.s32.totalorder %s21, 1
    %p175 = por %p173, %p174
    %p176 = scmp.ne.s32.totalorder %s165, %s166
    %p177 = scmp.eq.s32.totalorder %s21, 0
    %p178 = por %p176, %p177
    %p179 = scmp.ne.s32.totalorder %s165, %s166
    %p180 = scmp.eq.s32.totalorder %s22, 1
    %p181 = por %p179, %p180
    %p183 = scmp.ne.s32.totalorder %s166, %s182
    %p184 = scmp.eq.s32.totalorder %s22, 0
    %p185 = por %p183, %p184
    %s186 = ssub.s32 %s16, %s23
    %p187 = scmp.eq.s32.totalorder %s186, 0
    %s189 = sadd.s32 %s188, 1
    %s190 = scalar_select %p187, %s188, %s189
    %p193 = pneg %p187
    %p194 = scmp.eq.s32.totalorder %s16, 1
    %p195 = por %p193, %p194
    %p196 = scmp.ne.s32.totalorder %s188, %s191
    %p197 = scmp.eq.s32.totalorder %s16, 0
    %p198 = por %p196, %p197
    %p199 = scmp.ne.s32.totalorder %s188, %s191
    %p200 = scmp.eq.s32.totalorder %s21, 1
    %p201 = por %p199, %p200
    %p202 = scmp.ne.s32.totalorder %s191, %s192
    %p203 = scmp.eq.s32.totalorder %s21, 0
    %p204 = por %p202, %p203
    %p205 = scmp.ne.s32.totalorder %s191, %s192
    %p206 = scmp.eq.s32.totalorder %s22, 1
    %p207 = por %p205, %p206
    %p209 = scmp.ne.s32.totalorder %s192, %s208
    %p210 = scmp.eq.s32.totalorder %s22, 0
    %p211 = por %p209, %p210
    %p212 = scmp.le.s32.totalorder 1, %s16
    %p213 = scmp.lt.s32.totalorder %s16, 3
    %p214 = pnand %p212, %p213
    %p215 = pneg %p214
    // Predicated region
    $region9: #{gnet_forward.13} parent=5 // pred_check
      _
    $region10: #{gnet_forward.13} parent=5 // pred_check_branch
      %217 = sbr.rel (%p214) target = $region12
    $region11: #{gnet_forward.13} parent=5 // pred_region
      %s218 = ssub.s32 %s16, 1
      // Predicated region
      $region13: #{gnet_forward.13} parent=11 // pred_check
        %p219 = pneg %p89
      $region14: #{gnet_forward.13} parent=11 // pred_check_branch
        %221 = sbr.rel (%p219) target = $region16
      $region15: #{gnet_forward.13} parent=11 // pred_region
        _
      $region16: #{gnet_forward.13} parent=11 // pred_fallthru
        _
      // Predicated region
      $region17: #{gnet_forward.13} parent=11 // pred_check
        %p222 = pneg %p110
      $region18: #{gnet_forward.13} parent=11 // pred_check_branch
        %224 = sbr.rel (%p222) target = $region20
      $region19: #{gnet_forward.13} parent=11 // pred_region
        _
      $region20: #{gnet_forward.13} parent=11 // pred_fallthru
        _
      // Predicated region
      $region21: #{gnet_forward.13} parent=11 // pred_check
        %p225 = pneg %p131
      $region22: #{gnet_forward.13} parent=11 // pred_check_branch
        %227 = sbr.rel (%p225) target = $region24
      $region23: #{gnet_forward.13} parent=11 // pred_region
        _
      $region24: #{gnet_forward.13} parent=11 // pred_fallthru
        _
      // Predicated region
      $region25: #{gnet_forward.13} parent=11 // pred_check
        %p228 = pneg %p152
      $region26: #{gnet_forward.13} parent=11 // pred_check_branch
        %230 = sbr.rel (%p228) target = $region28
      $region27: #{gnet_forward.13} parent=11 // pred_region
        _
      $region28: #{gnet_forward.13} parent=11 // pred_fallthru
        _
    $region12: #{gnet_forward.13} parent=5 // pred_fallthru
      _
    %p231 = scmp.lt.s32.totalorder %s16, 2
    // Predicated region
    $region29: #{gnet_forward.13} parent=5 // pred_check
      %p232 = pneg %p231
    $region30: #{gnet_forward.13} parent=5 // pred_check_branch
      %234 = sbr.rel (%p232) target = $region32
    $region31: #{gnet_forward.13} parent=5 // pred_region
      // Predicated region
      $region33: #{gnet_forward.13} parent=31 // pred_check
        %p235 = pneg %p36
      $region34: #{gnet_forward.13} parent=31 // pred_check_branch
        %237 = sbr.rel (%p235) target = $region36
      $region35: #{gnet_forward.13} parent=31 // pred_region
        %p238 = scmp.lt.s32.totalorder %s16, 1
        %s239 = scalar_select %p238, %s16, 1
        %s240 = smul.addr %s239, 2
        %s241 = smul.addr %s240, 4
        %s242 = scalar_lea.vmem %s0, %s241
      $region36: #{gnet_forward.13} parent=31 // pred_fallthru
        _
      // Predicated region
      $region37: #{gnet_forward.13} parent=31 // pred_check
        %p243 = pneg %p62
      $region38: #{gnet_forward.13} parent=31 // pred_check_branch
        %245 = sbr.rel (%p243) target = $region40
      $region39: #{gnet_forward.13} parent=31 // pred_region
        %p246 = scmp.lt.s32.totalorder %s16, 1
        %s247 = scalar_select %p246, %s16, 1
        %s248 = smul.addr %s247, 2
        %s249 = smul.addr %s248, 4
        %s250 = scalar_lea.vmem %s1, %s249
      $region40: #{gnet_forward.13} parent=31 // pred_fallthru
        _
    $region32: #{gnet_forward.13} parent=5 // pred_fallthru
      _
    %p251 = scmp.le.s32.totalorder 1, %s16
    %p252 = scmp.lt.s32.totalorder %s16, 3
    %p253 = pnand %p251, %p252
    %p254 = pneg %p253
    // Predicated region
    $region41: #{gnet_forward.13} parent=5 // pred_check
      _
    $region42: #{gnet_forward.13} parent=5 // pred_check_branch
      %256 = sbr.rel (%p253) target = $region44
    $region43: #{gnet_forward.13} parent=5 // pred_region
      %s257 = ssub.s32 %s16, 1
      %p258 = scmp.lt.s32.totalorder %s21, 1
      %s259 = scalar_select %p258, %s21, 1
      %s260 = smul.addr %s259, 2
      %s261 = smul.addr %s260, 4
      %s262 = scalar_lea.vmem %s0, %s261
      %p263 = pneg %p42
      %p264 = pneg %p39
      %p265 = scmp.lt.s32.totalorder %s21, 1
      %s266 = scalar_select %p265, %s21, 1
      %s267 = smul.addr %s266, 2
      %s268 = smul.addr %s267, 4
      %s269 = scalar_lea.vmem %s1, %s268
      %p270 = pneg %p68
      %p271 = pneg %p65
      %p272 = pneg %p89
      %p273 = pneg %p86
      %p274 = pneg %p110
      %p275 = pneg %p107
      %p276 = pneg %p131
      %p277 = pneg %p128
      %p278 = pneg %p152
      %p279 = pneg %p149
      %p280 = pneg %p178
      %p281 = pneg %p175
      %p282 = scmp.lt.s32.totalorder %s21, 1
      %s283 = scalar_select %p282, %s21, 1
      %s284 = smul.addr %s283, 2
      %s285 = smul.addr %s284, 4
      %s286 = scalar_lea.vmem %s6, %s285
      %p287 = pneg %p204
      %p288 = pneg %p201
      %p289 = scmp.lt.s32.totalorder %s21, 1
      %s290 = scalar_select %p289, %s21, 1
      %s291 = scalar_lea.vmem %s7, %s290
      %p292 = scmp.lt.s32.totalorder %s21, 1
      %s293 = scalar_select %p292, %s21, 1
      %s294 = smul.addr %s293, 2
      %s295 = smul.addr %s294, 4
      %s296 = scalar_lea.vmem %s0, %s295
      %p297 = scmp.lt.s32.totalorder %s21, 1
      %s298 = scalar_select %p297, %s21, 1
      %s299 = smul.addr %s298, 2
      %s300 = smul.addr %s299, 4
      %s301 = scalar_lea.vmem %s1, %s300
      %p302 = scmp.lt.s32.totalorder %s21, 1
      %s303 = scalar_select %p302, %s21, 1
      %s304 = smul.addr %s303, 2
      %s305 = smul.addr %s304, 4
      %s306 = scalar_lea.vmem %s6, %s305
      %p307 = scmp.lt.s32.totalorder %s21, 1
      %s308 = scalar_select %p307, %s21, 1
      %s309 = scalar_lea.vmem %s7, %s308
      %v311 = vld [vmem:[%s296] sm:$0xf]
      %v312 = vld [vmem:[%s296 + $0x4] sm:$0x7]
      %v313 = vld [vmem:[%s301] sm:$0xf]
      %v314 = vld [vmem:[%s301 + $0x4] sm:$0x7]
      %v317 = vunpack.c.l.b16 %v311
      %v318 = vunpack.c.l.b16 %v312
      %v319 = vpack.c.b16 %v318, %v317
      %v322 = vunpack.c.l.b16 %v313
      %v323 = vunpack.c.l.b16 %v314
      %v324 = vpack.c.b16 %v323, %v322
      %vm325 = vcmask 113664
      %v327 = vsel %vm325, %v319, 0
      %vm329 = vcmask 1046528
      %v331 = vsel %vm329, %v324, 0
      %333 = vmatpush.bf16.msra.mxu0 0
      %334 = vmatpush.bf16.msra.mxu0 0
      %335 = vmatpush.bf16.msra.mxu0 0
      %336 = vmatpush.bf16.msra.mxu0 0
      %337 = vmatpush.bf16.msra.mxu0 0
      %338 = vmatpush.bf16.msra.mxu0 0
      %339 = vmatpush.bf16.msra.mxu0 0
      %340 = vmatpush.bf16.msra.mxu0 %v331
      %341 = vmatmul.bf16.gmra.mxu0 %v327
      %v342 = vpop.f32.mrf.mxu0
      %v343 = vadd.f32 0.0, %v342
      %v344 = vpop.f32.mrf.mxu0
      %v345 = vadd.f32 0.0, %v344
      %346 = vdwg.mxu0
      %v347 = vpack.c.bf16 %v345, %v343
      %v348 = vld [vmem:[%s2] sm:$0xf]
      %v349 = vld [vmem:[%s2 + $0x4] sm:$0xf]
      %v350 = vld [vmem:[%s2 + $0x8] sm:$0xf]
      %v351 = vld [vmem:[%s2 + $0xc] sm:$0xf]
      %v352 = vld [vmem:[%s3] sm:$0x1]
      %v354 = vperm.slane %v352, 0
      %v360 = vunpack.c.l.b16 %v348
      %v361 = vunpack.c.l.b16 %v349
      %v362 = vunpack.c.l.b16 %v350
      %v363 = vunpack.c.l.b16 %v351
      %v364 = vpack.c.b16 %v361, %v360
      %v365 = vpack.c.b16 %v363, %v362
      %vm368 = vcmask 261120
      %v370 = vsel %vm368, %v347, 0
      %372 = vmatpush.bf16.msra.mxu0 0
      %373 = vmatpush.bf16.msra.mxu0 0
      %374 = vmatpush.bf16.msra.mxu0 0
      %375 = vmatpush.bf16.msra.mxu0 0
      %376 = vmatpush.bf16.msra.mxu0 0
      %377 = vmatpush.bf16.msra.mxu0 0
      %378 = vmatpush.bf16.msra.mxu0 %v365
      %379 = vmatpush.bf16.msra.mxu0 %v364
      %380 = vmatmul.bf16.gmra.mxu0 %v370
      %v381 = vpop.f32.mrf.mxu0
      %v382 = vadd.f32 %v354, %v381
      %v383 = vpop.f32.mrf.mxu0
      %v384 = vadd.f32 %v354, %v383
      %385 = vdwg.mxu0
      %vm386 = vcmp.gt.f32.partialorder %v382, 0.0
      %vm387 = vcmp.gt.f32.partialorder %v384, 0.0
      %v388 = vmul.f32 %v382, 1.442695
      %v389 = vpow.pop %v388
      %v390 = vmul.f32 %v384, 1.442695
      %v391 = vpow.pop %v390
      %v392 = vsub.f32 %v389, 1.0
      %v393 = vsub.f32 %v391, 1.0
      %v394 = vsel %vm386, %v382, %v392
      %v395 = vsel %vm387, %v384, %v393
      %v396 = vpack.c.bf16 %v394, %v394
      %v397 = vpack.c.bf16 %v395, %v395
      %vm398 = vcmask 257024
      %399 = vst.msk [vmem:[%s306] sm:$0xf] %vm398, %v396
      %vm400 = vcmask 256000
      %401 = vst.msk [vmem:[%s306 + $0x4] sm:$0x7] %vm400, %v397
      %v402 = vld [vmem:[%s4] sm:$0x1]
      %v403 = vld [vmem:[#allocation2] sm:$0x1]
      %405 = vset.pattern.permute.xlu0 0
      %406 = vperm.xlu0 %405, %v403
      %v407 = vpop.permute.xlu0 %406
      %v409 = vperm.slane %v407, 0
      %v411 = vsel %vm368, %v402, 0
      %v414 = vsel %vm368, %v394, 0
      %v417 = vsel %vm368, %v395, 0
      %419 = vmatpush.xpose.msra.mxu0 0.0
      %420 = vmatpush.xpose.msra.mxu0 0.0
      %421 = vmatpush.xpose.msra.mxu0 0.0
      %422 = vmatpush.xpose.msra.mxu0 0.0
      %423 = vmatpush.xpose.msra.mxu0 0.0
      %424 = vmatpush.xpose.msra.mxu0 0.0
      %425 = vmatpush.xpose.msra.mxu0 0.0
      %426 = vmatpush.xpose.msra.mxu0 0.0
      %427 = vmatpush.xpose.msra.mxu0 0.0
      %428 = vmatpush.xpose.msra.mxu0 0.0
      %429 = vmatpush.xpose.msra.mxu0 0.0
      %430 = vmatpush.xpose.msra.mxu0 0.0
      %431 = vmatpush.xpose.msra.mxu0 0.0
      %432 = vmatpush.xpose.msra.mxu0 0.0
      %433 = vmatpush.xpose.msra.mxu0 %v417
      %434 = vmatpush.xpose.msra.mxu0 %v414
      %435 = vmatmul.f32.gmra.mxu0 %v411
      %v436 = vpop.f32.mrf.mxu0
      %v437 = vadd.f32 %v409, %v436
      %438 = vdwg.mxu0
      %v439 = vsub.f32 0.0, %v437
      %v440 = vmul.f32 %v439, 1.442695
      %v441 = vpow.pop %v440
      %v442 = vadd.f32 %v441, 1.0
      %v443 = vrcp.pop %v442
      %v444 = vmul.f32 %v442, %v443
      %v445 = vsub.f32 1.0, %v444
      %v446 = vmul.f32 %v443, %v445
      %v447 = vadd.f32 %v443, %v446
      %vm448 = vweird.f32 %v442
      %vm449 = vweird.f32 %v443
      %vm450 = vmor %vm448, %vm449
      %v451 = vsel %vm450, %v443, %v447
      %v452 = vand.u32 2147483647, %v442
      %vm453 = vcmp.eq.f32.partialorder %v452, 8.507059e+37
      %v454 = vand.u32 %v442, 2147483648
      %v455 = vor.u32 1.1754944e-38, %v454
      %v456 = vsel %vm453, %v455, %v451
      %v457 = vmul.f32 1.0, %v456
      %vm458 = vcmask 106496
      %459 = vst.msk [vmem:[%s309] sm:$0x1] %vm458, %v457
      %p460 = scmp.lt.s32.totalorder %s21, 1
      %s461 = scalar_select %p460, %s21, 1
      %s462 = smul.addr %s461, 2
      %s463 = smul.addr %s462, 4
      %s464 = scalar_lea.vmem %s6, %s463
      %p465 = scmp.lt.s32.totalorder %s21, 1
      %s466 = scalar_select %p465, %s21, 1
      %s467 = scalar_lea.vmem %s7, %s466
      // Predicated region
      $region45: #{gnet_forward.13} parent=43 // pred_check
        %p468 = pneg %p175
      $region46: #{gnet_forward.13} parent=43 // pred_check_branch
        %470 = sbr.rel (%p468) target = $region48
      $region47: #{gnet_forward.13} parent=43 // pred_region
        _
      $region48: #{gnet_forward.13} parent=43 // pred_fallthru
        _
      // Predicated region
      $region49: #{gnet_forward.13} parent=43 // pred_check
        %p471 = pneg %p201
      $region50: #{gnet_forward.13} parent=43 // pred_check_branch
        %473 = sbr.rel (%p471) target = $region52
      $region51: #{gnet_forward.13} parent=43 // pred_region
        _
      $region52: #{gnet_forward.13} parent=43 // pred_fallthru
        _
    $region44: #{gnet_forward.13} parent=5 // pred_fallthru
      _
    %p474 = scmp.le.s32.totalorder 2, %s16
    // Predicated region
    $region53: #{gnet_forward.13} parent=5 // pred_check
      %p475 = pneg %p474
    $region54: #{gnet_forward.13} parent=5 // pred_check_branch
      %477 = sbr.rel (%p475) target = $region56
    $region55: #{gnet_forward.13} parent=5 // pred_region
      %s478 = ssub.s32 %s16, 2
      // Predicated region
      $region57: #{gnet_forward.13} parent=55 // pred_check
        %p479 = pneg %p181
      $region58: #{gnet_forward.13} parent=55 // pred_check_branch
        %481 = sbr.rel (%p479) target = $region60
      $region59: #{gnet_forward.13} parent=55 // pred_region
        %p482 = scmp.lt.s32.totalorder %s22, 1
        %s483 = scalar_select %p482, %s22, 1
        %s484 = smul.addr %s483, 2
        %s485 = smul.addr %s484, 4
        %s486 = scalar_lea.vmem %s6, %s485
      $region60: #{gnet_forward.13} parent=55 // pred_fallthru
        _
      // Predicated region
      $region61: #{gnet_forward.13} parent=55 // pred_check
        %p487 = pneg %p207
      $region62: #{gnet_forward.13} parent=55 // pred_check_branch
        %489 = sbr.rel (%p487) target = $region64
      $region63: #{gnet_forward.13} parent=55 // pred_region
        %p490 = scmp.lt.s32.totalorder %s22, 1
        %s491 = scalar_select %p490, %s22, 1
        %s492 = scalar_lea.vmem %s7, %s491
      $region64: #{gnet_forward.13} parent=55 // pred_fallthru
        _
    $region56: #{gnet_forward.13} parent=5 // pred_fallthru
      _
  $region6: #{gnet_forward.13} parent=0 // loop_footer
    %s20 = sadd.s32 1, %s16
  $region7: #{gnet_forward.13} parent=0 // loop_footer_branch
    %15 = sbr.rel target = $region3
  $region8: #{gnet_forward.13} parent=0 // loop_exit
    _

// kernel: gnet_forward.15
$region0: #{gnet_forward.15}
  #allocation0 [shape = 'u32[]', space=smem, size = 0x4, offset = 0x4, fixed_abs, tag = 'smem constant byte address 0x4 - core index']
  #allocation1 [shape = 'u32[72,128]{1,0:T(1,128)}', space=vmem, size = 0x9000, scoped, tag = 'internal scratch']
  %s0 = inlined_call_operand.vmem [shape: bf16[2,9,9], index: 0, kind: input, shape index: {}]
  %s1 = inlined_call_operand.vmem [shape: bf16[2,9,32], index: 1, kind: input, shape index: {}]
  %s2 = inlined_call_operand.vmem [shape: bf16[32,32], index: 2, kind: input, shape index: {}]
  %s3 = inlined_call_operand.vmem [shape: f32[1,32], index: 3, kind: input, shape index: {}]
  %s4 = inlined_call_operand.vmem [shape: bf16[2,9,32], index: 4, kind: output, shape index: {}]
  %s5 = sld [smem:[#allocation0]]
  $region49: #{gnet_forward.15} parent=0
    _
  %s7 = ssub.s32 1, %s5
  %s8 = scalar_select 0, %s7, %s5
  loop: start=0, step=1, limit=4
  $region2: #{gnet_forward.15} parent=0 // loop_pre_header
    _
  $region3: #{gnet_forward.15} parent=0 // loop_header
    %s10 = sphi 0, %s14
    %p11 = scmp.ge.s32.totalorder %s10, 4
    %s20 = sphi 0, %s22
    %s23 = sphi 0, %s20
    %s24 = sphi 0, %s23
    %s40 = sphi 0, %s24
    %s46 = sphi 0, %s48
    %s49 = sphi 0, %s46
    %s50 = sphi 0, %s49
    %s66 = sphi 0, %s50
    %s70 = sphi 0, %s70
    %s72 = sphi 0, %s70
    %s73 = sphi 0, %s72
    %s87 = sphi 0, %s73
    %s91 = sphi 0, %s91
    %s93 = sphi 0, %s91
    %s94 = sphi 0, %s93
    %s108 = sphi 0, %s94
    %s114 = sphi 0, %s116
    %s117 = sphi 0, %s114
    %s118 = sphi 0, %s117
    %s134 = sphi 0, %s118
  $region4: #{gnet_forward.15} parent=0 // loop_header_branch
    %13 = sbr.rel (%p11) target = $region8
  $region5: #{gnet_forward.15} parent=0 // loop_body
    %s15 = ssub.s32 %s10, 1
    %s16 = ssub.s32 %s10, 2
    %s17 = sadd.s32 %s10, 1
    %s18 = ssub.s32 %s10, %s17
    %p19 = scmp.eq.s32.totalorder %s18, 0
    %s21 = sadd.s32 %s20, 1
    %s22 = scalar_select %p19, %s20, %s21
    %p25 = pneg %p19
    %p26 = scmp.eq.s32.totalorder %s10, 1
    %p27 = por %p25, %p26
    %p28 = scmp.ne.s32.totalorder %s20, %s23
    %p29 = scmp.eq.s32.totalorder %s10, 0
    %p30 = por %p28, %p29
    %p31 = scmp.ne.s32.totalorder %s20, %s23
    %p32 = scmp.eq.s32.totalorder %s15, 1
    %p33 = por %p31, %p32
    %p34 = scmp.ne.s32.totalorder %s23, %s24
    %p35 = scmp.eq.s32.totalorder %s15, 0
    %p36 = por %p34, %p35
    %p37 = scmp.ne.s32.totalorder %s23, %s24
    %p38 = scmp.eq.s32.totalorder %s16, 1
    %p39 = por %p37, %p38
    %p41 = scmp.ne.s32.totalorder %s24, %s40
    %p42 = scmp.eq.s32.totalorder %s16, 0
    %p43 = por %p41, %p42
    %s44 = ssub.s32 %s10, %s17
    %p45 = scmp.eq.s32.totalorder %s44, 0
    %s47 = sadd.s32 %s46, 1
    %s48 = scalar_select %p45, %s46, %s47
    %p51 = pneg %p45
    %p52 = scmp.eq.s32.totalorder %s10, 1
    %p53 = por %p51, %p52
    %p54 = scmp.ne.s32.totalorder %s46, %s49
    %p55 = scmp.eq.s32.totalorder %s10, 0
    %p56 = por %p54, %p55
    %p57 = scmp.ne.s32.totalorder %s46, %s49
    %p58 = scmp.eq.s32.totalorder %s15, 1
    %p59 = por %p57, %p58
    %p60 = scmp.ne.s32.totalorder %s49, %s50
    %p61 = scmp.eq.s32.totalorder %s15, 0
    %p62 = por %p60, %p61
    %p63 = scmp.ne.s32.totalorder %s49, %s50
    %p64 = scmp.eq.s32.totalorder %s16, 1
    %p65 = por %p63, %p64
    %p67 = scmp.ne.s32.totalorder %s50, %s66
    %p68 = scmp.eq.s32.totalorder %s16, 0
    %p69 = por %p67, %p68
    %s71 = sadd.s32 %s70, 1
    %p74 = scmp.eq.s32.totalorder %s10, 1
    %p75 = scmp.ne.s32.totalorder %s70, %s72
    %p76 = scmp.eq.s32.totalorder %s10, 0
    %p77 = por %p75, %p76
    %p78 = scmp.ne.s32.totalorder %s70, %s72
    %p79 = scmp.eq.s32.totalorder %s15, 1
    %p80 = por %p78, %p79
    %p81 = scmp.ne.s32.totalorder %s72, %s73
    %p82 = scmp.eq.s32.totalorder %s15, 0
    %p83 = por %p81, %p82
    %p84 = scmp.ne.s32.totalorder %s72, %s73
    %p85 = scmp.eq.s32.totalorder %s16, 1
    %p86 = por %p84, %p85
    %p88 = scmp.ne.s32.totalorder %s73, %s87
    %p89 = scmp.eq.s32.totalorder %s16, 0
    %p90 = por %p88, %p89
    %s92 = sadd.s32 %s91, 1
    %p95 = scmp.eq.s32.totalorder %s10, 1
    %p96 = scmp.ne.s32.totalorder %s91, %s93
    %p97 = scmp.eq.s32.totalorder %s10, 0
    %p98 = por %p96, %p97
    %p99 = scmp.ne.s32.totalorder %s91, %s93
    %p100 = scmp.eq.s32.totalorder %s15, 1
    %p101 = por %p99, %p100
    %p102 = scmp.ne.s32.totalorder %s93, %s94
    %p103 = scmp.eq.s32.totalorder %s15, 0
    %p104 = por %p102, %p103
    %p105 = scmp.ne.s32.totalorder %s93, %s94
    %p106 = scmp.eq.s32.totalorder %s16, 1
    %p107 = por %p105, %p106
    %p109 = scmp.ne.s32.totalorder %s94, %s108
    %p110 = scmp.eq.s32.totalorder %s16, 0
    %p111 = por %p109, %p110
    %s112 = ssub.s32 %s10, %s17
    %p113 = scmp.eq.s32.totalorder %s112, 0
    %s115 = sadd.s32 %s114, 1
    %s116 = scalar_select %p113, %s114, %s115
    %p119 = pneg %p113
    %p120 = scmp.eq.s32.totalorder %s10, 1
    %p121 = por %p119, %p120
    %p122 = scmp.ne.s32.totalorder %s114, %s117
    %p123 = scmp.eq.s32.totalorder %s10, 0
    %p124 = por %p122, %p123
    %p125 = scmp.ne.s32.totalorder %s114, %s117
    %p126 = scmp.eq.s32.totalorder %s15, 1
    %p127 = por %p125, %p126
    %p128 = scmp.ne.s32.totalorder %s117, %s118
    %p129 = scmp.eq.s32.totalorder %s15, 0
    %p130 = por %p128, %p129
    %p131 = scmp.ne.s32.totalorder %s117, %s118
    %p132 = scmp.eq.s32.totalorder %s16, 1
    %p133 = por %p131, %p132
    %p135 = scmp.ne.s32.totalorder %s118, %s134
    %p136 = scmp.eq.s32.totalorder %s16, 0
    %p137 = por %p135, %p136
    %p138 = scmp.le.s32.totalorder 1, %s10
    %p139 = scmp.lt.s32.totalorder %s10, 3
    %p140 = pnand %p138, %p139
    %p141 = pneg %p140
    // Predicated region
    $region9: #{gnet_forward.15} parent=5 // pred_check
      _
    $region10: #{gnet_forward.15} parent=5 // pred_check_branch
      %143 = sbr.rel (%p140) target = $region12
    $region11: #{gnet_forward.15} parent=5 // pred_region
      %s144 = ssub.s32 %s10, 1
      // Predicated region
      $region13: #{gnet_forward.15} parent=11 // pred_check
        %p145 = pneg %p83
      $region14: #{gnet_forward.15} parent=11 // pred_check_branch
        %147 = sbr.rel (%p145) target = $region16
      $region15: #{gnet_forward.15} parent=11 // pred_region
        _
      $region16: #{gnet_forward.15} parent=11 // pred_fallthru
        _
      // Predicated region
      $region17: #{gnet_forward.15} parent=11 // pred_check
        %p148 = pneg %p104
      $region18: #{gnet_forward.15} parent=11 // pred_check_branch
        %150 = sbr.rel (%p148) target = $region20
      $region19: #{gnet_forward.15} parent=11 // pred_region
        _
      $region20: #{gnet_forward.15} parent=11 // pred_fallthru
        _
    $region12: #{gnet_forward.15} parent=5 // pred_fallthru
      _
    %p151 = scmp.lt.s32.totalorder %s10, 2
    // Predicated region
    $region21: #{gnet_forward.15} parent=5 // pred_check
      %p152 = pneg %p151
    $region22: #{gnet_forward.15} parent=5 // pred_check_branch
      %154 = sbr.rel (%p152) target = $region24
    $region23: #{gnet_forward.15} parent=5 // pred_region
      // Predicated region
      $region25: #{gnet_forward.15} parent=23 // pred_check
        %p155 = pneg %p30
      $region26: #{gnet_forward.15} parent=23 // pred_check_branch
        %157 = sbr.rel (%p155) target = $region28
      $region27: #{gnet_forward.15} parent=23 // pred_region
        %p158 = scmp.lt.s32.totalorder %s10, 1
        %s159 = scalar_select %p158, %s10, 1
        %s160 = smul.addr %s159, 2
        %s161 = smul.addr %s160, 4
        %s162 = scalar_lea.vmem %s0, %s161
      $region28: #{gnet_forward.15} parent=23 // pred_fallthru
        _
      // Predicated region
      $region29: #{gnet_forward.15} parent=23 // pred_check
        %p163 = pneg %p56
      $region30: #{gnet_forward.15} parent=23 // pred_check_branch
        %165 = sbr.rel (%p163) target = $region32
      $region31: #{gnet_forward.15} parent=23 // pred_region
        %p166 = scmp.lt.s32.totalorder %s10, 1
        %s167 = scalar_select %p166, %s10, 1
        %s168 = smul.addr %s167, 2
        %s169 = smul.addr %s168, 4
        %s170 = scalar_lea.vmem %s1, %s169
      $region32: #{gnet_forward.15} parent=23 // pred_fallthru
        _
    $region24: #{gnet_forward.15} parent=5 // pred_fallthru
      _
    %p171 = scmp.le.s32.totalorder 1, %s10
    %p172 = scmp.lt.s32.totalorder %s10, 3
    %p173 = pnand %p171, %p172
    %p174 = pneg %p173
    // Predicated region
    $region33: #{gnet_forward.15} parent=5 // pred_check
      _
    $region34: #{gnet_forward.15} parent=5 // pred_check_branch
      %176 = sbr.rel (%p173) target = $region36
    $region35: #{gnet_forward.15} parent=5 // pred_region
      %s177 = ssub.s32 %s10, 1
      %p178 = scmp.lt.s32.totalorder %s15, 1
      %s179 = scalar_select %p178, %s15, 1
      %s180 = smul.addr %s179, 2
      %s181 = smul.addr %s180, 4
      %s182 = scalar_lea.vmem %s0, %s181
      %p183 = pneg %p36
      %p184 = pneg %p33
      %p185 = scmp.lt.s32.totalorder %s15, 1
      %s186 = scalar_select %p185, %s15, 1
      %s187 = smul.addr %s186, 2
      %s188 = smul.addr %s187, 4
      %s189 = scalar_lea.vmem %s1, %s188
      %p190 = pneg %p62
      %p191 = pneg %p59
      %p192 = pneg %p83
      %p193 = pneg %p80
      %p194 = pneg %p104
      %p195 = pneg %p101
      %p196 = pneg %p130
      %p197 = pneg %p127
      %p198 = scmp.lt.s32.totalorder %s15, 1
      %s199 = scalar_select %p198, %s15, 1
      %s200 = smul.addr %s199, 2
      %s201 = smul.addr %s200, 4
      %s202 = scalar_lea.vmem %s4, %s201
      %p203 = scmp.lt.s32.totalorder %s15, 1
      %s204 = scalar_select %p203, %s15, 1
      %s205 = smul.addr %s204, 2
      %s206 = smul.addr %s205, 4
      %s207 = scalar_lea.vmem %s0, %s206
      %p208 = scmp.lt.s32.totalorder %s15, 1
      %s209 = scalar_select %p208, %s15, 1
      %s210 = smul.addr %s209, 2
      %s211 = smul.addr %s210, 4
      %s212 = scalar_lea.vmem %s1, %s211
      %p213 = scmp.lt.s32.totalorder %s15, 1
      %s214 = scalar_select %p213, %s15, 1
      %s215 = smul.addr %s214, 2
      %s216 = smul.addr %s215, 4
      %s217 = scalar_lea.vmem %s4, %s216
      %v219 = vld [vmem:[%s207] sm:$0xf]
      %v220 = vld [vmem:[%s207 + $0x4] sm:$0x1]
      %v221 = vld [vmem:[%s212] sm:$0xf]
      %v222 = vld [vmem:[%s212 + $0x4] sm:$0x1]
      %v225 = vunpack.c.l.b16 %v219
      %v226 = vunpack.c.l.b16 %v220
      %v227 = vpack.c.b16 %v226, %v225
      %v230 = vunpack.c.l.b16 %v221
      %v231 = vunpack.c.l.b16 %v222
      %v232 = vpack.c.b16 %v231, %v230
      %vm233 = vcmask 72704
      %v235 = vsel %vm233, %v227, 0
      %vm237 = vcmask 1043456
      %vm238 = vcmask 1044480
      %v239 = vsel %vm237, 4294967295, 65535
      %v240 = vsel %vm238, %v239, 0
      %v242 = vand.u32 %v232, %v240
      %244 = vmatpush.bf16.msra.mxu0 0
      %245 = vmatpush.bf16.msra.mxu0 0
      %246 = vmatpush.bf16.msra.mxu0 0
      %247 = vmatpush.bf16.msra.mxu0 0
      %248 = vmatpush.bf16.msra.mxu0 0
      %249 = vmatpush.bf16.msra.mxu0 0
      %250 = vmatpush.bf16.msra.mxu0 0
      %251 = vmatpush.bf16.msra.mxu0 %v242
      %252 = vmatmul.bf16.gmra.mxu0 %v235
      %v253 = vpop.f32.mrf.mxu0
      %v254 = vadd.f32 0.0, %v253
      %v255 = vpop.f32.mrf.mxu0
      %v256 = vadd.f32 0.0, %v255
      %257 = vdwg.mxu0
      %v258 = vpack.c.bf16 %v256, %v254
      %v259 = vld [vmem:[%s2] sm:$0xf]
      %v260 = vld [vmem:[%s2 + $0x4] sm:$0xf]
      %v261 = vld [vmem:[%s2 + $0x8] sm:$0xf]
      %v262 = vld [vmem:[%s2 + $0xc] sm:$0xf]
      %v263 = vld [vmem:[%s3] sm:$0x1]
      %v265 = vperm.slane %v263, 0
      %v271 = vunpack.c.l.b16 %v259
      %v272 = vunpack.c.l.b16 %v260
      %v273 = vunpack.c.l.b16 %v261
      %v274 = vunpack.c.l.b16 %v262
      %v275 = vpack.c.b16 %v272, %v271
      %v276 = vpack.c.b16 %v274, %v273
      %vm279 = vcmask 261120
      %v281 = vsel %vm279, %v258, 0
      %283 = vmatpush.bf16.msra.mxu0 0
      %284 = vmatpush.bf16.msra.mxu0 0
      %285 = vmatpush.bf16.msra.mxu0 0
      %286 = vmatpush.bf16.msra.mxu0 0
      %287 = vmatpush.bf16.msra.mxu0 0
      %288 = vmatpush.bf16.msra.mxu0 0
      %289 = vmatpush.bf16.msra.mxu0 %v276
      %290 = vmatpush.bf16.msra.mxu0 %v275
      %291 = vmatmul.bf16.gmra.mxu0 %v281
      %v292 = vpop.f32.mrf.mxu0
      %v293 = vadd.f32 %v265, %v292
      %v294 = vpop.f32.mrf.mxu0
      %v295 = vadd.f32 %v265, %v294
      %296 = vdwg.mxu0
      %vm297 = vcmp.gt.f32.partialorder %v293, 0.0
      %vm298 = vcmp.gt.f32.partialorder %v295, 0.0
      %v299 = vmul.f32 %v293, 1.442695
      %v300 = vpow.pop %v299
      %v301 = vmul.f32 %v295, 1.442695
      %v302 = vpow.pop %v301
      %v303 = vsub.f32 %v300, 1.0
      %v304 = vsub.f32 %v302, 1.0
      %v305 = vsel %vm297, %v293, %v303
      %v306 = vsel %vm298, %v295, %v304
      %v307 = vpack.c.bf16 %v305, %v305
      %v308 = vpack.c.bf16 %v306, %v306
      %vm309 = vcmask 257024
      %310 = vst.msk [vmem:[%s217] sm:$0xf] %vm309, %v307
      %vm311 = vcmask 253952
      %vm312 = vsmask.f32 256
      %vm313 = vmand %vm311, %vm312
      %v314 = vld [vmem:[%s217 + $0x4] sm:$0x1]
      %v315 = vsel %vm313, %v308, %v314
      %316 = vst [vmem:[%s217 + $0x4] sm:$0x1] %v315
      %p317 = scmp.lt.s32.totalorder %s15, 1
      %s318 = scalar_select %p317, %s15, 1
      %s319 = smul.addr %s318, 2
      %s320 = smul.addr %s319, 4
      %s321 = scalar_lea.vmem %s4, %s320
      // Predicated region
      $region37: #{gnet_forward.15} parent=35 // pred_check
        %p322 = pneg %p127
      $region38: #{gnet_forward.15} parent=35 // pred_check_branch
        %324 = sbr.rel (%p322) target = $region40
      $region39: #{gnet_forward.15} parent=35 // pred_region
        _
      $region40: #{gnet_forward.15} parent=35 // pred_fallthru
        _
    $region36: #{gnet_forward.15} parent=5 // pred_fallthru
      _
    %p325 = scmp.le.s32.totalorder 2, %s10
    // Predicated region
    $region41: #{gnet_forward.15} parent=5 // pred_check
      %p326 = pneg %p325
    $region42: #{gnet_forward.15} parent=5 // pred_check_branch
      %328 = sbr.rel (%p326) target = $region44
    $region43: #{gnet_forward.15} parent=5 // pred_region
      %s329 = ssub.s32 %s10, 2
      // Predicated region
      $region45: #{gnet_forward.15} parent=43 // pred_check
        %p330 = pneg %p133
      $region46: #{gnet_forward.15} parent=43 // pred_check_branch
        %332 = sbr.rel (%p330) target = $region48
      $region47: #{gnet_forward.15} parent=43 // pred_region
        %p333 = scmp.lt.s32.totalorder %s16, 1
        %s334 = scalar_select %p333, %s16, 1
        %s335 = smul.addr %s334, 2
        %s336 = smul.addr %s335, 4
        %s337 = scalar_lea.vmem %s4, %s336
      $region48: #{gnet_forward.15} parent=43 // pred_fallthru
        _
    $region44: #{gnet_forward.15} parent=5 // pred_fallthru
      _
  $region6: #{gnet_forward.15} parent=0 // loop_footer
    %s14 = sadd.s32 1, %s10
  $region7: #{gnet_forward.15} parent=0 // loop_footer_branch
    %9 = sbr.rel target = $region3
  $region8: #{gnet_forward.15} parent=0 // loop_exit
    _

// kernel: gnet_forward.14
$region0: #{gnet_forward.14}
  #allocation0 [shape = 'u32[]', space=smem, size = 0x4, offset = 0x4, fixed_abs, tag = 'smem constant byte address 0x4 - core index']
  #allocation1 [shape = 'u32[72,128]{1,0:T(1,128)}', space=vmem, size = 0x9000, scoped, tag = 'internal scratch']
  %s0 = inlined_call_operand.vmem [shape: bf16[2,9,14], index: 0, kind: input, shape index: {}]
  %s1 = inlined_call_operand.vmem [shape: bf16[2,9,9], index: 1, kind: output, shape index: {0}]
  %s2 = inlined_call_operand.hbm [shape: bf16[2,9,9], index: 2, kind: output, shape index: {1}]
  %3 = xla_tuple %s1, %s2
  %s4 = sld [smem:[#allocation0]]
  $region45: #{gnet_forward.14} parent=0
    _
  %s6 = ssub.s32 1, %s4
  %s7 = scalar_select 0, %s6, %s4
  $region1: #{gnet_forward.14} parent=0
    #allocation2 [shape = 'u8[8192]{0}', space=vmem, size = 0x2000, scoped, tag = 'output window, operand 1']
    #allocation3 [shape = 's32[2]{0}', space=sflag, size = 0x8, scoped, tag = 'scoped memory for gnet_forward.14']
    %8 = vsyncpa [#allocation3], 0
    %s9 = scalar_lea.sflag [#allocation3], 1
    %10 = vsyncpa %s9, 0
    loop: start=0, step=1, limit=4
    $region2: #{gnet_forward.14} parent=1 // loop_pre_header
      _
    $region3: #{gnet_forward.14} parent=1 // loop_header
      %s12 = sphi 0, %s16
      %p13 = scmp.ge.s32.totalorder %s12, 4
      %s22 = sphi 0, %s24
      %s25 = sphi 0, %s22
      %s26 = sphi 0, %s25
      %s42 = sphi 0, %s26
      %s48 = sphi 0, %s50
      %s51 = sphi 0, %s48
      %s52 = sphi 0, %s51
      %s68 = sphi 0, %s52
      %s74 = sphi 0, %s76
      %s77 = sphi 0, %s74
      %s78 = sphi 0, %s77
      %s94 = sphi 0, %s78
    $region4: #{gnet_forward.14} parent=1 // loop_header_branch
      %15 = sbr.rel (%p13) target = $region8
    $region5: #{gnet_forward.14} parent=1 // loop_body
      %s17 = ssub.s32 %s12, 1
      %s18 = ssub.s32 %s12, 2
      %s19 = sadd.s32 %s12, 1
      %s20 = ssub.s32 %s12, %s19
      %p21 = scmp.eq.s32.totalorder %s20, 0
      %s23 = sadd.s32 %s22, 1
      %s24 = scalar_select %p21, %s22, %s23
      %p27 = pneg %p21
      %p28 = scmp.eq.s32.totalorder %s12, 1
      %p29 = por %p27, %p28
      %p30 = scmp.ne.s32.totalorder %s22, %s25
      %p31 = scmp.eq.s32.totalorder %s12, 0
      %p32 = por %p30, %p31
      %p33 = scmp.ne.s32.totalorder %s22, %s25
      %p34 = scmp.eq.s32.totalorder %s17, 1
      %p35 = por %p33, %p34
      %p36 = scmp.ne.s32.totalorder %s25, %s26
      %p37 = scmp.eq.s32.totalorder %s17, 0
      %p38 = por %p36, %p37
      %p39 = scmp.ne.s32.totalorder %s25, %s26
      %p40 = scmp.eq.s32.totalorder %s18, 1
      %p41 = por %p39, %p40
      %p43 = scmp.ne.s32.totalorder %s26, %s42
      %p44 = scmp.eq.s32.totalorder %s18, 0
      %p45 = por %p43, %p44
      %s46 = ssub.s32 %s12, %s19
      %p47 = scmp.eq.s32.totalorder %s46, 0
      %s49 = sadd.s32 %s48, 1
      %s50 = scalar_select %p47, %s48, %s49
      %p53 = pneg %p47
      %p54 = scmp.eq.s32.totalorder %s12, 1
      %p55 = por %p53, %p54
      %p56 = scmp.ne.s32.totalorder %s48, %s51
      %p57 = scmp.eq.s32.totalorder %s12, 0
      %p58 = por %p56, %p57
      %p59 = scmp.ne.s32.totalorder %s48, %s51
      %p60 = scmp.eq.s32.totalorder %s17, 1
      %p61 = por %p59, %p60
      %p62 = scmp.ne.s32.totalorder %s51, %s52
      %p63 = scmp.eq.s32.totalorder %s17, 0
      %p64 = por %p62, %p63
      %p65 = scmp.ne.s32.totalorder %s51, %s52
      %p66 = scmp.eq.s32.totalorder %s18, 1
      %p67 = por %p65, %p66
      %p69 = scmp.ne.s32.totalorder %s52, %s68
      %p70 = scmp.eq.s32.totalorder %s18, 0
      %p71 = por %p69, %p70
      %s72 = ssub.s32 %s12, %s19
      %p73 = scmp.eq.s32.totalorder %s72, 0
      %s75 = sadd.s32 %s74, 1
      %s76 = scalar_select %p73, %s74, %s75
      %p79 = pneg %p73
      %p80 = scmp.eq.s32.totalorder %s12, 1
      %p81 = por %p79, %p80
      %p82 = scmp.ne.s32.totalorder %s74, %s77
      %p83 = scmp.eq.s32.totalorder %s12, 0
      %p84 = por %p82, %p83
      %p85 = scmp.ne.s32.totalorder %s74, %s77
      %p86 = scmp.eq.s32.totalorder %s17, 1
      %p87 = por %p85, %p86
      %p88 = scmp.ne.s32.totalorder %s77, %s78
      %p89 = scmp.eq.s32.totalorder %s17, 0
      %p90 = por %p88, %p89
      %p91 = scmp.ne.s32.totalorder %s77, %s78
      %p92 = scmp.eq.s32.totalorder %s18, 1
      %p93 = por %p91, %p92
      %p95 = scmp.ne.s32.totalorder %s78, %s94
      %p96 = scmp.eq.s32.totalorder %s18, 0
      %p97 = por %p95, %p96
      %p98 = scmp.le.s32.totalorder 1, %s12
      %p99 = scmp.lt.s32.totalorder %s12, 3
      %p100 = pnand %p98, %p99
      %p101 = pneg %p100
      // Predicated region
      $region9: #{gnet_forward.14} parent=5 // pred_check
        _
      $region10: #{gnet_forward.14} parent=5 // pred_check_branch
        %103 = sbr.rel (%p100) target = $region12
      $region11: #{gnet_forward.14} parent=5 // pred_region
        %s104 = ssub.s32 %s12, 1
      $region12: #{gnet_forward.14} parent=5 // pred_fallthru
        _
      %p105 = scmp.lt.s32.totalorder %s12, 2
      // Predicated region
      $region13: #{gnet_forward.14} parent=5 // pred_check
        %p106 = pneg %p105
      $region14: #{gnet_forward.14} parent=5 // pred_check_branch
        %108 = sbr.rel (%p106) target = $region16
      $region15: #{gnet_forward.14} parent=5 // pred_region
        // Predicated region
        $region17: #{gnet_forward.14} parent=15 // pred_check
          %p109 = pneg %p32
        $region18: #{gnet_forward.14} parent=15 // pred_check_branch
          %111 = sbr.rel (%p109) target = $region20
        $region19: #{gnet_forward.14} parent=15 // pred_region
          %p112 = scmp.lt.s32.totalorder %s12, 1
          %s113 = scalar_select %p112, %s12, 1
          %s114 = smul.addr %s113, 2
          %s115 = smul.addr %s114, 4
          %s116 = scalar_lea.vmem %s0, %s115
        $region20: #{gnet_forward.14} parent=15 // pred_fallthru
          _
      $region16: #{gnet_forward.14} parent=5 // pred_fallthru
        _
      %p117 = scmp.le.s32.totalorder 1, %s12
      %p118 = scmp.lt.s32.totalorder %s12, 3
      %p119 = pnand %p117, %p118
      %p120 = pneg %p119
      // Predicated region
      $region21: #{gnet_forward.14} parent=5 // pred_check
        _
      $region22: #{gnet_forward.14} parent=5 // pred_check_branch
        %122 = sbr.rel (%p119) target = $region24
      $region23: #{gnet_forward.14} parent=5 // pred_region
        %s123 = ssub.s32 %s12, 1
        %p124 = scmp.lt.s32.totalorder %s17, 1
        %s125 = scalar_select %p124, %s17, 1
        %s126 = smul.addr %s125, 2
        %s127 = smul.addr %s126, 4
        %s128 = scalar_lea.vmem %s0, %s127
        %p129 = pneg %p38
        %p130 = pneg %p35
        %p131 = pneg %p64
        %p132 = pneg %p61
        %p133 = scmp.lt.s32.totalorder %s17, 1
        %s134 = scalar_select %p133, %s17, 1
        %s135 = smul.addr %s134, 2
        %s136 = smul.addr %s135, 4
        %s137 = scalar_lea.vmem %s1, %s136
        %p138 = pneg %p90
        %p139 = pneg %p87
        %s140 = sand.u32 %s77, 1
        %s141 = scalar_lea.sflag [#allocation3], %s140
        %s142 = sand.u32 %s77, 1
        %s143 = smul.addr %s142, 8
        %s144 = scalar_lea.vmem [#allocation2], %s143
        %p145 = scmp.lt.s32.totalorder %s17, 1
        %s146 = scalar_select %p145, %s17, 1
        %s147 = smul.addr %s146, 2
        %s148 = smul.addr %s147, 4
        %s149 = scalar_lea.vmem %s0, %s148
        %p150 = scmp.lt.s32.totalorder %s17, 1
        %s151 = scalar_select %p150, %s17, 1
        %s152 = smul.addr %s151, 2
        %s153 = smul.addr %s152, 4
        %s154 = scalar_lea.vmem %s1, %s153
        %v156 = vld [vmem:[%s149] sm:$0xf]
        %v157 = vld [vmem:[%s149 + $0x4] sm:$0x1]
        %v160 = vunpack.c.l.b16 %v156
        %v161 = vunpack.c.l.b16 %v157
        %v162 = vpack.c.b16 %v161, %v160
        %vm163 = vcmask 113664
        %v165 = vsel %vm163, %v162, 0
        %167 = vmatpush.bf16.xpose.msra.mxu0 0
        %168 = vmatpush.bf16.xpose.msra.mxu0 0
        %169 = vmatpush.bf16.xpose.msra.mxu0 0
        %170 = vmatpush.bf16.xpose.msra.mxu0 0
        %171 = vmatpush.bf16.xpose.msra.mxu0 0
        %172 = vmatpush.bf16.xpose.msra.mxu0 0
        %173 = vmatpush.bf16.xpose.msra.mxu0 0
        %174 = vmatpush.bf16.xpose.msra.mxu0 %v165
        %175 = vmatmul.bf16.gmra.mxu0 %v165
        %v176 = vpop.f32.mrf.mxu0
        %v177 = vadd.f32 0.0, %v176
        %v178 = vpop.f32.mrf.mxu0
        %v179 = vadd.f32 0.0, %v178
        %180 = vdwg.mxu0
        %vm181 = vcmp.ne.f32.partialorder %v177, 0.0
        %vm182 = vcmp.ne.f32.partialorder %v179, 0.0
        %v183 = vsel %vm181, 1, 0
        %v184 = vsel %vm182, 1, 0
        %v185 = vcvt.s32.f32 %v183
        %v186 = vcvt.s32.f32 %v184
        %vm187 = vcmask 72704
        %v188 = vsel %vm187, %v185, 0.0
        %vm189 = vcmask 65536
        %v190 = vsel %vm189, %v186, 0.0
        %v191 = vadd.f32 %v188, %v190
        %v192 = vrot.slane %v191, 4
        %v193 = vadd.f32 %v191, %v192
        %v194 = vrot.slane %v193, 2
        %v195 = vadd.f32 %v193, %v194
        %v196 = vrot.slane %v195, 1
        %v197 = vadd.f32 %v195, %v196
        %v198 = vrcp.pop %v197
        %v199 = vmul.f32 %v185, %v198
        %v200 = vmul.f32 %v186, %v198
        %v201 = vpack.c.bf16 %v199, %v199
        %v202 = vpack.c.bf16 %v200, %v200
        %vm203 = vcmask 68608
        %204 = vst.msk [vmem:[%s154] sm:$0xf] %vm203, %v201
        %vm205 = vcmask 65536
        %vm206 = vsmask.f32 256
        %vm207 = vmand %vm205, %vm206
        %v208 = vld [vmem:[%s154 + $0x4] sm:$0x1]
        %v209 = vsel %vm207, %v202, %v208
        %210 = vst [vmem:[%s154 + $0x4] sm:$0x1] %v209
        %v211 = vpack.c.bf16 %v185, %v185
        %v212 = vpack.c.bf16 %v186, %v186
        %213 = vst.msk [vmem:[%s144] sm:$0xf] %vm203, %v211
        %v214 = vld [vmem:[%s144 + $0x4] sm:$0x1]
        %v215 = vsel %vm207, %v212, %v214
        %216 = vst [vmem:[%s144 + $0x4] sm:$0x1] %v215
        %p217 = scmp.lt.s32.totalorder %s17, 1
        %s218 = scalar_select %p217, %s17, 1
        %s219 = smul.addr %s218, 2
        %s220 = smul.addr %s219, 4
        %s221 = scalar_lea.vmem %s1, %s220
        %s222 = sand.u32 %s77, 1
        %s223 = scalar_lea.sflag [#allocation3], %s222
        %s224 = sand.u32 %s77, 1
        %s225 = smul.addr %s224, 8
        %s226 = scalar_lea.vmem [#allocation2], %s225
        // Predicated region
        $region25: #{gnet_forward.14} parent=23 // pred_check
          %p227 = pneg %p61
        $region26: #{gnet_forward.14} parent=23 // pred_check_branch
          %229 = sbr.rel (%p227) target = $region28
        $region27: #{gnet_forward.14} parent=23 // pred_region
          _
        $region28: #{gnet_forward.14} parent=23 // pred_fallthru
          _
        // Predicated region
        $region29: #{gnet_forward.14} parent=23 // pred_check
          %p230 = pneg %p87
        $region30: #{gnet_forward.14} parent=23 // pred_check_branch
          %232 = sbr.rel (%p230) target = $region32
        $region31: #{gnet_forward.14} parent=23 // pred_region
          %234 = vsyncadd %s223, 0
          %s235 = smul.addr %s17, 2
          %s236 = smul.addr %s235, 4
          %s237 = scalar_lea.hbm %s2, %s236
          %s238 = sshll.u32 %s226, 4
          %s239 = int_to_ptr.vmem [resolvable:$true] %s238
          %s240 = sshll.u32 %s237, 4
          %s241 = int_to_ptr.hbm [resolvable:$true] %s240
          %246 = dma.vmem_to_hbm [thread:$0]  %s239, 128, %s241, %s223, 64, 64, 4
        $region32: #{gnet_forward.14} parent=23 // pred_fallthru
          _
      $region24: #{gnet_forward.14} parent=5 // pred_fallthru
        _
      %p247 = scmp.le.s32.totalorder 2, %s12
      // Predicated region
      $region33: #{gnet_forward.14} parent=5 // pred_check
        %p248 = pneg %p247
      $region34: #{gnet_forward.14} parent=5 // pred_check_branch
        %250 = sbr.rel (%p248) target = $region36
      $region35: #{gnet_forward.14} parent=5 // pred_region
        %s251 = ssub.s32 %s12, 2
        // Predicated region
        $region37: #{gnet_forward.14} parent=35 // pred_check
          %p252 = pneg %p67
        $region38: #{gnet_forward.14} parent=35 // pred_check_branch
          %254 = sbr.rel (%p252) target = $region40
        $region39: #{gnet_forward.14} parent=35 // pred_region
          %p255 = scmp.lt.s32.totalorder %s18, 1
          %s256 = scalar_select %p255, %s18, 1
          %s257 = smul.addr %s256, 2
          %s258 = smul.addr %s257, 4
          %s259 = scalar_lea.vmem %s1, %s258
        $region40: #{gnet_forward.14} parent=35 // pred_fallthru
          _
        // Predicated region
        $region41: #{gnet_forward.14} parent=35 // pred_check
          %p260 = pneg %p93
        $region42: #{gnet_forward.14} parent=35 // pred_check_branch
          %262 = sbr.rel (%p260) target = $region44
        $region43: #{gnet_forward.14} parent=35 // pred_region
          %s263 = sand.u32 %s78, 1
          %s264 = scalar_lea.sflag [#allocation3], %s263
          %s265 = sand.u32 %s78, 1
          %s266 = smul.addr %s265, 8
          %s267 = scalar_lea.vmem [#allocation2], %s266
          %269 = dma.done %s264, 128
        $region44: #{gnet_forward.14} parent=35 // pred_fallthru
          _
      $region36: #{gnet_forward.14} parent=5 // pred_fallthru
        _
    $region6: #{gnet_forward.14} parent=1 // loop_footer
      %s16 = sadd.s32 1, %s12
    $region7: #{gnet_forward.14} parent=1 // loop_footer_branch
      %11 = sbr.rel target = $region3
    $region8: #{gnet_forward.14} parent=1 // loop_exit
      _
    %270 = vsyncpa [#allocation3], 1
    %s271 = scalar_lea.sflag [#allocation3], 1
    %272 = vsyncpa %s271, 1

// kernel: gnet_forward.16
$region0: #{gnet_forward.16}
  #allocation0 [shape = 'u32[]', space=smem, size = 0x4, offset = 0x4, fixed_abs, tag = 'smem constant byte address 0x4 - core index']
  #allocation1 [shape = 'u32[72,128]{1,0:T(1,128)}', space=vmem, size = 0x9000, scoped, tag = 'internal scratch']
  %s0 = inlined_call_operand.vmem [shape: bf16[2,14,14], index: 0, kind: input, shape index: {}]
  %s1 = inlined_call_operand.vmem [shape: bf16[2,14,32], index: 1, kind: input, shape index: {}]
  %s2 = inlined_call_operand.vmem [shape: bf16[32,32], index: 2, kind: input, shape index: {}]
  %s3 = inlined_call_operand.vmem [shape: f32[1,32], index: 3, kind: input, shape index: {}]
  %s4 = inlined_call_operand.vmem [shape: bf16[2,14,32], index: 4, kind: input, shape index: {}]
  %s5 = inlined_call_operand.vmem [shape: bf16[2,14,32], index: 5, kind: output, shape index: {}]
  %s6 = sld [smem:[#allocation0]]
  $region53: #{gnet_forward.16} parent=0
    _
  %s8 = ssub.s32 1, %s6
  %s9 = scalar_select 0, %s8, %s6
  loop: start=0, step=1, limit=4
  $region2: #{gnet_forward.16} parent=0 // loop_pre_header
    _
  $region3: #{gnet_forward.16} parent=0 // loop_header
    %s11 = sphi 0, %s15
    %p12 = scmp.ge.s32.totalorder %s11, 4
    %s21 = sphi 0, %s23
    %s24 = sphi 0, %s21
    %s25 = sphi 0, %s24
    %s41 = sphi 0, %s25
    %s47 = sphi 0, %s49
    %s50 = sphi 0, %s47
    %s51 = sphi 0, %s50
    %s67 = sphi 0, %s51
    %s71 = sphi 0, %s71
    %s73 = sphi 0, %s71
    %s74 = sphi 0, %s73
    %s88 = sphi 0, %s74
    %s92 = sphi 0, %s92
    %s94 = sphi 0, %s92
    %s95 = sphi 0, %s94
    %s109 = sphi 0, %s95
    %s115 = sphi 0, %s117
    %s118 = sphi 0, %s115
    %s119 = sphi 0, %s118
    %s135 = sphi 0, %s119
    %s141 = sphi 0, %s143
    %s144 = sphi 0, %s141
    %s145 = sphi 0, %s144
    %s161 = sphi 0, %s145
  $region4: #{gnet_forward.16} parent=0 // loop_header_branch
    %14 = sbr.rel (%p12) target = $region8
  $region5: #{gnet_forward.16} parent=0 // loop_body
    %s16 = ssub.s32 %s11, 1
    %s17 = ssub.s32 %s11, 2
    %s18 = sadd.s32 %s11, 1
    %s19 = ssub.s32 %s11, %s18
    %p20 = scmp.eq.s32.totalorder %s19, 0
    %s22 = sadd.s32 %s21, 1
    %s23 = scalar_select %p20, %s21, %s22
    %p26 = pneg %p20
    %p27 = scmp.eq.s32.totalorder %s11, 1
    %p28 = por %p26, %p27
    %p29 = scmp.ne.s32.totalorder %s21, %s24
    %p30 = scmp.eq.s32.totalorder %s11, 0
    %p31 = por %p29, %p30
    %p32 = scmp.ne.s32.totalorder %s21, %s24
    %p33 = scmp.eq.s32.totalorder %s16, 1
    %p34 = por %p32, %p33
    %p35 = scmp.ne.s32.totalorder %s24, %s25
    %p36 = scmp.eq.s32.totalorder %s16, 0
    %p37 = por %p35, %p36
    %p38 = scmp.ne.s32.totalorder %s24, %s25
    %p39 = scmp.eq.s32.totalorder %s17, 1
    %p40 = por %p38, %p39
    %p42 = scmp.ne.s32.totalorder %s25, %s41
    %p43 = scmp.eq.s32.totalorder %s17, 0
    %p44 = por %p42, %p43
    %s45 = ssub.s32 %s11, %s18
    %p46 = scmp.eq.s32.totalorder %s45, 0
    %s48 = sadd.s32 %s47, 1
    %s49 = scalar_select %p46, %s47, %s48
    %p52 = pneg %p46
    %p53 = scmp.eq.s32.totalorder %s11, 1
    %p54 = por %p52, %p53
    %p55 = scmp.ne.s32.totalorder %s47, %s50
    %p56 = scmp.eq.s32.totalorder %s11, 0
    %p57 = por %p55, %p56
    %p58 = scmp.ne.s32.totalorder %s47, %s50
    %p59 = scmp.eq.s32.totalorder %s16, 1
    %p60 = por %p58, %p59
    %p61 = scmp.ne.s32.totalorder %s50, %s51
    %p62 = scmp.eq.s32.totalorder %s16, 0
    %p63 = por %p61, %p62
    %p64 = scmp.ne.s32.totalorder %s50, %s51
    %p65 = scmp.eq.s32.totalorder %s17, 1
    %p66 = por %p64, %p65
    %p68 = scmp.ne.s32.totalorder %s51, %s67
    %p69 = scmp.eq.s32.totalorder %s17, 0
    %p70 = por %p68, %p69
    %s72 = sadd.s32 %s71, 1
    %p75 = scmp.eq.s32.totalorder %s11, 1
    %p76 = scmp.ne.s32.totalorder %s71, %s73
    %p77 = scmp.eq.s32.totalorder %s11, 0
    %p78 = por %p76, %p77
    %p79 = scmp.ne.s32.totalorder %s71, %s73
    %p80 = scmp.eq.s32.totalorder %s16, 1
    %p81 = por %p79, %p80
    %p82 = scmp.ne.s32.totalorder %s73, %s74
    %p83 = scmp.eq.s32.totalorder %s16, 0
    %p84 = por %p82, %p83
    %p85 = scmp.ne.s32.totalorder %s73, %s74
    %p86 = scmp.eq.s32.totalorder %s17, 1
    %p87 = por %p85, %p86
    %p89 = scmp.ne.s32.totalorder %s74, %s88
    %p90 = scmp.eq.s32.totalorder %s17, 0
    %p91 = por %p89, %p90
    %s93 = sadd.s32 %s92, 1
    %p96 = scmp.eq.s32.totalorder %s11, 1
    %p97 = scmp.ne.s32.totalorder %s92, %s94
    %p98 = scmp.eq.s32.totalorder %s11, 0
    %p99 = por %p97, %p98
    %p100 = scmp.ne.s32.totalorder %s92, %s94
    %p101 = scmp.eq.s32.totalorder %s16, 1
    %p102 = por %p100, %p101
    %p103 = scmp.ne.s32.totalorder %s94, %s95
    %p104 = scmp.eq.s32.totalorder %s16, 0
    %p105 = por %p103, %p104
    %p106 = scmp.ne.s32.totalorder %s94, %s95
    %p107 = scmp.eq.s32.totalorder %s17, 1
    %p108 = por %p106, %p107
    %p110 = scmp.ne.s32.totalorder %s95, %s109
    %p111 = scmp.eq.s32.totalorder %s17, 0
    %p112 = por %p110, %p111
    %s113 = ssub.s32 %s11, %s18
    %p114 = scmp.eq.s32.totalorder %s113, 0
    %s116 = sadd.s32 %s115, 1
    %s117 = scalar_select %p114, %s115, %s116
    %p120 = pneg %p114
    %p121 = scmp.eq.s32.totalorder %s11, 1
    %p122 = por %p120, %p121
    %p123 = scmp.ne.s32.totalorder %s115, %s118
    %p124 = scmp.eq.s32.totalorder %s11, 0
    %p125 = por %p123, %p124
    %p126 = scmp.ne.s32.totalorder %s115, %s118
    %p127 = scmp.eq.s32.totalorder %s16, 1
    %p128 = por %p126, %p127
    %p129 = scmp.ne.s32.totalorder %s118, %s119
    %p130 = scmp.eq.s32.totalorder %s16, 0
    %p131 = por %p129, %p130
    %p132 = scmp.ne.s32.totalorder %s118, %s119
    %p133 = scmp.eq.s32.totalorder %s17, 1
    %p134 = por %p132, %p133
    %p136 = scmp.ne.s32.totalorder %s119, %s135
    %p137 = scmp.eq.s32.totalorder %s17, 0
    %p138 = por %p136, %p137
    %s139 = ssub.s32 %s11, %s18
    %p140 = scmp.eq.s32.totalorder %s139, 0
    %s142 = sadd.s32 %s141, 1
    %s143 = scalar_select %p140, %s141, %s142
    %p146 = pneg %p140
    %p147 = scmp.eq.s32.totalorder %s11, 1
    %p148 = por %p146, %p147
    %p149 = scmp.ne.s32.totalorder %s141, %s144
    %p150 = scmp.eq.s32.totalorder %s11, 0
    %p151 = por %p149, %p150
    %p152 = scmp.ne.s32.totalorder %s141, %s144
    %p153 = scmp.eq.s32.totalorder %s16, 1
    %p154 = por %p152, %p153
    %p155 = scmp.ne.s32.totalorder %s144, %s145
    %p156 = scmp.eq.s32.totalorder %s16, 0
    %p157 = por %p155, %p156
    %p158 = scmp.ne.s32.totalorder %s144, %s145
    %p159 = scmp.eq.s32.totalorder %s17, 1
    %p160 = por %p158, %p159
    %p162 = scmp.ne.s32.totalorder %s145, %s161
    %p163 = scmp.eq.s32.totalorder %s17, 0
    %p164 = por %p162, %p163
    %p165 = scmp.le.s32.totalorder 1, %s11
    %p166 = scmp.lt.s32.totalorder %s11, 3
    %p167 = pnand %p165, %p166
    %p168 = pneg %p167
    // Predicated region
    $region9: #{gnet_forward.16} parent=5 // pred_check
      _
    $region10: #{gnet_forward.16} parent=5 // pred_check_branch
      %170 = sbr.rel (%p167) target = $region12
    $region11: #{gnet_forward.16} parent=5 // pred_region
      %s171 = ssub.s32 %s11, 1
      // Predicated region
      $region13: #{gnet_forward.16} parent=11 // pred_check
        %p172 = pneg %p84
      $region14: #{gnet_forward.16} parent=11 // pred_check_branch
        %174 = sbr.rel (%p172) target = $region16
      $region15: #{gnet_forward.16} parent=11 // pred_region
        _
      $region16: #{gnet_forward.16} parent=11 // pred_fallthru
        _
      // Predicated region
      $region17: #{gnet_forward.16} parent=11 // pred_check
        %p175 = pneg %p105
      $region18: #{gnet_forward.16} parent=11 // pred_check_branch
        %177 = sbr.rel (%p175) target = $region20
      $region19: #{gnet_forward.16} parent=11 // pred_region
        _
      $region20: #{gnet_forward.16} parent=11 // pred_fallthru
        _
    $region12: #{gnet_forward.16} parent=5 // pred_fallthru
      _
    %p178 = scmp.lt.s32.totalorder %s11, 2
    // Predicated region
    $region21: #{gnet_forward.16} parent=5 // pred_check
      %p179 = pneg %p178
    $region22: #{gnet_forward.16} parent=5 // pred_check_branch
      %181 = sbr.rel (%p179) target = $region24
    $region23: #{gnet_forward.16} parent=5 // pred_region
      // Predicated region
      $region25: #{gnet_forward.16} parent=23 // pred_check
        %p182 = pneg %p31
      $region26: #{gnet_forward.16} parent=23 // pred_check_branch
        %184 = sbr.rel (%p182) target = $region28
      $region27: #{gnet_forward.16} parent=23 // pred_region
        %p185 = scmp.lt.s32.totalorder %s11, 1
        %s186 = scalar_select %p185, %s11, 1
        %s187 = smul.addr %s186, 2
        %s188 = smul.addr %s187, 4
        %s189 = scalar_lea.vmem %s0, %s188
      $region28: #{gnet_forward.16} parent=23 // pred_fallthru
        _
      // Predicated region
      $region29: #{gnet_forward.16} parent=23 // pred_check
        %p190 = pneg %p57
      $region30: #{gnet_forward.16} parent=23 // pred_check_branch
        %192 = sbr.rel (%p190) target = $region32
      $region31: #{gnet_forward.16} parent=23 // pred_region
        %p193 = scmp.lt.s32.totalorder %s11, 1
        %s194 = scalar_select %p193, %s11, 1
        %s195 = smul.addr %s194, 2
        %s196 = smul.addr %s195, 4
        %s197 = scalar_lea.vmem %s1, %s196
      $region32: #{gnet_forward.16} parent=23 // pred_fallthru
        _
      // Predicated region
      $region33: #{gnet_forward.16} parent=23 // pred_check
        %p198 = pneg %p125
      $region34: #{gnet_forward.16} parent=23 // pred_check_branch
        %200 = sbr.rel (%p198) target = $region36
      $region35: #{gnet_forward.16} parent=23 // pred_region
        %p201 = scmp.lt.s32.totalorder %s11, 1
        %s202 = scalar_select %p201, %s11, 1
        %s203 = smul.addr %s202, 2
        %s204 = smul.addr %s203, 4
        %s205 = scalar_lea.vmem %s4, %s204
      $region36: #{gnet_forward.16} parent=23 // pred_fallthru
        _
    $region24: #{gnet_forward.16} parent=5 // pred_fallthru
      _
    %p206 = scmp.le.s32.totalorder 1, %s11
    %p207 = scmp.lt.s32.totalorder %s11, 3
    %p208 = pnand %p206, %p207
    %p209 = pneg %p208
    // Predicated region
    $region37: #{gnet_forward.16} parent=5 // pred_check
      _
    $region38: #{gnet_forward.16} parent=5 // pred_check_branch
      %211 = sbr.rel (%p208) target = $region40
    $region39: #{gnet_forward.16} parent=5 // pred_region
      %s212 = ssub.s32 %s11, 1
      %p213 = scmp.lt.s32.totalorder %s16, 1
      %s214 = scalar_select %p213, %s16, 1
      %s215 = smul.addr %s214, 2
      %s216 = smul.addr %s215, 4
      %s217 = scalar_lea.vmem %s0, %s216
      %p218 = pneg %p37
      %p219 = pneg %p34
      %p220 = scmp.lt.s32.totalorder %s16, 1
      %s221 = scalar_select %p220, %s16, 1
      %s222 = smul.addr %s221, 2
      %s223 = smul.addr %s222, 4
      %s224 = scalar_lea.vmem %s1, %s223
      %p225 = pneg %p63
      %p226 = pneg %p60
      %p227 = pneg %p84
      %p228 = pneg %p81
      %p229 = pneg %p105
      %p230 = pneg %p102
      %p231 = scmp.lt.s32.totalorder %s16, 1
      %s232 = scalar_select %p231, %s16, 1
      %s233 = smul.addr %s232, 2
      %s234 = smul.addr %s233, 4
      %s235 = scalar_lea.vmem %s4, %s234
      %p236 = pneg %p131
      %p237 = pneg %p128
      %p238 = pneg %p157
      %p239 = pneg %p154
      %p240 = scmp.lt.s32.totalorder %s16, 1
      %s241 = scalar_select %p240, %s16, 1
      %s242 = smul.addr %s241, 2
      %s243 = smul.addr %s242, 4
      %s244 = scalar_lea.vmem %s5, %s243
      %p245 = scmp.lt.s32.totalorder %s16, 1
      %s246 = scalar_select %p245, %s16, 1
      %s247 = smul.addr %s246, 2
      %s248 = smul.addr %s247, 4
      %s249 = scalar_lea.vmem %s0, %s248
      %p250 = scmp.lt.s32.totalorder %s16, 1
      %s251 = scalar_select %p250, %s16, 1
      %s252 = smul.addr %s251, 2
      %s253 = smul.addr %s252, 4
      %s254 = scalar_lea.vmem %s1, %s253
      %p255 = scmp.lt.s32.totalorder %s16, 1
      %s256 = scalar_select %p255, %s16, 1
      %s257 = smul.addr %s256, 2
      %s258 = smul.addr %s257, 4
      %s259 = scalar_lea.vmem %s4, %s258
      %p260 = scmp.lt.s32.totalorder %s16, 1
      %s261 = scalar_select %p260, %s16, 1
      %s262 = smul.addr %s261, 2
      %s263 = smul.addr %s262, 4
      %s264 = scalar_lea.vmem %s5, %s263
      %v266 = vld [vmem:[%s249] sm:$0xf]
      %v267 = vld [vmem:[%s249 + $0x4] sm:$0x7]
      %v268 = vld [vmem:[%s254] sm:$0xf]
      %v269 = vld [vmem:[%s254 + $0x4] sm:$0x7]
      %v272 = vunpack.c.l.b16 %v266
      %v273 = vunpack.c.l.b16 %v267
      %v274 = vpack.c.b16 %v273, %v272
      %v277 = vunpack.c.l.b16 %v268
      %v278 = vunpack.c.l.b16 %v269
      %v279 = vpack.c.b16 %v278, %v277
      %vm280 = vcmask 113664
      %v282 = vsel %vm280, %v274, 0
      %vm284 = vcmask 1046528
      %v286 = vsel %vm284, %v279, 0
      %288 = vmatpush.bf16.msra.mxu0 0
      %289 = vmatpush.bf16.msra.mxu0 0
      %290 = vmatpush.bf16.msra.mxu0 0
      %291 = vmatpush.bf16.msra.mxu0 0
      %292 = vmatpush.bf16.msra.mxu0 0
      %293 = vmatpush.bf16.msra.mxu0 0
      %294 = vmatpush.bf16.msra.mxu0 0
      %295 = vmatpush.bf16.msra.mxu0 %v286
      %296 = vmatmul.bf16.gmra.mxu0 %v282
      %v297 = vpop.f32.mrf.mxu0
      %v298 = vadd.f32 0.0, %v297
      %v299 = vpop.f32.mrf.mxu0
      %v300 = vadd.f32 0.0, %v299
      %301 = vdwg.mxu0
      %v302 = vpack.c.bf16 %v300, %v298
      %v303 = vld [vmem:[%s2] sm:$0xf]
      %v304 = vld [vmem:[%s2 + $0x4] sm:$0xf]
      %v305 = vld [vmem:[%s2 + $0x8] sm:$0xf]
      %v306 = vld [vmem:[%s2 + $0xc] sm:$0xf]
      %v307 = vld [vmem:[%s3] sm:$0x1]
      %v309 = vperm.slane %v307, 0
      %v315 = vunpack.c.l.b16 %v303
      %v316 = vunpack.c.l.b16 %v304
      %v317 = vunpack.c.l.b16 %v305
      %v318 = vunpack.c.l.b16 %v306
      %v319 = vpack.c.b16 %v316, %v315
      %v320 = vpack.c.b16 %v318, %v317
      %vm323 = vcmask 261120
      %v325 = vsel %vm323, %v302, 0
      %327 = vmatpush.bf16.msra.mxu0 0
      %328 = vmatpush.bf16.msra.mxu0 0
      %329 = vmatpush.bf16.msra.mxu0 0
      %330 = vmatpush.bf16.msra.mxu0 0
      %331 = vmatpush.bf16.msra.mxu0 0
      %332 = vmatpush.bf16.msra.mxu0 0
      %333 = vmatpush.bf16.msra.mxu0 %v320
      %334 = vmatpush.bf16.msra.mxu0 %v319
      %335 = vmatmul.bf16.gmra.mxu0 %v325
      %v336 = vpop.f32.mrf.mxu0
      %v337 = vadd.f32 %v309, %v336
      %v338 = vpop.f32.mrf.mxu0
      %v339 = vadd.f32 %v309, %v338
      %340 = vdwg.mxu0
      %vm341 = vcmp.gt.f32.partialorder %v337, 0.0
      %vm342 = vcmp.gt.f32.partialorder %v339, 0.0
      %v343 = vmul.f32 %v337, 1.442695
      %v344 = vpow.pop %v343
      %v345 = vmul.f32 %v339, 1.442695
      %v346 = vpow.pop %v345
      %v347 = vsub.f32 %v344, 1.0
      %v348 = vsub.f32 %v346, 1.0
      %v349 = vsel %vm341, %v337, %v347
      %v350 = vsel %vm342, %v339, %v348
      %v351 = vld [vmem:[%s259] sm:$0xf]
      %v352 = vld [vmem:[%s259 + $0x4] sm:$0x7]
      %v353 = vunpack.c.l.bf16 %v351
      %v354 = vunpack.c.l.bf16 %v352
      %v355 = vadd.f32 %v349, %v353
      %v356 = vadd.f32 %v350, %v354
      %v357 = vpack.c.bf16 %v355, %v355
      %v358 = vpack.c.bf16 %v356, %v356
      %vm359 = vcmask 257024
      %360 = vst.msk [vmem:[%s264] sm:$0xf] %vm359, %v357
      %vm361 = vcmask 256000
      %362 = vst.msk [vmem:[%s264 + $0x4] sm:$0x7] %vm361, %v358
      %p363 = scmp.lt.s32.totalorder %s16, 1
      %s364 = scalar_select %p363, %s16, 1
      %s365 = smul.addr %s364, 2
      %s366 = smul.addr %s365, 4
      %s367 = scalar_lea.vmem %s5, %s366
      // Predicated region
      $region41: #{gnet_forward.16} parent=39 // pred_check
        %p368 = pneg %p154
      $region42: #{gnet_forward.16} parent=39 // pred_check_branch
        %370 = sbr.rel (%p368) target = $region44
      $region43: #{gnet_forward.16} parent=39 // pred_region
        _
      $region44: #{gnet_forward.16} parent=39 // pred_fallthru
        _
    $region40: #{gnet_forward.16} parent=5 // pred_fallthru
      _
    %p371 = scmp.le.s32.totalorder 2, %s11
    // Predicated region
    $region45: #{gnet_forward.16} parent=5 // pred_check
      %p372 = pneg %p371
    $region46: #{gnet_forward.16} parent=5 // pred_check_branch
      %374 = sbr.rel (%p372) target = $region48
    $region47: #{gnet_forward.16} parent=5 // pred_region
      %s375 = ssub.s32 %s11, 2
      // Predicated region
      $region49: #{gnet_forward.16} parent=47 // pred_check
        %p376 = pneg %p160
      $region50: #{gnet_forward.16} parent=47 // pred_check_branch
        %378 = sbr.rel (%p376) target = $region52
      $region51: #{gnet_forward.16} parent=47 // pred_region
        %p379 = scmp.lt.s32.totalorder %s17, 1
        %s380 = scalar_select %p379, %s17, 1
        %s381 = smul.addr %s380, 2
        %s382 = smul.addr %s381, 4
        %s383 = scalar_lea.vmem %s5, %s382
      $region52: #{gnet_forward.16} parent=47 // pred_fallthru
        _
    $region48: #{gnet_forward.16} parent=5 // pred_fallthru
      _
  $region6: #{gnet_forward.16} parent=0 // loop_footer
    %s15 = sadd.s32 1, %s11
  $region7: #{gnet_forward.16} parent=0 // loop_footer_branch
    %10 = sbr.rel target = $region3
  $region8: #{gnet_forward.16} parent=0 // loop_exit
    _

// kernel: gnet_forward.17
$region0: #{gnet_forward.17}
  #allocation0 [shape = 'u32[]', space=smem, size = 0x4, offset = 0x4, fixed_abs, tag = 'smem constant byte address 0x4 - core index']
  #allocation1 [shape = 'u32[72,128]{1,0:T(1,128)}', space=vmem, size = 0x9000, scoped, tag = 'internal scratch']
  %s0 = inlined_call_operand.vmem [shape: bf16[2,16,16], index: 0, kind: input, shape index: {}]
  %s1 = inlined_call_operand.vmem [shape: bf16[2,16,32], index: 1, kind: input, shape index: {}]
  %s2 = inlined_call_operand.vmem [shape: bf16[32,32], index: 2, kind: input, shape index: {}]
  %s3 = inlined_call_operand.vmem [shape: f32[1,32], index: 3, kind: input, shape index: {}]
  %s4 = inlined_call_operand.vmem [shape: bf16[2,16,32], index: 4, kind: input, shape index: {}]
  %s5 = inlined_call_operand.vmem [shape: bf16[2,16,32], index: 5, kind: input, shape index: {}]
  %s6 = inlined_call_operand.vmem [shape: bf16[2,16,32], index: 6, kind: output, shape index: {0}]
  %s7 = inlined_call_operand.vmem [shape: bf16[2,16,32], index: 7, kind: output, shape index: {1}]
  %8 = xla_tuple %s6, %s7
  %s9 = sld [smem:[#allocation0]]
  $region65: #{gnet_forward.17} parent=0
    _
  %s11 = ssub.s32 1, %s9
  %s12 = scalar_select 0, %s11, %s9
  loop: start=0, step=1, limit=4
  $region2: #{gnet_forward.17} parent=0 // loop_pre_header
    _
  $region3: #{gnet_forward.17} parent=0 // loop_header
    %s14 = sphi 0, %s18
    %p15 = scmp.ge.s32.totalorder %s14, 4
    %s24 = sphi 0, %s26
    %s27 = sphi 0, %s24
    %s28 = sphi 0, %s27
    %s44 = sphi 0, %s28
    %s50 = sphi 0, %s52
    %s53 = sphi 0, %s50
    %s54 = sphi 0, %s53
    %s70 = sphi 0, %s54
    %s74 = sphi 0, %s74
    %s76 = sphi 0, %s74
    %s77 = sphi 0, %s76
    %s91 = sphi 0, %s77
    %s95 = sphi 0, %s95
    %s97 = sphi 0, %s95
    %s98 = sphi 0, %s97
    %s112 = sphi 0, %s98
    %s118 = sphi 0, %s120
    %s121 = sphi 0, %s118
    %s122 = sphi 0, %s121
    %s138 = sphi 0, %s122
    %s144 = sphi 0, %s146
    %s147 = sphi 0, %s144
    %s148 = sphi 0, %s147
    %s164 = sphi 0, %s148
    %s170 = sphi 0, %s172
    %s173 = sphi 0, %s170
    %s174 = sphi 0, %s173
    %s190 = sphi 0, %s174
    %s196 = sphi 0, %s198
    %s199 = sphi 0, %s196
    %s200 = sphi 0, %s199
    %s216 = sphi 0, %s200
  $region4: #{gnet_forward.17} parent=0 // loop_header_branch
    %17 = sbr.rel (%p15) target = $region8
  $region5: #{gnet_forward.17} parent=0 // loop_body
    %s19 = ssub.s32 %s14, 1
    %s20 = ssub.s32 %s14, 2
    %s21 = sadd.s32 %s14, 1
    %s22 = ssub.s32 %s14, %s21
    %p23 = scmp.eq.s32.totalorder %s22, 0
    %s25 = sadd.s32 %s24, 1
    %s26 = scalar_select %p23, %s24, %s25
    %p29 = pneg %p23
    %p30 = scmp.eq.s32.totalorder %s14, 1
    %p31 = por %p29, %p30
    %p32 = scmp.ne.s32.totalorder %s24, %s27
    %p33 = scmp.eq.s32.totalorder %s14, 0
    %p34 = por %p32, %p33
    %p35 = scmp.ne.s32.totalorder %s24, %s27
    %p36 = scmp.eq.s32.totalorder %s19, 1
    %p37 = por %p35, %p36
    %p38 = scmp.ne.s32.totalorder %s27, %s28
    %p39 = scmp.eq.s32.totalorder %s19, 0
    %p40 = por %p38, %p39
    %p41 = scmp.ne.s32.totalorder %s27, %s28
    %p42 = scmp.eq.s32.totalorder %s20, 1
    %p43 = por %p41, %p42
    %p45 = scmp.ne.s32.totalorder %s28, %s44
    %p46 = scmp.eq.s32.totalorder %s20, 0
    %p47 = por %p45, %p46
    %s48 = ssub.s32 %s14, %s21
    %p49 = scmp.eq.s32.totalorder %s48, 0
    %s51 = sadd.s32 %s50, 1
    %s52 = scalar_select %p49, %s50, %s51
    %p55 = pneg %p49
    %p56 = scmp.eq.s32.totalorder %s14, 1
    %p57 = por %p55, %p56
    %p58 = scmp.ne.s32.totalorder %s50, %s53
    %p59 = scmp.eq.s32.totalorder %s14, 0
    %p60 = por %p58, %p59
    %p61 = scmp.ne.s32.totalorder %s50, %s53
    %p62 = scmp.eq.s32.totalorder %s19, 1
    %p63 = por %p61, %p62
    %p64 = scmp.ne.s32.totalorder %s53, %s54
    %p65 = scmp.eq.s32.totalorder %s19, 0
    %p66 = por %p64, %p65
    %p67 = scmp.ne.s32.totalorder %s53, %s54
    %p68 = scmp.eq.s32.totalorder %s20, 1
    %p69 = por %p67, %p68
    %p71 = scmp.ne.s32.totalorder %s54, %s70
    %p72 = scmp.eq.s32.totalorder %s20, 0
    %p73 = por %p71, %p72
    %s75 = sadd.s32 %s74, 1
    %p78 = scmp.eq.s32.totalorder %s14, 1
    %p79 = scmp.ne.s32.totalorder %s74, %s76
    %p80 = scmp.eq.s32.totalorder %s14, 0
    %p81 = por %p79, %p80
    %p82 = scmp.ne.s32.totalorder %s74, %s76
    %p83 = scmp.eq.s32.totalorder %s19, 1
    %p84 = por %p82, %p83
    %p85 = scmp.ne.s32.totalorder %s76, %s77
    %p86 = scmp.eq.s32.totalorder %s19, 0
    %p87 = por %p85, %p86
    %p88 = scmp.ne.s32.totalorder %s76, %s77
    %p89 = scmp.eq.s32.totalorder %s20, 1
    %p90 = por %p88, %p89
    %p92 = scmp.ne.s32.totalorder %s77, %s91
    %p93 = scmp.eq.s32.totalorder %s20, 0
    %p94 = por %p92, %p93
    %s96 = sadd.s32 %s95, 1
    %p99 = scmp.eq.s32.totalorder %s14, 1
    %p100 = scmp.ne.s32.totalorder %s95, %s97
    %p101 = scmp.eq.s32.totalorder %s14, 0
    %p102 = por %p100, %p101
    %p103 = scmp.ne.s32.totalorder %s95, %s97
    %p104 = scmp.eq.s32.totalorder %s19, 1
    %p105 = por %p103, %p104
    %p106 = scmp.ne.s32.totalorder %s97, %s98
    %p107 = scmp.eq.s32.totalorder %s19, 0
    %p108 = por %p106, %p107
    %p109 = scmp.ne.s32.totalorder %s97, %s98
    %p110 = scmp.eq.s32.totalorder %s20, 1
    %p111 = por %p109, %p110
    %p113 = scmp.ne.s32.totalorder %s98, %s112
    %p114 = scmp.eq.s32.totalorder %s20, 0
    %p115 = por %p113, %p114
    %s116 = ssub.s32 %s14, %s21
    %p117 = scmp.eq.s32.totalorder %s116, 0
    %s119 = sadd.s32 %s118, 1
    %s120 = scalar_select %p117, %s118, %s119
    %p123 = pneg %p117
    %p124 = scmp.eq.s32.totalorder %s14, 1
    %p125 = por %p123, %p124
    %p126 = scmp.ne.s32.totalorder %s118, %s121
    %p127 = scmp.eq.s32.totalorder %s14, 0
    %p128 = por %p126, %p127
    %p129 = scmp.ne.s32.totalorder %s118, %s121
    %p130 = scmp.eq.s32.totalorder %s19, 1
    %p131 = por %p129, %p130
    %p132 = scmp.ne.s32.totalorder %s121, %s122
    %p133 = scmp.eq.s32.totalorder %s19, 0
    %p134 = por %p132, %p133
    %p135 = scmp.ne.s32.totalorder %s121, %s122
    %p136 = scmp.eq.s32.totalorder %s20, 1
    %p137 = por %p135, %p136
    %p139 = scmp.ne.s32.totalorder %s122, %s138
    %p140 = scmp.eq.s32.totalorder %s20, 0
    %p141 = por %p139, %p140
    %s142 = ssub.s32 %s14, %s21
    %p143 = scmp.eq.s32.totalorder %s142, 0
    %s145 = sadd.s32 %s144, 1
    %s146 = scalar_select %p143, %s144, %s145
    %p149 = pneg %p143
    %p150 = scmp.eq.s32.totalorder %s14, 1
    %p151 = por %p149, %p150
    %p152 = scmp.ne.s32.totalorder %s144, %s147
    %p153 = scmp.eq.s32.totalorder %s14, 0
    %p154 = por %p152, %p153
    %p155 = scmp.ne.s32.totalorder %s144, %s147
    %p156 = scmp.eq.s32.totalorder %s19, 1
    %p157 = por %p155, %p156
    %p158 = scmp.ne.s32.totalorder %s147, %s148
    %p159 = scmp.eq.s32.totalorder %s19, 0
    %p160 = por %p158, %p159
    %p161 = scmp.ne.s32.totalorder %s147, %s148
    %p162 = scmp.eq.s32.totalorder %s20, 1
    %p163 = por %p161, %p162
    %p165 = scmp.ne.s32.totalorder %s148, %s164
    %p166 = scmp.eq.s32.totalorder %s20, 0
    %p167 = por %p165, %p166
    %s168 = ssub.s32 %s14, %s21
    %p169 = scmp.eq.s32.totalorder %s168, 0
    %s171 = sadd.s32 %s170, 1
    %s172 = scalar_select %p169, %s170, %s171
    %p175 = pneg %p169
    %p176 = scmp.eq.s32.totalorder %s14, 1
    %p177 = por %p175, %p176
    %p178 = scmp.ne.s32.totalorder %s170, %s173
    %p179 = scmp.eq.s32.totalorder %s14, 0
    %p180 = por %p178, %p179
    %p181 = scmp.ne.s32.totalorder %s170, %s173
    %p182 = scmp.eq.s32.totalorder %s19, 1
    %p183 = por %p181, %p182
    %p184 = scmp.ne.s32.totalorder %s173, %s174
    %p185 = scmp.eq.s32.totalorder %s19, 0
    %p186 = por %p184, %p185
    %p187 = scmp.ne.s32.totalorder %s173, %s174
    %p188 = scmp.eq.s32.totalorder %s20, 1
    %p189 = por %p187, %p188
    %p191 = scmp.ne.s32.totalorder %s174, %s190
    %p192 = scmp.eq.s32.totalorder %s20, 0
    %p193 = por %p191, %p192
    %s194 = ssub.s32 %s14, %s21
    %p195 = scmp.eq.s32.totalorder %s194, 0
    %s197 = sadd.s32 %s196, 1
    %s198 = scalar_select %p195, %s196, %s197
    %p201 = pneg %p195
    %p202 = scmp.eq.s32.totalorder %s14, 1
    %p203 = por %p201, %p202
    %p204 = scmp.ne.s32.totalorder %s196, %s199
    %p205 = scmp.eq.s32.totalorder %s14, 0
    %p206 = por %p204, %p205
    %p207 = scmp.ne.s32.totalorder %s196, %s199
    %p208 = scmp.eq.s32.totalorder %s19, 1
    %p209 = por %p207, %p208
    %p210 = scmp.ne.s32.totalorder %s199, %s200
    %p211 = scmp.eq.s32.totalorder %s19, 0
    %p212 = por %p210, %p211
    %p213 = scmp.ne.s32.totalorder %s199, %s200
    %p214 = scmp.eq.s32.totalorder %s20, 1
    %p215 = por %p213, %p214
    %p217 = scmp.ne.s32.totalorder %s200, %s216
    %p218 = scmp.eq.s32.totalorder %s20, 0
    %p219 = por %p217, %p218
    %p220 = scmp.le.s32.totalorder 1, %s14
    %p221 = scmp.lt.s32.totalorder %s14, 3
    %p222 = pnand %p220, %p221
    %p223 = pneg %p222
    // Predicated region
    $region9: #{gnet_forward.17} parent=5 // pred_check
      _
    $region10: #{gnet_forward.17} parent=5 // pred_check_branch
      %225 = sbr.rel (%p222) target = $region12
    $region11: #{gnet_forward.17} parent=5 // pred_region
      %s226 = ssub.s32 %s14, 1
      // Predicated region
      $region13: #{gnet_forward.17} parent=11 // pred_check
        %p227 = pneg %p87
      $region14: #{gnet_forward.17} parent=11 // pred_check_branch
        %229 = sbr.rel (%p227) target = $region16
      $region15: #{gnet_forward.17} parent=11 // pred_region
        _
      $region16: #{gnet_forward.17} parent=11 // pred_fallthru
        _
      // Predicated region
      $region17: #{gnet_forward.17} parent=11 // pred_check
        %p230 = pneg %p108
      $region18: #{gnet_forward.17} parent=11 // pred_check_branch
        %232 = sbr.rel (%p230) target = $region20
      $region19: #{gnet_forward.17} parent=11 // pred_region
        _
      $region20: #{gnet_forward.17} parent=11 // pred_fallthru
        _
    $region12: #{gnet_forward.17} parent=5 // pred_fallthru
      _
    %p233 = scmp.lt.s32.totalorder %s14, 2
    // Predicated region
    $region21: #{gnet_forward.17} parent=5 // pred_check
      %p234 = pneg %p233
    $region22: #{gnet_forward.17} parent=5 // pred_check_branch
      %236 = sbr.rel (%p234) target = $region24
    $region23: #{gnet_forward.17} parent=5 // pred_region
      // Predicated region
      $region25: #{gnet_forward.17} parent=23 // pred_check
        %p237 = pneg %p34
      $region26: #{gnet_forward.17} parent=23 // pred_check_branch
        %239 = sbr.rel (%p237) target = $region28
      $region27: #{gnet_forward.17} parent=23 // pred_region
        %p240 = scmp.lt.s32.totalorder %s14, 1
        %s241 = scalar_select %p240, %s14, 1
        %s242 = smul.addr %s241, 2
        %s243 = smul.addr %s242, 4
        %s244 = scalar_lea.vmem %s0, %s243
      $region28: #{gnet_forward.17} parent=23 // pred_fallthru
        _
      // Predicated region
      $region29: #{gnet_forward.17} parent=23 // pred_check
        %p245 = pneg %p60
      $region30: #{gnet_forward.17} parent=23 // pred_check_branch
        %247 = sbr.rel (%p245) target = $region32
      $region31: #{gnet_forward.17} parent=23 // pred_region
        %p248 = scmp.lt.s32.totalorder %s14, 1
        %s249 = scalar_select %p248, %s14, 1
        %s250 = smul.addr %s249, 2
        %s251 = smul.addr %s250, 4
        %s252 = scalar_lea.vmem %s1, %s251
      $region32: #{gnet_forward.17} parent=23 // pred_fallthru
        _
      // Predicated region
      $region33: #{gnet_forward.17} parent=23 // pred_check
        %p253 = pneg %p128
      $region34: #{gnet_forward.17} parent=23 // pred_check_branch
        %255 = sbr.rel (%p253) target = $region36
      $region35: #{gnet_forward.17} parent=23 // pred_region
        %p256 = scmp.lt.s32.totalorder %s14, 1
        %s257 = scalar_select %p256, %s14, 1
        %s258 = smul.addr %s257, 2
        %s259 = smul.addr %s258, 4
        %s260 = scalar_lea.vmem %s4, %s259
      $region36: #{gnet_forward.17} parent=23 // pred_fallthru
        _
      // Predicated region
      $region37: #{gnet_forward.17} parent=23 // pred_check
        %p261 = pneg %p154
      $region38: #{gnet_forward.17} parent=23 // pred_check_branch
        %263 = sbr.rel (%p261) target = $region40
      $region39: #{gnet_forward.17} parent=23 // pred_region
        %p264 = scmp.lt.s32.totalorder %s14, 1
        %s265 = scalar_select %p264, %s14, 1
        %s266 = smul.addr %s265, 2
        %s267 = smul.addr %s266, 4
        %s268 = scalar_lea.vmem %s5, %s267
      $region40: #{gnet_forward.17} parent=23 // pred_fallthru
        _
    $region24: #{gnet_forward.17} parent=5 // pred_fallthru
      _
    %p269 = scmp.le.s32.totalorder 1, %s14
    %p270 = scmp.lt.s32.totalorder %s14, 3
    %p271 = pnand %p269, %p270
    %p272 = pneg %p271
    // Predicated region
    $region41: #{gnet_forward.17} parent=5 // pred_check
      _
    $region42: #{gnet_forward.17} parent=5 // pred_check_branch
      %274 = sbr.rel (%p271) target = $region44
    $region43: #{gnet_forward.17} parent=5 // pred_region
      %s275 = ssub.s32 %s14, 1
      %p276 = scmp.lt.s32.totalorder %s19, 1
      %s277 = scalar_select %p276, %s19, 1
      %s278 = smul.addr %s277, 2
      %s279 = smul.addr %s278, 4
      %s280 = scalar_lea.vmem %s0, %s279
      %p281 = pneg %p40
      %p282 = pneg %p37
      %p283 = scmp.lt.s32.totalorder %s19, 1
      %s284 = scalar_select %p283, %s19, 1
      %s285 = smul.addr %s284, 2
      %s286 = smul.addr %s285, 4
      %s287 = scalar_lea.vmem %s1, %s286
      %p288 = pneg %p66
      %p289 = pneg %p63
      %p290 = pneg %p87
      %p291 = pneg %p84
      %p292 = pneg %p108
      %p293 = pneg %p105
      %p294 = scmp.lt.s32.totalorder %s19, 1
      %s295 = scalar_select %p294, %s19, 1
      %s296 = smul.addr %s295, 2
      %s297 = smul.addr %s296, 4
      %s298 = scalar_lea.vmem %s4, %s297
      %p299 = pneg %p134
      %p300 = pneg %p131
      %p301 = scmp.lt.s32.totalorder %s19, 1
      %s302 = scalar_select %p301, %s19, 1
      %s303 = smul.addr %s302, 2
      %s304 = smul.addr %s303, 4
      %s305 = scalar_lea.vmem %s5, %s304
      %p306 = pneg %p160
      %p307 = pneg %p157
      %p308 = pneg %p186
      %p309 = pneg %p183
      %p310 = scmp.lt.s32.totalorder %s19, 1
      %s311 = scalar_select %p310, %s19, 1
      %s312 = smul.addr %s311, 2
      %s313 = smul.addr %s312, 4
      %s314 = scalar_lea.vmem %s6, %s313
      %p315 = pneg %p212
      %p316 = pneg %p209
      %p317 = scmp.lt.s32.totalorder %s19, 1
      %s318 = scalar_select %p317, %s19, 1
      %s319 = smul.addr %s318, 2
      %s320 = smul.addr %s319, 4
      %s321 = scalar_lea.vmem %s7, %s320
      %p322 = scmp.lt.s32.totalorder %s19, 1
      %s323 = scalar_select %p322, %s19, 1
      %s324 = smul.addr %s323, 2
      %s325 = smul.addr %s324, 4
      %s326 = scalar_lea.vmem %s0, %s325
      %p327 = scmp.lt.s32.totalorder %s19, 1
      %s328 = scalar_select %p327, %s19, 1
      %s329 = smul.addr %s328, 2
      %s330 = smul.addr %s329, 4
      %s331 = scalar_lea.vmem %s1, %s330
      %p332 = scmp.lt.s32.totalorder %s19, 1
      %s333 = scalar_select %p332, %s19, 1
      %s334 = smul.addr %s333, 2
      %s335 = smul.addr %s334, 4
      %s336 = scalar_lea.vmem %s4, %s335
      %p337 = scmp.lt.s32.totalorder %s19, 1
      %s338 = scalar_select %p337, %s19, 1
      %s339 = smul.addr %s338, 2
      %s340 = smul.addr %s339, 4
      %s341 = scalar_lea.vmem %s5, %s340
      %p342 = scmp.lt.s32.totalorder %s19, 1
      %s343 = scalar_select %p342, %s19, 1
      %s344 = smul.addr %s343, 2
      %s345 = smul.addr %s344, 4
      %s346 = scalar_lea.vmem %s6, %s345
      %p347 = scmp.lt.s32.totalorder %s19, 1
      %s348 = scalar_select %p347, %s19, 1
      %s349 = smul.addr %s348, 2
      %s350 = smul.addr %s349, 4
      %s351 = scalar_lea.vmem %s7, %s350
      %v353 = vld [vmem:[%s326] sm:$0xf]
      %v354 = vld [vmem:[%s326 + $0x4] sm:$0xf]
      %v355 = vld [vmem:[%s331] sm:$0xf]
      %v356 = vld [vmem:[%s331 + $0x4] sm:$0xf]
      %v359 = vunpack.c.l.b16 %v353
      %v360 = vunpack.c.l.b16 %v354
      %v361 = vpack.c.b16 %v360, %v359
      %v364 = vunpack.c.l.b16 %v355
      %v365 = vunpack.c.l.b16 %v356
      %v366 = vpack.c.b16 %v365, %v364
      %vm368 = vcmask 130048
      %v370 = vsel %vm368, %v361, 0
      %372 = vmatpush.bf16.msra.mxu0 0
      %373 = vmatpush.bf16.msra.mxu0 0
      %374 = vmatpush.bf16.msra.mxu0 0
      %375 = vmatpush.bf16.msra.mxu0 0
      %376 = vmatpush.bf16.msra.mxu0 0
      %377 = vmatpush.bf16.msra.mxu0 0
      %378 = vmatpush.bf16.msra.mxu0 0
      %379 = vmatpush.bf16.msra.mxu0 %v366
      %380 = vmatmul.bf16.gmra.mxu0 %v370
      %v381 = vpop.f32.mrf.mxu0
      %v382 = vadd.f32 0.0, %v381
      %v383 = vpop.f32.mrf.mxu0
      %v384 = vadd.f32 0.0, %v383
      %385 = vdwg.mxu0
      %v386 = vpack.c.bf16 %v384, %v382
      %v387 = vld [vmem:[%s2] sm:$0xf]
      %v388 = vld [vmem:[%s2 + $0x4] sm:$0xf]
      %v389 = vld [vmem:[%s2 + $0x8] sm:$0xf]
      %v390 = vld [vmem:[%s2 + $0xc] sm:$0xf]
      %v391 = vld [vmem:[%s3] sm:$0x1]
      %v393 = vperm.slane %v391, 0
      %v399 = vunpack.c.l.b16 %v387
      %v400 = vunpack.c.l.b16 %v388
      %v401 = vunpack.c.l.b16 %v389
      %v402 = vunpack.c.l.b16 %v390
      %v403 = vpack.c.b16 %v400, %v399
      %v404 = vpack.c.b16 %v402, %v401
      %vm407 = vcmask 261120
      %v409 = vsel %vm407, %v386, 0
      %411 = vmatpush.bf16.msra.mxu0 0
      %412 = vmatpush.bf16.msra.mxu0 0
      %413 = vmatpush.bf16.msra.mxu0 0
      %414 = vmatpush.bf16.msra.mxu0 0
      %415 = vmatpush.bf16.msra.mxu0 0
      %416 = vmatpush.bf16.msra.mxu0 0
      %417 = vmatpush.bf16.msra.mxu0 %v404
      %418 = vmatpush.bf16.msra.mxu0 %v403
      %419 = vmatmul.bf16.gmra.mxu0 %v409
      %v420 = vpop.f32.mrf.mxu0
      %v421 = vadd.f32 %v393, %v420
      %v422 = vpop.f32.mrf.mxu0
      %v423 = vadd.f32 %v393, %v422
      %424 = vdwg.mxu0
      %vm425 = vcmp.gt.f32.partialorder %v421, 0.0
      %vm426 = vcmp.gt.f32.partialorder %v423, 0.0
      %v427 = vmul.f32 %v421, 1.442695
      %v428 = vpow.pop %v427
      %v429 = vmul.f32 %v423, 1.442695
      %v430 = vpow.pop %v429
      %v431 = vsub.f32 %v428, 1.0
      %v432 = vsub.f32 %v430, 1.0
      %v433 = vsel %vm425, %v421, %v431
      %v434 = vsel %vm426, %v423, %v432
      %v435 = vld [vmem:[%s336] sm:$0xf]
      %v436 = vld [vmem:[%s336 + $0x4] sm:$0xf]
      %v437 = vunpack.c.l.bf16 %v435
      %v438 = vunpack.c.l.bf16 %v436
      %v439 = vadd.f32 %v433, %v437
      %v440 = vadd.f32 %v434, %v438
      %v441 = vpack.c.bf16 %v439, %v439
      %v442 = vpack.c.bf16 %v440, %v440
      %vm443 = vcmask 257024
      %444 = vst.msk [vmem:[%s346] sm:$0xf] %vm443, %v441
      %445 = vst.msk [vmem:[%s346 + $0x4] sm:$0xf] %vm443, %v442
      %v446 = vld [vmem:[%s341] sm:$0xf]
      %v447 = vld [vmem:[%s341 + $0x4] sm:$0xf]
      %v448 = vunpack.c.l.bf16 %v446
      %v449 = vunpack.c.l.bf16 %v447
      %v450 = vadd.f32 %v439, %v448
      %v451 = vadd.f32 %v440, %v449
      %v452 = vpack.c.bf16 %v450, %v450
      %v453 = vpack.c.bf16 %v451, %v451
      %454 = vst.msk [vmem:[%s351] sm:$0xf] %vm443, %v452
      %455 = vst.msk [vmem:[%s351 + $0x4] sm:$0xf] %vm443, %v453
      %p456 = scmp.lt.s32.totalorder %s19, 1
      %s457 = scalar_select %p456, %s19, 1
      %s458 = smul.addr %s457, 2
      %s459 = smul.addr %s458, 4
      %s460 = scalar_lea.vmem %s6, %s459
      %p461 = scmp.lt.s32.totalorder %s19, 1
      %s462 = scalar_select %p461, %s19, 1
      %s463 = smul.addr %s462, 2
      %s464 = smul.addr %s463, 4
      %s465 = scalar_lea.vmem %s7, %s464
      // Predicated region
      $region45: #{gnet_forward.17} parent=43 // pred_check
        %p466 = pneg %p183
      $region46: #{gnet_forward.17} parent=43 // pred_check_branch
        %468 = sbr.rel (%p466) target = $region48
      $region47: #{gnet_forward.17} parent=43 // pred_region
        _
      $region48: #{gnet_forward.17} parent=43 // pred_fallthru
        _
      // Predicated region
      $region49: #{gnet_forward.17} parent=43 // pred_check
        %p469 = pneg %p209
      $region50: #{gnet_forward.17} parent=43 // pred_check_branch
        %471 = sbr.rel (%p469) target = $region52
      $region51: #{gnet_forward.17} parent=43 // pred_region
        _
      $region52: #{gnet_forward.17} parent=43 // pred_fallthru
        _
    $region44: #{gnet_forward.17} parent=5 // pred_fallthru
      _
    %p472 = scmp.le.s32.totalorder 2, %s14
    // Predicated region
    $region53: #{gnet_forward.17} parent=5 // pred_check
      %p473 = pneg %p472
    $region54: #{gnet_forward.17} parent=5 // pred_check_branch
      %475 = sbr.rel (%p473) target = $region56
    $region55: #{gnet_forward.17} parent=5 // pred_region
      %s476 = ssub.s32 %s14, 2
      // Predicated region
      $region57: #{gnet_forward.17} parent=55 // pred_check
        %p477 = pneg %p189
      $region58: #{gnet_forward.17} parent=55 // pred_check_branch
        %479 = sbr.rel (%p477) target = $region60
      $region59: #{gnet_forward.17} parent=55 // pred_region
        %p480 = scmp.lt.s32.totalorder %s20, 1
        %s481 = scalar_select %p480, %s20, 1
        %s482 = smul.addr %s481, 2
        %s483 = smul.addr %s482, 4
        %s484 = scalar_lea.vmem %s6, %s483
      $region60: #{gnet_forward.17} parent=55 // pred_fallthru
        _
      // Predicated region
      $region61: #{gnet_forward.17} parent=55 // pred_check
        %p485 = pneg %p215
      $region62: #{gnet_forward.17} parent=55 // pred_check_branch
        %487 = sbr.rel (%p485) target = $region64
      $region63: #{gnet_forward.17} parent=55 // pred_region
        %p488 = scmp.lt.s32.totalorder %s20, 1
        %s489 = scalar_select %p488, %s20, 1
        %s490 = smul.addr %s489, 2
        %s491 = smul.addr %s490, 4
        %s492 = scalar_lea.vmem %s7, %s491
      $region64: #{gnet_forward.17} parent=55 // pred_fallthru
        _
    $region56: #{gnet_forward.17} parent=5 // pred_fallthru
      _
  $region6: #{gnet_forward.17} parent=0 // loop_footer
    %s18 = sadd.s32 1, %s14
  $region7: #{gnet_forward.17} parent=0 // loop_footer_branch
    %13 = sbr.rel target = $region3
  $region8: #{gnet_forward.17} parent=0 // loop_exit
    _

// kernel: gnet_forward.18
$region0: #{gnet_forward.18}
  #allocation0 [shape = 'u32[]', space=smem, size = 0x4, offset = 0x4, fixed_abs, tag = 'smem constant byte address 0x4 - core index']
  #allocation1 [shape = 'u32[72,128]{1,0:T(1,128)}', space=vmem, size = 0x9000, scoped, tag = 'internal scratch']
  %s0 = inlined_call_operand.vmem [shape: bf16[2,14,32], index: 0, kind: input, shape index: {}]
  %s1 = inlined_call_operand.vmem [shape: bf16[2,16,32], index: 1, kind: input, shape index: {}]
  %s2 = inlined_call_operand.vmem [shape: bf16[2,16,32], index: 2, kind: input, shape index: {}]
  %s3 = inlined_call_operand.vmem [shape: f32[2,1,288], index: 3, kind: output, shape index: {}]
  %s4 = sld [smem:[#allocation0]]
  $region45: #{gnet_forward.18} parent=0
    _
  %s6 = ssub.s32 1, %s4
  %s7 = scalar_select 0, %s6, %s4
  loop: start=0, step=1, limit=4
  $region2: #{gnet_forward.18} parent=0 // loop_pre_header
    _
  $region3: #{gnet_forward.18} parent=0 // loop_header
    %s9 = sphi 0, %s13
    %p10 = scmp.ge.s32.totalorder %s9, 4
    %s19 = sphi 0, %s21
    %s22 = sphi 0, %s19
    %s23 = sphi 0, %s22
    %s39 = sphi 0, %s23
    %s45 = sphi 0, %s47
    %s48 = sphi 0, %s45
    %s49 = sphi 0, %s48
    %s65 = sphi 0, %s49
    %s71 = sphi 0, %s73
    %s74 = sphi 0, %s71
    %s75 = sphi 0, %s74
    %s91 = sphi 0, %s75
    %s97 = sphi 0, %s99
    %s100 = sphi 0, %s97
    %s101 = sphi 0, %s100
    %s117 = sphi 0, %s101
  $region4: #{gnet_forward.18} parent=0 // loop_header_branch
    %12 = sbr.rel (%p10) target = $region8
  $region5: #{gnet_forward.18} parent=0 // loop_body
    %s14 = ssub.s32 %s9, 1
    %s15 = ssub.s32 %s9, 2
    %s16 = sadd.s32 %s9, 1
    %s17 = ssub.s32 %s9, %s16
    %p18 = scmp.eq.s32.totalorder %s17, 0
    %s20 = sadd.s32 %s19, 1
    %s21 = scalar_select %p18, %s19, %s20
    %p24 = pneg %p18
    %p25 = scmp.eq.s32.totalorder %s9, 1
    %p26 = por %p24, %p25
    %p27 = scmp.ne.s32.totalorder %s19, %s22
    %p28 = scmp.eq.s32.totalorder %s9, 0
    %p29 = por %p27, %p28
    %p30 = scmp.ne.s32.totalorder %s19, %s22
    %p31 = scmp.eq.s32.totalorder %s14, 1
    %p32 = por %p30, %p31
    %p33 = scmp.ne.s32.totalorder %s22, %s23
    %p34 = scmp.eq.s32.totalorder %s14, 0
    %p35 = por %p33, %p34
    %p36 = scmp.ne.s32.totalorder %s22, %s23
    %p37 = scmp.eq.s32.totalorder %s15, 1
    %p38 = por %p36, %p37
    %p40 = scmp.ne.s32.totalorder %s23, %s39
    %p41 = scmp.eq.s32.totalorder %s15, 0
    %p42 = por %p40, %p41
    %s43 = ssub.s32 %s9, %s16
    %p44 = scmp.eq.s32.totalorder %s43, 0
    %s46 = sadd.s32 %s45, 1
    %s47 = scalar_select %p44, %s45, %s46
    %p50 = pneg %p44
    %p51 = scmp.eq.s32.totalorder %s9, 1
    %p52 = por %p50, %p51
    %p53 = scmp.ne.s32.totalorder %s45, %s48
    %p54 = scmp.eq.s32.totalorder %s9, 0
    %p55 = por %p53, %p54
    %p56 = scmp.ne.s32.totalorder %s45, %s48
    %p57 = scmp.eq.s32.totalorder %s14, 1
    %p58 = por %p56, %p57
    %p59 = scmp.ne.s32.totalorder %s48, %s49
    %p60 = scmp.eq.s32.totalorder %s14, 0
    %p61 = por %p59, %p60
    %p62 = scmp.ne.s32.totalorder %s48, %s49
    %p63 = scmp.eq.s32.totalorder %s15, 1
    %p64 = por %p62, %p63
    %p66 = scmp.ne.s32.totalorder %s49, %s65
    %p67 = scmp.eq.s32.totalorder %s15, 0
    %p68 = por %p66, %p67
    %s69 = ssub.s32 %s9, %s16
    %p70 = scmp.eq.s32.totalorder %s69, 0
    %s72 = sadd.s32 %s71, 1
    %s73 = scalar_select %p70, %s71, %s72
    %p76 = pneg %p70
    %p77 = scmp.eq.s32.totalorder %s9, 1
    %p78 = por %p76, %p77
    %p79 = scmp.ne.s32.totalorder %s71, %s74
    %p80 = scmp.eq.s32.totalorder %s9, 0
    %p81 = por %p79, %p80
    %p82 = scmp.ne.s32.totalorder %s71, %s74
    %p83 = scmp.eq.s32.totalorder %s14, 1
    %p84 = por %p82, %p83
    %p85 = scmp.ne.s32.totalorder %s74, %s75
    %p86 = scmp.eq.s32.totalorder %s14, 0
    %p87 = por %p85, %p86
    %p88 = scmp.ne.s32.totalorder %s74, %s75
    %p89 = scmp.eq.s32.totalorder %s15, 1
    %p90 = por %p88, %p89
    %p92 = scmp.ne.s32.totalorder %s75, %s91
    %p93 = scmp.eq.s32.totalorder %s15, 0
    %p94 = por %p92, %p93
    %s95 = ssub.s32 %s9, %s16
    %p96 = scmp.eq.s32.totalorder %s95, 0
    %s98 = sadd.s32 %s97, 1
    %s99 = scalar_select %p96, %s97, %s98
    %p102 = pneg %p96
    %p103 = scmp.eq.s32.totalorder %s9, 1
    %p104 = por %p102, %p103
    %p105 = scmp.ne.s32.totalorder %s97, %s100
    %p106 = scmp.eq.s32.totalorder %s9, 0
    %p107 = por %p105, %p106
    %p108 = scmp.ne.s32.totalorder %s97, %s100
    %p109 = scmp.eq.s32.totalorder %s14, 1
    %p110 = por %p108, %p109
    %p111 = scmp.ne.s32.totalorder %s100, %s101
    %p112 = scmp.eq.s32.totalorder %s14, 0
    %p113 = por %p111, %p112
    %p114 = scmp.ne.s32.totalorder %s100, %s101
    %p115 = scmp.eq.s32.totalorder %s15, 1
    %p116 = por %p114, %p115
    %p118 = scmp.ne.s32.totalorder %s101, %s117
    %p119 = scmp.eq.s32.totalorder %s15, 0
    %p120 = por %p118, %p119
    %p121 = scmp.le.s32.totalorder 1, %s9
    %p122 = scmp.lt.s32.totalorder %s9, 3
    %p123 = pnand %p121, %p122
    %p124 = pneg %p123
    // Predicated region
    $region9: #{gnet_forward.18} parent=5 // pred_check
      _
    $region10: #{gnet_forward.18} parent=5 // pred_check_branch
      %126 = sbr.rel (%p123) target = $region12
    $region11: #{gnet_forward.18} parent=5 // pred_region
      %s127 = ssub.s32 %s9, 1
    $region12: #{gnet_forward.18} parent=5 // pred_fallthru
      _
    %p128 = scmp.lt.s32.totalorder %s9, 2
    // Predicated region
    $region13: #{gnet_forward.18} parent=5 // pred_check
      %p129 = pneg %p128
    $region14: #{gnet_forward.18} parent=5 // pred_check_branch
      %131 = sbr.rel (%p129) target = $region16
    $region15: #{gnet_forward.18} parent=5 // pred_region
      // Predicated region
      $region17: #{gnet_forward.18} parent=15 // pred_check
        %p132 = pneg %p29
      $region18: #{gnet_forward.18} parent=15 // pred_check_branch
        %134 = sbr.rel (%p132) target = $region20
      $region19: #{gnet_forward.18} parent=15 // pred_region
        %p135 = scmp.lt.s32.totalorder %s9, 1
        %s136 = scalar_select %p135, %s9, 1
        %s137 = smul.addr %s136, 2
        %s138 = smul.addr %s137, 4
        %s139 = scalar_lea.vmem %s0, %s138
      $region20: #{gnet_forward.18} parent=15 // pred_fallthru
        _
      // Predicated region
      $region21: #{gnet_forward.18} parent=15 // pred_check
        %p140 = pneg %p55
      $region22: #{gnet_forward.18} parent=15 // pred_check_branch
        %142 = sbr.rel (%p140) target = $region24
      $region23: #{gnet_forward.18} parent=15 // pred_region
        %p143 = scmp.lt.s32.totalorder %s9, 1
        %s144 = scalar_select %p143, %s9, 1
        %s145 = smul.addr %s144, 2
        %s146 = smul.addr %s145, 4
        %s147 = scalar_lea.vmem %s1, %s146
      $region24: #{gnet_forward.18} parent=15 // pred_fallthru
        _
      // Predicated region
      $region25: #{gnet_forward.18} parent=15 // pred_check
        %p148 = pneg %p81
      $region26: #{gnet_forward.18} parent=15 // pred_check_branch
        %150 = sbr.rel (%p148) target = $region28
      $region27: #{gnet_forward.18} parent=15 // pred_region
        %p151 = scmp.lt.s32.totalorder %s9, 1
        %s152 = scalar_select %p151, %s9, 1
        %s153 = smul.addr %s152, 2
        %s154 = smul.addr %s153, 4
        %s155 = scalar_lea.vmem %s2, %s154
      $region28: #{gnet_forward.18} parent=15 // pred_fallthru
        _
    $region16: #{gnet_forward.18} parent=5 // pred_fallthru
      _
    %p156 = scmp.le.s32.totalorder 1, %s9
    %p157 = scmp.lt.s32.totalorder %s9, 3
    %p158 = pnand %p156, %p157
    %p159 = pneg %p158
    // Predicated region
    $region29: #{gnet_forward.18} parent=5 // pred_check
      _
    $region30: #{gnet_forward.18} parent=5 // pred_check_branch
      %161 = sbr.rel (%p158) target = $region32
    $region31: #{gnet_forward.18} parent=5 // pred_region
      %s162 = ssub.s32 %s9, 1
      %p163 = scmp.lt.s32.totalorder %s14, 1
      %s164 = scalar_select %p163, %s14, 1
      %s165 = smul.addr %s164, 2
      %s166 = smul.addr %s165, 4
      %s167 = scalar_lea.vmem %s0, %s166
      %p168 = pneg %p35
      %p169 = pneg %p32
      %p170 = scmp.lt.s32.totalorder %s14, 1
      %s171 = scalar_select %p170, %s14, 1
      %s172 = smul.addr %s171, 2
      %s173 = smul.addr %s172, 4
      %s174 = scalar_lea.vmem %s1, %s173
      %p175 = pneg %p61
      %p176 = pneg %p58
      %p177 = scmp.lt.s32.totalorder %s14, 1
      %s178 = scalar_select %p177, %s14, 1
      %s179 = smul.addr %s178, 2
      %s180 = smul.addr %s179, 4
      %s181 = scalar_lea.vmem %s2, %s180
      %p182 = pneg %p87
      %p183 = pneg %p84
      %p184 = pneg %p113
      %p185 = pneg %p110
      %p186 = scmp.lt.s32.totalorder %s14, 1
      %s187 = scalar_select %p186, %s14, 1
      %s188 = smul.addr %s187, 3
      %s189 = scalar_lea.vmem %s3, %s188
      %p190 = scmp.lt.s32.totalorder %s14, 1
      %s191 = scalar_select %p190, %s14, 1
      %s192 = smul.addr %s191, 2
      %s193 = smul.addr %s192, 4
      %s194 = scalar_lea.vmem %s0, %s193
      %p195 = scmp.lt.s32.totalorder %s14, 1
      %s196 = scalar_select %p195, %s14, 1
      %s197 = smul.addr %s196, 2
      %s198 = smul.addr %s197, 4
      %s199 = scalar_lea.vmem %s1, %s198
      %p200 = scmp.lt.s32.totalorder %s14, 1
      %s201 = scalar_select %p200, %s14, 1
      %s202 = smul.addr %s201, 2
      %s203 = smul.addr %s202, 4
      %s204 = scalar_lea.vmem %s2, %s203
      %p205 = scmp.lt.s32.totalorder %s14, 1
      %s206 = scalar_select %p205, %s14, 1
      %s207 = smul.addr %s206, 3
      %s208 = scalar_lea.vmem %s3, %s207
      %v209 = vld [vmem:[%s194] sm:$0xf]
      %v210 = vld [vmem:[%s194 + $0x4] sm:$0x7]
      %v211 = vunpack.c.l.bf16 %v209
      %v212 = vunpack.c.l.bf16 %v210
      %vm213 = vcmask 261120
      %v214 = vsel %vm213, %v211, -inf
      %vm215 = vcmask 259072
      %v216 = vsel %vm215, %v212, -inf
      %v217 = vmax.f32 %v214, %v216
      %v218 = vrot.slane %v217, 4
      %v219 = vmax.f32 %v217, %v218
      %v220 = vrot.slane %v219, 2
      %v221 = vmax.f32 %v219, %v220
      %v222 = vrot.slane %v221, 1
      %v223 = vmax.f32 %v221, %v222
      %v224 = vsel %vm213, %v211, 0.0
      %v225 = vsel %vm215, %v212, 0.0
      %v226 = vadd.f32 %v224, %v225
      %v227 = vrot.slane %v226, 4
      %v228 = vadd.f32 %v226, %v227
      %v229 = vrot.slane %v228, 2
      %v230 = vadd.f32 %v228, %v229
      %v231 = vrot.slane %v230, 1
      %v232 = vadd.f32 %v230, %v231
      %v233 = vmul.f32 %v232, 0.071428575
      %v234 = vld [vmem:[%s199] sm:$0xf]
      %v235 = vld [vmem:[%s199 + $0x4] sm:$0xf]
      %v236 = vunpack.c.l.bf16 %v234
      %v237 = vunpack.c.l.bf16 %v235
      %v238 = vsel %vm213, %v236, -inf
      %v239 = vsel %vm213, %v237, -inf
      %v240 = vmax.f32 %v238, %v239
      %v241 = vrot.slane %v240, 4
      %v242 = vmax.f32 %v240, %v241
      %v243 = vrot.slane %v242, 2
      %v244 = vmax.f32 %v242, %v243
      %v245 = vrot.slane %v244, 1
      %v246 = vmax.f32 %v244, %v245
      %v247 = vsel %vm213, %v236, 0.0
      %v248 = vsel %vm213, %v237, 0.0
      %v249 = vadd.f32 %v247, %v248
      %v250 = vrot.slane %v249, 4
      %v251 = vadd.f32 %v249, %v250
      %v252 = vrot.slane %v251, 2
      %v253 = vadd.f32 %v251, %v252
      %v254 = vrot.slane %v253, 1
      %v255 = vadd.f32 %v253, %v254
      %v256 = vmul.f32 %v255, 0.0625
      %v257 = vld [vmem:[%s204] sm:$0xf]
      %v258 = vld [vmem:[%s204 + $0x4] sm:$0xf]
      %v259 = vunpack.c.l.bf16 %v257
      %v260 = vunpack.c.l.bf16 %v258
      %v261 = vsel %vm213, %v259, -inf
      %v262 = vsel %vm213, %v260, -inf
      %v263 = vmax.f32 %v261, %v262
      %v264 = vrot.slane %v263, 4
      %v265 = vmax.f32 %v263, %v264
      %v266 = vrot.slane %v265, 2
      %v267 = vmax.f32 %v265, %v266
      %v268 = vrot.slane %v267, 1
      %v269 = vmax.f32 %v267, %v268
      %v270 = vsel %vm213, %v259, 0.0
      %v271 = vsel %vm213, %v260, 0.0
      %v272 = vadd.f32 %v270, %v271
      %v273 = vrot.slane %v272, 4
      %v274 = vadd.f32 %v272, %v273
      %v275 = vrot.slane %v274, 2
      %v276 = vadd.f32 %v274, %v275
      %v277 = vrot.slane %v276, 1
      %v278 = vadd.f32 %v276, %v277
      %v279 = vmul.f32 %v278, 0.0625
      %281 = vrot.lane.b32.xlu0 %v246, 32
      %v282 = vpop.permute.xlu0 %281
      %285 = vrot.lane.b32.xlu0 %v269, 64
      %v286 = vpop.permute.xlu0 %285
      %289 = vrot.lane.b32.xlu0 %v232, 96
      %v290 = vpop.permute.xlu0 %289
      %293 = vrot.lane.b32.xlu0 %v278, 32
      %v294 = vpop.permute.xlu0 %293
      %297 = vrot.lane.b32.xlu0 %v233, 64
      %v298 = vpop.permute.xlu0 %297
      %301 = vrot.lane.b32.xlu0 %v256, 96
      %v302 = vpop.permute.xlu0 %301
      %v304 = vsel %vm213, %v223, %v282
      %vm305 = vcmask 523264
      %v306 = vsel %vm305, %v304, %v286
      %vm307 = vcmask 785408
      %v308 = vsel %vm307, %v306, %v290
      %v309 = vsel %vm213, %v255, %v294
      %v310 = vsel %vm305, %v309, %v298
      %v311 = vsel %vm307, %v310, %v302
      %v315 = vrot.slane %v311, 7
      %v316 = vrot.slane %v279, 6
      %vm317 = vcmask 1040384
      %v318 = vsel %vm317, %v308, %v315
      %vm319 = vcmask 1041408
      %v320 = vsel %vm319, %v318, %v316
      %v322 = vlaneseq
      %vm323 = vcmp.ge.s32.totalorder %v322, 0
      %vm324 = vcmp.lt.s32.totalorder %v322, 288
      %vm325 = vmand %vm323, %vm324
      %326 = vst.msk [vmem:[%s208] sm:$0x7] %vm325, %v320
      %p327 = scmp.lt.s32.totalorder %s14, 1
      %s328 = scalar_select %p327, %s14, 1
      %s329 = smul.addr %s328, 3
      %s330 = scalar_lea.vmem %s3, %s329
      // Predicated region
      $region33: #{gnet_forward.18} parent=31 // pred_check
        %p331 = pneg %p110
      $region34: #{gnet_forward.18} parent=31 // pred_check_branch
        %333 = sbr.rel (%p331) target = $region36
      $region35: #{gnet_forward.18} parent=31 // pred_region
        _
      $region36: #{gnet_forward.18} parent=31 // pred_fallthru
        _
    $region32: #{gnet_forward.18} parent=5 // pred_fallthru
      _
    %p334 = scmp.le.s32.totalorder 2, %s9
    // Predicated region
    $region37: #{gnet_forward.18} parent=5 // pred_check
      %p335 = pneg %p334
    $region38: #{gnet_forward.18} parent=5 // pred_check_branch
      %337 = sbr.rel (%p335) target = $region40
    $region39: #{gnet_forward.18} parent=5 // pred_region
      %s338 = ssub.s32 %s9, 2
      // Predicated region
      $region41: #{gnet_forward.18} parent=39 // pred_check
        %p339 = pneg %p116
      $region42: #{gnet_forward.18} parent=39 // pred_check_branch
        %341 = sbr.rel (%p339) target = $region44
      $region43: #{gnet_forward.18} parent=39 // pred_region
        %p342 = scmp.lt.s32.totalorder %s15, 1
        %s343 = scalar_select %p342, %s15, 1
        %s344 = smul.addr %s343, 3
        %s345 = scalar_lea.vmem %s3, %s344
      $region44: #{gnet_forward.18} parent=39 // pred_fallthru
        _
    $region40: #{gnet_forward.18} parent=5 // pred_fallthru
      _
  $region6: #{gnet_forward.18} parent=0 // loop_footer
    %s13 = sadd.s32 1, %s9
  $region7: #{gnet_forward.18} parent=0 // loop_footer_branch
    %8 = sbr.rel target = $region3
  $region8: #{gnet_forward.18} parent=0 // loop_exit
    _

// kernel: gnet_forward.19
$region0: #{gnet_forward.19}
  #allocation0 [shape = 'u32[]', space=smem, size = 0x4, offset = 0x4, fixed_abs, tag = 'smem constant byte address 0x4 - core index']
  #allocation1 [shape = 'u32[72,128]{1,0:T(1,128)}', space=vmem, size = 0x9000, scoped, tag = 'internal scratch']
  %s0 = inlined_call_operand.vmem [shape: f32[2,288], index: 0, kind: input, shape index: {}]
  %s1 = inlined_call_operand.vmem [shape: bf16[288,32], index: 1, kind: input, shape index: {}]
  %s2 = inlined_call_operand.vmem [shape: f32[1,32], index: 2, kind: input, shape index: {}]
  %s3 = inlined_call_operand.vmem [shape: bf16[32,3], index: 3, kind: input, shape index: {}]
  %s4 = inlined_call_operand.vmem [shape: f32[1,3], index: 4, kind: input, shape index: {}]
  %s5 = inlined_call_operand.vmem [shape: f32[2,3], index: 5, kind: output, shape index: {}]
  %s6 = sld [smem:[#allocation0]]
  $region30: #{gnet_forward.19} parent=0
    _
  %s8 = ssub.s32 1, %s6
  %s9 = scalar_select 0, %s8, %s6
  // Predicated region
  $region2: #{gnet_forward.19} parent=0 // pred_check
    _
  $region3: #{gnet_forward.19} parent=0 // pred_check_branch
    %11 = sbr.rel (0) target = $region5
  $region4: #{gnet_forward.19} parent=0 // pred_region
    _
  $region5: #{gnet_forward.19} parent=0 // pred_fallthru
    _
  // Predicated region
  $region6: #{gnet_forward.19} parent=0 // pred_check
    _
  $region7: #{gnet_forward.19} parent=0 // pred_check_branch
    %13 = sbr.rel (0) target = $region9
  $region8: #{gnet_forward.19} parent=0 // pred_region
    _
  $region9: #{gnet_forward.19} parent=0 // pred_fallthru
    _
  // Predicated region
  $region10: #{gnet_forward.19} parent=0 // pred_check
    _
  $region11: #{gnet_forward.19} parent=0 // pred_check_branch
    %15 = sbr.rel (0) target = $region13
  $region12: #{gnet_forward.19} parent=0 // pred_region
    _
  $region13: #{gnet_forward.19} parent=0 // pred_fallthru
    _
  // Predicated region
  $region14: #{gnet_forward.19} parent=0 // pred_check
    _
  $region15: #{gnet_forward.19} parent=0 // pred_check_branch
    %17 = sbr.rel (0) target = $region17
  $region16: #{gnet_forward.19} parent=0 // pred_region
    _
  $region17: #{gnet_forward.19} parent=0 // pred_fallthru
    _
  // Predicated region
  $region18: #{gnet_forward.19} parent=0 // pred_check
    _
  $region19: #{gnet_forward.19} parent=0 // pred_check_branch
    %19 = sbr.rel (0) target = $region21
  $region20: #{gnet_forward.19} parent=0 // pred_region
    _
  $region21: #{gnet_forward.19} parent=0 // pred_fallthru
    _
  %v21 = vld [vmem:[%s0] sm:$0x3f]
  %23 = vst [vmem:[#allocation1] ss:$4 sm:$0xff] %v21
  %v24 = vld.sshfl [vmem:[#allocation1] sm:$0xff pattern:$0x73625140]
  %v25 = vld.sshfl [vmem:[#allocation1 + $0x8] sm:$0xff pattern:$0x73625140]
  %v26 = vld.sshfl [vmem:[#allocation1 + $0x10] sm:$0xff pattern:$0x73625140]
  %v30 = vpack.c.bf16 %v24, %v24
  %v31 = vpack.c.bf16 %v25, %v25
  %v32 = vpack.c.bf16 %v26, %v26
  %v33 = vld [vmem:[%s1] sm:$0xf]
  %v34 = vld [vmem:[%s1 + $0x4] sm:$0xf]
  %v35 = vld [vmem:[%s1 + $0x8] sm:$0xf]
  %v36 = vld [vmem:[%s1 + $0xc] sm:$0xf]
  %v37 = vld [vmem:[%s1 + $0x10] sm:$0xf]
  %v38 = vld [vmem:[%s1 + $0x14] sm:$0xf]
  %v39 = vld [vmem:[%s1 + $0x18] sm:$0xf]
  %v40 = vld [vmem:[%s1 + $0x1c] sm:$0xf]
  %v41 = vld [vmem:[%s1 + $0x20] sm:$0xf]
  %v42 = vld [vmem:[%s1 + $0x24] sm:$0xf]
  %v43 = vld [vmem:[%s1 + $0x28] sm:$0xf]
  %v44 = vld [vmem:[%s1 + $0x2c] sm:$0xf]
  %v45 = vld [vmem:[%s1 + $0x30] sm:$0xf]
  %v46 = vld [vmem:[%s1 + $0x34] sm:$0xf]
  %v47 = vld [vmem:[%s1 + $0x38] sm:$0xf]
  %v48 = vld [vmem:[%s1 + $0x3c] sm:$0xf]
  %v49 = vld [vmem:[%s1 + $0x40] sm:$0xf]
  %v50 = vld [vmem:[%s1 + $0x44] sm:$0xf]
  %v51 = vld [vmem:[%s1 + $0x48] sm:$0xf]
  %v52 = vld [vmem:[%s1 + $0x4c] sm:$0xf]
  %v53 = vld [vmem:[%s1 + $0x50] sm:$0xf]
  %v54 = vld [vmem:[%s1 + $0x54] sm:$0xf]
  %v55 = vld [vmem:[%s1 + $0x58] sm:$0xf]
  %v56 = vld [vmem:[%s1 + $0x5c] sm:$0xf]
  %v57 = vld [vmem:[%s1 + $0x60] sm:$0xf]
  %v58 = vld [vmem:[%s1 + $0x64] sm:$0xf]
  %v59 = vld [vmem:[%s1 + $0x68] sm:$0xf]
  %v60 = vld [vmem:[%s1 + $0x6c] sm:$0xf]
  %v61 = vld [vmem:[%s1 + $0x70] sm:$0xf]
  %v62 = vld [vmem:[%s1 + $0x74] sm:$0xf]
  %v63 = vld [vmem:[%s1 + $0x78] sm:$0xf]
  %v64 = vld [vmem:[%s1 + $0x7c] sm:$0xf]
  %v65 = vld [vmem:[%s1 + $0x80] sm:$0xf]
  %v66 = vld [vmem:[%s1 + $0x84] sm:$0xf]
  %v67 = vld [vmem:[%s1 + $0x88] sm:$0xf]
  %v68 = vld [vmem:[%s1 + $0x8c] sm:$0xf]
  %v69 = vld [vmem:[%s2] sm:$0x1]
  %v71 = vperm.slane %v69, 0
  %v109 = vunpack.c.l.b16 %v33
  %v110 = vunpack.c.l.b16 %v34
  %v111 = vunpack.c.l.b16 %v35
  %v112 = vunpack.c.l.b16 %v36
  %v113 = vunpack.c.l.b16 %v37
  %v114 = vunpack.c.l.b16 %v38
  %v115 = vunpack.c.l.b16 %v39
  %v116 = vunpack.c.l.b16 %v40
  %v117 = vunpack.c.l.b16 %v41
  %v118 = vunpack.c.l.b16 %v42
  %v119 = vunpack.c.l.b16 %v43
  %v120 = vunpack.c.l.b16 %v44
  %v121 = vunpack.c.l.b16 %v45
  %v122 = vunpack.c.l.b16 %v46
  %v123 = vunpack.c.l.b16 %v47
  %v124 = vunpack.c.l.b16 %v48
  %v125 = vunpack.c.l.b16 %v49
  %v126 = vunpack.c.l.b16 %v50
  %v127 = vunpack.c.l.b16 %v51
  %v128 = vunpack.c.l.b16 %v52
  %v129 = vunpack.c.l.b16 %v53
  %v130 = vunpack.c.l.b16 %v54
  %v131 = vunpack.c.l.b16 %v55
  %v132 = vunpack.c.l.b16 %v56
  %v133 = vunpack.c.l.b16 %v57
  %v134 = vunpack.c.l.b16 %v58
  %v135 = vunpack.c.l.b16 %v59
  %v136 = vunpack.c.l.b16 %v60
  %v137 = vunpack.c.l.b16 %v61
  %v138 = vunpack.c.l.b16 %v62
  %v139 = vunpack.c.l.b16 %v63
  %v140 = vunpack.c.l.b16 %v64
  %v141 = vunpack.c.l.b16 %v65
  %v142 = vunpack.c.l.b16 %v66
  %v143 = vunpack.c.l.b16 %v67
  %v144 = vunpack.c.l.b16 %v68
  %v145 = vpack.c.b16 %v110, %v109
  %v146 = vpack.c.b16 %v112, %v111
  %v147 = vpack.c.b16 %v114, %v113
  %v148 = vpack.c.b16 %v116, %v115
  %v149 = vpack.c.b16 %v118, %v117
  %v150 = vpack.c.b16 %v120, %v119
  %v151 = vpack.c.b16 %v122, %v121
  %v152 = vpack.c.b16 %v124, %v123
  %v153 = vpack.c.b16 %v126, %v125
  %v154 = vpack.c.b16 %v128, %v127
  %v155 = vpack.c.b16 %v130, %v129
  %v156 = vpack.c.b16 %v132, %v131
  %v157 = vpack.c.b16 %v134, %v133
  %v158 = vpack.c.b16 %v136, %v135
  %v159 = vpack.c.b16 %v138, %v137
  %v160 = vpack.c.b16 %v140, %v139
  %v161 = vpack.c.b16 %v142, %v141
  %v162 = vpack.c.b16 %v144, %v143
  %vm181 = vcmask 261120
  %v183 = vsel %vm181, %v32, 0
  %185 = vmatpush.bf16.msra.mxu0 %v152
  %186 = vmatpush.bf16.msra.mxu0 %v151
  %187 = vmatpush.bf16.msra.mxu0 %v150
  %188 = vmatpush.bf16.msra.mxu0 %v149
  %189 = vmatpush.bf16.msra.mxu0 %v148
  %190 = vmatpush.bf16.msra.mxu0 %v147
  %191 = vmatpush.bf16.msra.mxu0 %v146
  %192 = vmatpush.bf16.msra.mxu0 %v145
  %193 = vmatmul.bf16.gmra.mxu0 %v30
  %v194 = vpop.f32.mrf.mxu0
  %v195 = vadd.f32 %v71, %v194
  %v196 = vpop.f32.mrf.mxu0
  %197 = vdwg.mxu0
  %198 = vmatpush.bf16.msra.mxu0 %v160
  %199 = vmatpush.bf16.msra.mxu0 %v159
  %200 = vmatpush.bf16.msra.mxu0 %v158
  %201 = vmatpush.bf16.msra.mxu0 %v157
  %202 = vmatpush.bf16.msra.mxu0 %v156
  %203 = vmatpush.bf16.msra.mxu0 %v155
  %204 = vmatpush.bf16.msra.mxu0 %v154
  %205 = vmatpush.bf16.msra.mxu0 %v153
  %206 = vmatmul.bf16.gmra.mxu0 %v31
  %v207 = vpop.f32.mrf.mxu0
  %v208 = vadd.f32 %v195, %v207
  %v209 = vpop.f32.mrf.mxu0
  %210 = vdwg.mxu0
  %211 = vmatpush.bf16.msra.mxu0 0
  %212 = vmatpush.bf16.msra.mxu0 0
  %213 = vmatpush.bf16.msra.mxu0 0
  %214 = vmatpush.bf16.msra.mxu0 0
  %215 = vmatpush.bf16.msra.mxu0 0
  %216 = vmatpush.bf16.msra.mxu0 0
  %217 = vmatpush.bf16.msra.mxu0 %v162
  %218 = vmatpush.bf16.msra.mxu0 %v161
  %219 = vmatmul.bf16.gmra.mxu0 %v183
  %v220 = vpop.f32.mrf.mxu0
  %v221 = vadd.f32 %v208, %v220
  %v222 = vpop.f32.mrf.mxu0
  %223 = vdwg.mxu0
  %vm224 = vcmp.gt.f32.partialorder %v221, 0.0
  %v225 = vmul.f32 %v221, 1.442695
  %v226 = vpow.pop %v225
  %v227 = vsub.f32 %v226, 1.0
  %v228 = vsel %vm224, %v221, %v227
  %v229 = vpack.c.bf16 %v228, %v228
  %v230 = vld [vmem:[%s3] sm:$0xf]
  %v231 = vld [vmem:[%s3 + $0x4] sm:$0xf]
  %v232 = vld [vmem:[%s3 + $0x8] sm:$0xf]
  %v233 = vld [vmem:[%s3 + $0xc] sm:$0xf]
  %v234 = vld [vmem:[%s4] sm:$0x1]
  %v236 = vperm.slane %v234, 0
  %v242 = vunpack.c.l.b16 %v230
  %v243 = vunpack.c.l.b16 %v231
  %v244 = vunpack.c.l.b16 %v232
  %v245 = vunpack.c.l.b16 %v233
  %v246 = vpack.c.b16 %v243, %v242
  %v247 = vpack.c.b16 %v245, %v244
  %v251 = vsel %vm181, %v229, 0
  %253 = vmatpush.bf16.msra.mxu0 0
  %254 = vmatpush.bf16.msra.mxu0 0
  %255 = vmatpush.bf16.msra.mxu0 0
  %256 = vmatpush.bf16.msra.mxu0 0
  %257 = vmatpush.bf16.msra.mxu0 0
  %258 = vmatpush.bf16.msra.mxu0 0
  %259 = vmatpush.bf16.msra.mxu0 %v247
  %260 = vmatpush.bf16.msra.mxu0 %v246
  %261 = vmatmul.bf16.gmra.mxu0 %v251
  %v262 = vpop.f32.mrf.mxu0
  %v263 = vadd.f32 %v236, %v262
  %v264 = vpop.f32.mrf.mxu0
  %265 = vdwg.mxu0
  %vm266 = vcmask 17408
  %v267 = vsel %vm266, %v263, -inf
  %268 = vmax.xlane.f32.xlu0 %v267
  %v269 = vpop.xlane.xlu0 %268
  %v270 = vsub.f32 %v263, %v269
  %v271 = vmul.f32 %v270, 1.442695
  %v272 = vpow.pop %v271
  %v273 = vsel %vm266, %v272, 0.0
  %274 = vadd.xlane.f32.xlu0 %v273
  %v275 = vpop.xlane.xlu0 %274
  %v276 = vlog2.pop %v275
  %v277 = vmul.f32 %v276, 0.6931472
  %v278 = vsub.f32 %v270, %v277
  %279 = vst.msk [vmem:[%s5] sm:$0x3] %vm266, %v278
  // Predicated region
  $region22: #{gnet_forward.19} parent=0 // pred_check
    _
  $region23: #{gnet_forward.19} parent=0 // pred_check_branch
    %281 = sbr.rel (0) target = $region25
  $region24: #{gnet_forward.19} parent=0 // pred_region
    _
  $region25: #{gnet_forward.19} parent=0 // pred_fallthru
    _
  // Predicated region
  $region26: #{gnet_forward.19} parent=0 // pred_check
    _
  $region27: #{gnet_forward.19} parent=0 // pred_check_branch
    %283 = sbr.rel (0) target = $region29
  $region28: #{gnet_forward.19} parent=0 // pred_region
    _
  $region29: #{gnet_forward.19} parent=0 // pred_fallthru
    _

</llo_original>
